<compile_context>
chip_gen: v7x
topology: tpu7x:2x2x1
jax: 0.10.0
libtpu: 0.0.40
codegen_flags: <defaults>
</compile_context>

<pallas_src>
import functools

import jax
import jax.numpy as jnp
from jax.experimental import pallas as pl
from jax.experimental.pallas import tpu as pltpu

EPS = 1e-5  # nn.InstanceNorm2d default eps

# ConvTranspose2d(k=4, s=2, p=1): output pixel (2m+a, 2l+b) reads a 2x2 window
# of the 1-padded input; the kernel tap for output parity a (resp. b) and window
# offset r (resp. c) is _K_IDX[a][r] (resp. _K_IDX[b][c]).
_K_IDX = ((3, 1), (2, 0))
_PARITIES = ((0, 0), (0, 1), (1, 0), (1, 1))   # p = 2a + b
_OFFSETS = ((0, 0), (0, 1), (1, 0), (1, 1))    # q = 2r + c  (K-block order)


def _unetup_kernel(xp_ref, w_ref, o_ref, lhs_ref, *, H, W, C_in, C_out):
    """One batch sample per grid step.

    xp_ref : (1, H+2, W+2, C_in)   bf16, spatially padded, channel-last
    w_ref  : (4, 4*C_in, C_out)    bf16 fused weights; parity p = 2a+b, K-block
                                   q = 2r+c holds weight[:, :, KIDX[a][r], KIDX[b][c]]
    o_ref  : (1, 4, H*W, C_out)    parity-major output (lane dim = C_out)
    lhs_ref: (2, H, W, 4*C_in)     bf16 ping-pong scratch for the fused-K operand
    """
    HW = H * W
    xp = xp_ref[0]                                       # (H+2, W+2, C_in)

    # Only the 3 distinct column shifts are materialized (dx in {0,1,2}); the
    # row (dy) shifts below are free leading-dim slices of these.
    xs = [xp[:, dx:dx + W, :] for dx in range(3)]        # 3 x (H+2, W, C_in)

    # Transposed conv: 4 bf16 MXU matmuls (one per output parity), K = 4*C_in,
    # f32 accumulation.  The operand is assembled just-in-time in a 2-slot VMEM
    # scratch so the fill of parity p+1 can overlap the matmul of parity p.
    acc = []                                             # 4 x (HW, C_out) f32
    for p, (a, b) in enumerate(_PARITIES):
        slot = p % 2
        for q, (r, c) in enumerate(_OFFSETS):
            lhs_ref[slot, :, :, q * C_in:(q + 1) * C_in] = xs[b + c][a + r:a + r + H]
        lhs = lhs_ref[slot, :, :, :].reshape(HW, 4 * C_in)
        acc.append(jnp.dot(lhs, w_ref[p, :, :],
                           preferred_element_type=jnp.float32))

    # InstanceNorm statistics, two-pass (mean, then centered sum of squares) in
    # f32 over all 4*HW positions of each output channel.
    cnt = jnp.float32(4 * HW)
    s1 = jnp.zeros((1, C_out), jnp.float32)
    for s in acc:
        s1 = s1 + jnp.sum(s, axis=0, keepdims=True)
    mean = s1 / cnt
    s2 = jnp.zeros((1, C_out), jnp.float32)
    for s in acc:
        d = s - mean
        s2 = s2 + jnp.sum(d * d, axis=0, keepdims=True)
    inv = jax.lax.rsqrt(s2 / cnt + EPS)

    # Normalize + ReLU.  Parity-major output: each store is a full-width,
    # unmasked (HW, C_out) store (no partial-lane masked vst).
    for p, s in enumerate(acc):
        o_ref[0, p, :, :] = jnp.maximum((s - mean) * inv, 0.0).astype(o_ref.dtype)
    # TODO(synk): nn.Dropout branch (dropout>0, training) not implemented;
    #             default dropout=0.0 (identity) is what this kernel reproduces.


def _fuse_weights(weight):
    """(C_in, C_out, 4, 4) -> (4, 4*C_in, C_out) bf16, parity/K-block order
    matching the kernel's operand assembly."""
    blocks = []
    for a, b in _PARITIES:
        kblocks = [weight[:, :, _K_IDX[a][r], _K_IDX[b][c]] for r, c in _OFFSETS]
        blocks.append(jnp.concatenate(kblocks, axis=0))          # (4*C_in, C_out)
    return jnp.stack(blocks, axis=0).astype(jnp.bfloat16)        # (4, 4*C_in, C_out)


def _vmem_cap_bytes():
    try:
        return int(0.8 * pltpu.get_tpu_info().vmem_capacity_bytes)
    except Exception:
        return 48 * 1024 * 1024   # conservative: fits inside v7x's 64 MiB physical VMEM


def unet_up(x, skip, weight):
    """UNetUp forward.

    x:      (N, C_in, H, W)
    skip:   (N, C_skip, 2H, 2W)
    weight: (C_in, C_out, 4, 4)   # PyTorch ConvTranspose2d layout, bias=False
    returns (N, C_out + C_skip, 2H, 2W)
    """
    N, C_in, H, W = x.shape
    C_out = weight.shape[1]
    HW = H * W

    # Pad + channel-last + bf16 for the MXU (one cheap pass over the smallest
    # tensor).  bf16 operands / f32 accumulation: small documented quantization
    # vs. a pure-f32 PyTorch baseline.
    xp = jnp.pad(x, ((0, 0), (0, 0), (1, 1), (1, 1)))
    xp = jnp.transpose(xp, (0, 2, 3, 1)).astype(jnp.bfloat16)    # (N, H+2, W+2, C_in)
    wmat = _fuse_weights(weight)                                 # (4, 4*C_in, C_out)

    out_dtype = x.dtype
    bpe_out = jnp.dtype(out_dtype).itemsize
    # VMEM budget: double-buffered pipeline blocks + scratch + in-kernel
    # temporaries, with headroom, clamped to the chip's physical VMEM.
    est = (2 * (H + 2) * (W + 2) * C_in * 2          # xp blocks (bf16)
           + 2 * 4 * (4 * C_in) * C_out * 2          # fused weight blocks (bf16)
           + 2 * 4 * HW * C_out * bpe_out            # out blocks
           + 2 * H * W * (4 * C_in) * 2              # ping-pong LHS scratch (bf16)
           + (H + 2) * (W + 2) * C_in * 2            # xp value
           + 3 * (H + 2) * W * C_in * 2              # 3 column-shift copies
           + 8 * HW * C_out * 4)                     # f32 accumulators + temps
    vmem_limit = int(min(max(2 * est, 32 * 1024 * 1024), _vmem_cap_bytes()))
    # TODO(synk): for very large layers (esp. v7x's 64 MiB VMEM) add an
    #             "arbitrary" HW tile axis (carrying s1/s2 across tiles) and a
    #             "parallel" C_out tile axis (stats are per-channel, so C_out
    #             tiles are independent and would also feed both v7x cores when
    #             N is 1/odd); the parity-major output layout already supports it.
    # TODO(synk): the fused weight block has a constant index_map and is DMA'd
    #             once, but still gets a second pipeline buffer; single-buffer
    #             it (pl.Buffered(1) / one-shot manual copy) once that path is
    #             validated across generations.

    kern = functools.partial(_unetup_kernel, H=H, W=W, C_in=C_in, C_out=C_out)
    out = pl.pallas_call(
        kern,
        out_shape=jax.ShapeDtypeStruct((N, 4, HW, C_out), out_dtype),
        grid=(N,),
        in_specs=[
            pl.BlockSpec((1, H + 2, W + 2, C_in), lambda n: (n, 0, 0, 0)),
            pl.BlockSpec((4, 4 * C_in, C_out), lambda n: (0, 0, 0)),
        ],
        out_specs=pl.BlockSpec((1, 4, HW, C_out), lambda n: (n, 0, 0, 0)),
        scratch_shapes=[pltpu.VMEM((2, H, W, 4 * C_in), jnp.bfloat16)],
        compiler_params=pltpu.CompilerParams(
            dimension_semantics=("parallel",),
            vmem_limit_bytes=vmem_limit),
    )(xp, wmat)

    # (N, 4, HW, C_out) -> NCHW (N, C_out, 2H, 2W): parity interleave + channel-
    # major.  XLA fuses this transpose with the concat into one epilogue pass.
    y = out.reshape(N, 2, 2, H, W, C_out)
    y = jnp.transpose(y, (0, 5, 3, 1, 4, 2)).reshape(N, C_out, 2 * H, 2 * W)
    # TODO(synk): the remaining epilogue (one extra HBM round trip of y plus the
    #             skip copy) could be removed by emitting NCHW directly from the
    #             kernel and copying skip in-kernel; that needs in-kernel
    #             (HW,C)->(C,H,W) transposes / lane-parity interleaves whose
    #             lowering has not been validated here, so it stays in XLA for
    #             robustness.
    return jnp.concatenate([y, skip], axis=1)


def unet_up_reference(x, skip, weight):
    """Pure-JAX reference (lax dilated conv == ConvTranspose2d(4,2,1,bias=False))."""
    wf = jnp.transpose(weight, (1, 0, 2, 3))[:, :, ::-1, ::-1]    # (C_out, C_in, 4, 4)
    y = jax.lax.conv_general_dilated(
        x, wf, window_strides=(1, 1), padding=[(2, 2), (2, 2)],
        lhs_dilation=(2, 2), dimension_numbers=('NCHW', 'OIHW', 'NCHW'))
    mean = jnp.mean(y, axis=(2, 3), keepdims=True)
    var = jnp.mean((y - mean) ** 2, axis=(2, 3), keepdims=True)
    y = jnp.maximum((y - mean) * jax.lax.rsqrt(var + EPS), 0.0)
    return jnp.concatenate([y, skip], axis=1)


if __name__ == "__main__":
    key = jax.random.PRNGKey(0)
    k1, k2, k3 = jax.random.split(key, 3)

    N, C_in, C_out, H, W = 2, 8, 8, 16, 16
    x = jax.random.normal(k1, (N, C_in, H, W), dtype=jnp.float32)
    skip = jax.random.normal(k2, (N, C_out, 2 * H, 2 * W), dtype=jnp.float32)
    # ConvTranspose2d weight shape: (in_size, out_size, 4, 4), bias=False
    weight = 0.05 * jax.random.normal(k3, (C_in, C_out, 4, 4), dtype=jnp.float32)

    out = jax.jit(unet_up)(x, skip, weight)
    out = jax.block_until_ready(out)

    # Reference evaluated on bf16-quantized inputs (the kernel feeds bf16 MXU
    # operands with f32 accumulation), so the comparison stays tight.
    xq = x.astype(jnp.bfloat16).astype(jnp.float32)
    wq = weight.astype(jnp.bfloat16).astype(jnp.float32)
    ref = unet_up_reference(xq, skip, wq)

    assert out.shape == (N, 2 * C_out, 2 * H, 2 * W), out.shape
    max_err = float(jnp.max(jnp.abs(out - ref)))
    assert jnp.allclose(out, ref, atol=2e-3, rtol=2e-3), max_err

    print("KERNEL_OK")
</pallas_src>

<mosaic_0001>
module attributes {stable_mosaic.version = 11 : i64} {
  func.func @_unetup_kernel(%arg0: i32, %arg1: memref<1x18x18x8xbf16, #tpu.memory_space<vmem>>, %arg2: memref<4x32x8xbf16, #tpu.memory_space<vmem>>, %arg3: memref<1x4x256x8xf32, #tpu.memory_space<vmem>>, %arg4: memref<2x16x16x32xbf16, #tpu.memory_space<vmem>>) attributes {dimension_semantics = [#tpu.dimension_semantics<parallel>], iteration_bounds = array<i64: 2>, scalar_prefetch = 0 : i64, scratch_operands = 1 : i64, tpu.core_type = #tpu.core_type<tc>, window_params = [{transform_indices = @transform_0, window_bounds = array<i64: 1, 18, 18, 8>}, {pipeline_mode = #tpu.pipeline_mode<synchronous>, transform_indices = @transform_1, window_bounds = array<i64: 4, 32, 8>}, {transform_indices = @transform_2, window_bounds = array<i64: 1, 4, 256, 8>}]} {
    %c0 = arith.constant 0 : index
    %c0_0 = arith.constant 0 : index
    %c0_1 = arith.constant 0 : index
    %c0_2 = arith.constant 0 : index
    %0 = vector.load %arg1[%c0, %c0_0, %c0_1, %c0_2] : memref<1x18x18x8xbf16, #tpu.memory_space<vmem>>, vector<1x18x18x8xbf16>
    %1 = vector.shape_cast %0 : vector<1x18x18x8xbf16> to vector<18x18x8xbf16>
    %2 = vector.extract_strided_slice %1 {offsets = [0, 0, 0], sizes = [18, 16, 8], strides = [1, 1, 1]} : vector<18x18x8xbf16> to vector<18x16x8xbf16>
    %3 = vector.extract_strided_slice %1 {offsets = [0, 1, 0], sizes = [18, 16, 8], strides = [1, 1, 1]} : vector<18x18x8xbf16> to vector<18x16x8xbf16>
    %4 = vector.extract_strided_slice %1 {offsets = [0, 2, 0], sizes = [18, 16, 8], strides = [1, 1, 1]} : vector<18x18x8xbf16> to vector<18x16x8xbf16>
    %5 = vector.extract_strided_slice %2 {offsets = [0, 0, 0], sizes = [16, 16, 8], strides = [1, 1, 1]} : vector<18x16x8xbf16> to vector<16x16x8xbf16>
    %c0_3 = arith.constant 0 : index
    %c0_4 = arith.constant 0 : index
    %c0_5 = arith.constant 0 : index
    %c0_6 = arith.constant 0 : index
    %6 = vector.load %arg4[%c0_3, %c0_4, %c0_5, %c0_6] : memref<2x16x16x32xbf16, #tpu.memory_space<vmem>>, vector<1x16x16x8xbf16>
    %7 = vector.shape_cast %6 : vector<1x16x16x8xbf16> to vector<16x16x8xbf16>
    %8 = vector.shape_cast %5 : vector<16x16x8xbf16> to vector<1x16x16x8xbf16>
    tpu.vector_store %arg4[%c0_3, %c0_4, %c0_5, %c0_6], %8 {strides = array<i32>} : memref<2x16x16x32xbf16, #tpu.memory_space<vmem>>, vector<1x16x16x8xbf16>,
    %9 = vector.extract_strided_slice %3 {offsets = [0, 0, 0], sizes = [16, 16, 8], strides = [1, 1, 1]} : vector<18x16x8xbf16> to vector<16x16x8xbf16>
    %c0_7 = arith.constant 0 : index
    %c0_8 = arith.constant 0 : index
    %c0_9 = arith.constant 0 : index
    %c8 = arith.constant 8 : index
    %10 = vector.load %arg4[%c0_7, %c0_8, %c0_9, %c8] : memref<2x16x16x32xbf16, #tpu.memory_space<vmem>>, vector<1x16x16x8xbf16>
    %11 = vector.shape_cast %10 : vector<1x16x16x8xbf16> to vector<16x16x8xbf16>
    %12 = vector.shape_cast %9 : vector<16x16x8xbf16> to vector<1x16x16x8xbf16>
    tpu.vector_store %arg4[%c0_7, %c0_8, %c0_9, %c8], %12 {strides = array<i32>} : memref<2x16x16x32xbf16, #tpu.memory_space<vmem>>, vector<1x16x16x8xbf16>,
    %13 = vector.extract_strided_slice %2 {offsets = [1, 0, 0], sizes = [16, 16, 8], strides = [1, 1, 1]} : vector<18x16x8xbf16> to vector<16x16x8xbf16>
    %c0_10 = arith.constant 0 : index
    %c0_11 = arith.constant 0 : index
    %c0_12 = arith.constant 0 : index
    %c16 = arith.constant 16 : index
    %14 = vector.load %arg4[%c0_10, %c0_11, %c0_12, %c16] : memref<2x16x16x32xbf16, #tpu.memory_space<vmem>>, vector<1x16x16x8xbf16>
    %15 = vector.shape_cast %14 : vector<1x16x16x8xbf16> to vector<16x16x8xbf16>
    %16 = vector.shape_cast %13 : vector<16x16x8xbf16> to vector<1x16x16x8xbf16>
    tpu.vector_store %arg4[%c0_10, %c0_11, %c0_12, %c16], %16 {strides = array<i32>} : memref<2x16x16x32xbf16, #tpu.memory_space<vmem>>, vector<1x16x16x8xbf16>,
    %17 = vector.extract_strided_slice %3 {offsets = [1, 0, 0], sizes = [16, 16, 8], strides = [1, 1, 1]} : vector<18x16x8xbf16> to vector<16x16x8xbf16>
    %c0_13 = arith.constant 0 : index
    %c0_14 = arith.constant 0 : index
    %c0_15 = arith.constant 0 : index
    %c24 = arith.constant 24 : index
    %18 = vector.load %arg4[%c0_13, %c0_14, %c0_15, %c24] : memref<2x16x16x32xbf16, #tpu.memory_space<vmem>>, vector<1x16x16x8xbf16>
    %19 = vector.shape_cast %18 : vector<1x16x16x8xbf16> to vector<16x16x8xbf16>
    %20 = vector.shape_cast %17 : vector<16x16x8xbf16> to vector<1x16x16x8xbf16>
    tpu.vector_store %arg4[%c0_13, %c0_14, %c0_15, %c24], %20 {strides = array<i32>} : memref<2x16x16x32xbf16, #tpu.memory_space<vmem>>, vector<1x16x16x8xbf16>,
    %c0_16 = arith.constant 0 : index
    %c0_17 = arith.constant 0 : index
    %c0_18 = arith.constant 0 : index
    %c0_19 = arith.constant 0 : index
    %21 = vector.load %arg4[%c0_16, %c0_17, %c0_18, %c0_19] : memref<2x16x16x32xbf16, #tpu.memory_space<vmem>>, vector<1x16x16x32xbf16>
    %22 = vector.shape_cast %21 : vector<1x16x16x32xbf16> to vector<16x16x32xbf16>
    %23 = vector.shape_cast %22 : vector<16x16x32xbf16> to vector<256x32xbf16>
    %c0_20 = arith.constant 0 : index
    %c0_21 = arith.constant 0 : index
    %c0_22 = arith.constant 0 : index
    %24 = vector.load %arg2[%c0_20, %c0_21, %c0_22] : memref<4x32x8xbf16, #tpu.memory_space<vmem>>, vector<1x32x8xbf16>
    %25 = vector.shape_cast %24 : vector<1x32x8xbf16> to vector<32x8xbf16>
    %cst = arith.constant dense<0.000000e+00> : vector<256x8xf32>
    %26 = tpu.matmul %23, %25, %cst {dimension_numbers = #tpu.dot_dimension_numbers<[1], [0], [0], [1], [0, 0, 1, 1], [], []>} : vector<256x32xbf16>, vector<32x8xbf16>, vector<256x8xf32> -> vector<256x8xf32>
    %27 = vector.extract_strided_slice %3 {offsets = [0, 0, 0], sizes = [16, 16, 8], strides = [1, 1, 1]} : vector<18x16x8xbf16> to vector<16x16x8xbf16>
    %c1 = arith.constant 1 : index
    %c0_23 = arith.constant 0 : index
    %c0_24 = arith.constant 0 : index
    %c0_25 = arith.constant 0 : index
    %28 = vector.load %arg4[%c1, %c0_23, %c0_24, %c0_25] : memref<2x16x16x32xbf16, #tpu.memory_space<vmem>>, vector<1x16x16x8xbf16>
    %29 = vector.shape_cast %28 : vector<1x16x16x8xbf16> to vector<16x16x8xbf16>
    %30 = vector.shape_cast %27 : vector<16x16x8xbf16> to vector<1x16x16x8xbf16>
    tpu.vector_store %arg4[%c1, %c0_23, %c0_24, %c0_25], %30 {strides = array<i32>} : memref<2x16x16x32xbf16, #tpu.memory_space<vmem>>, vector<1x16x16x8xbf16>,
    %31 = vector.extract_strided_slice %4 {offsets = [0, 0, 0], sizes = [16, 16, 8], strides = [1, 1, 1]} : vector<18x16x8xbf16> to vector<16x16x8xbf16>
    %c1_26 = arith.constant 1 : index
    %c0_27 = arith.constant 0 : index
    %c0_28 = arith.constant 0 : index
    %c8_29 = arith.constant 8 : index
    %32 = vector.load %arg4[%c1_26, %c0_27, %c0_28, %c8_29] : memref<2x16x16x32xbf16, #tpu.memory_space<vmem>>, vector<1x16x16x8xbf16>
    %33 = vector.shape_cast %32 : vector<1x16x16x8xbf16> to vector<16x16x8xbf16>
    %34 = vector.shape_cast %31 : vector<16x16x8xbf16> to vector<1x16x16x8xbf16>
    tpu.vector_store %arg4[%c1_26, %c0_27, %c0_28, %c8_29], %34 {strides = array<i32>} : memref<2x16x16x32xbf16, #tpu.memory_space<vmem>>, vector<1x16x16x8xbf16>,
    %35 = vector.extract_strided_slice %3 {offsets = [1, 0, 0], sizes = [16, 16, 8], strides = [1, 1, 1]} : vector<18x16x8xbf16> to vector<16x16x8xbf16>
    %c1_30 = arith.constant 1 : index
    %c0_31 = arith.constant 0 : index
    %c0_32 = arith.constant 0 : index
    %c16_33 = arith.constant 16 : index
    %36 = vector.load %arg4[%c1_30, %c0_31, %c0_32, %c16_33] : memref<2x16x16x32xbf16, #tpu.memory_space<vmem>>, vector<1x16x16x8xbf16>
    %37 = vector.shape_cast %36 : vector<1x16x16x8xbf16> to vector<16x16x8xbf16>
    %38 = vector.shape_cast %35 : vector<16x16x8xbf16> to vector<1x16x16x8xbf16>
    tpu.vector_store %arg4[%c1_30, %c0_31, %c0_32, %c16_33], %38 {strides = array<i32>} : memref<2x16x16x32xbf16, #tpu.memory_space<vmem>>, vector<1x16x16x8xbf16>,
    %39 = vector.extract_strided_slice %4 {offsets = [1, 0, 0], sizes = [16, 16, 8], strides = [1, 1, 1]} : vector<18x16x8xbf16> to vector<16x16x8xbf16>
    %c1_34 = arith.constant 1 : index
    %c0_35 = arith.constant 0 : index
    %c0_36 = arith.constant 0 : index
    %c24_37 = arith.constant 24 : index
    %40 = vector.load %arg4[%c1_34, %c0_35, %c0_36, %c24_37] : memref<2x16x16x32xbf16, #tpu.memory_space<vmem>>, vector<1x16x16x8xbf16>
    %41 = vector.shape_cast %40 : vector<1x16x16x8xbf16> to vector<16x16x8xbf16>
    %42 = vector.shape_cast %39 : vector<16x16x8xbf16> to vector<1x16x16x8xbf16>
    tpu.vector_store %arg4[%c1_34, %c0_35, %c0_36, %c24_37], %42 {strides = array<i32>} : memref<2x16x16x32xbf16, #tpu.memory_space<vmem>>, vector<1x16x16x8xbf16>,
    %c1_38 = arith.constant 1 : index
    %c0_39 = arith.constant 0 : index
    %c0_40 = arith.constant 0 : index
    %c0_41 = arith.constant 0 : index
    %43 = vector.load %arg4[%c1_38, %c0_39, %c0_40, %c0_41] : memref<2x16x16x32xbf16, #tpu.memory_space<vmem>>, vector<1x16x16x32xbf16>
    %44 = vector.shape_cast %43 : vector<1x16x16x32xbf16> to vector<16x16x32xbf16>
    %45 = vector.shape_cast %44 : vector<16x16x32xbf16> to vector<256x32xbf16>
    %c1_42 = arith.constant 1 : index
    %c0_43 = arith.constant 0 : index
    %c0_44 = arith.constant 0 : index
    %46 = vector.load %arg2[%c1_42, %c0_43, %c0_44] : memref<4x32x8xbf16, #tpu.memory_space<vmem>>, vector<1x32x8xbf16>
    %47 = vector.shape_cast %46 : vector<1x32x8xbf16> to vector<32x8xbf16>
    %cst_45 = arith.constant dense<0.000000e+00> : vector<256x8xf32>
    %48 = tpu.matmul %45, %47, %cst_45 {dimension_numbers = #tpu.dot_dimension_numbers<[1], [0], [0], [1], [0, 0, 1, 1], [], []>} : vector<256x32xbf16>, vector<32x8xbf16>, vector<256x8xf32> -> vector<256x8xf32>
    %49 = vector.extract_strided_slice %2 {offsets = [1, 0, 0], sizes = [16, 16, 8], strides = [1, 1, 1]} : vector<18x16x8xbf16> to vector<16x16x8xbf16>
    %c0_46 = arith.constant 0 : index
    %c0_47 = arith.constant 0 : index
    %c0_48 = arith.constant 0 : index
    %c0_49 = arith.constant 0 : index
    %50 = vector.load %arg4[%c0_46, %c0_47, %c0_48, %c0_49] : memref<2x16x16x32xbf16, #tpu.memory_space<vmem>>, vector<1x16x16x8xbf16>
    %51 = vector.shape_cast %50 : vector<1x16x16x8xbf16> to vector<16x16x8xbf16>
    %52 = vector.shape_cast %49 : vector<16x16x8xbf16> to vector<1x16x16x8xbf16>
    tpu.vector_store %arg4[%c0_46, %c0_47, %c0_48, %c0_49], %52 {strides = array<i32>} : memref<2x16x16x32xbf16, #tpu.memory_space<vmem>>, vector<1x16x16x8xbf16>,
    %53 = vector.extract_strided_slice %3 {offsets = [1, 0, 0], sizes = [16, 16, 8], strides = [1, 1, 1]} : vector<18x16x8xbf16> to vector<16x16x8xbf16>
    %c0_50 = arith.constant 0 : index
    %c0_51 = arith.constant 0 : index
    %c0_52 = arith.constant 0 : index
    %c8_53 = arith.constant 8 : index
    %54 = vector.load %arg4[%c0_50, %c0_51, %c0_52, %c8_53] : memref<2x16x16x32xbf16, #tpu.memory_space<vmem>>, vector<1x16x16x8xbf16>
    %55 = vector.shape_cast %54 : vector<1x16x16x8xbf16> to vector<16x16x8xbf16>
    %56 = vector.shape_cast %53 : vector<16x16x8xbf16> to vector<1x16x16x8xbf16>
    tpu.vector_store %arg4[%c0_50, %c0_51, %c0_52, %c8_53], %56 {strides = array<i32>} : memref<2x16x16x32xbf16, #tpu.memory_space<vmem>>, vector<1x16x16x8xbf16>,
    %57 = vector.extract_strided_slice %2 {offsets = [2, 0, 0], sizes = [16, 16, 8], strides = [1, 1, 1]} : vector<18x16x8xbf16> to vector<16x16x8xbf16>
    %c0_54 = arith.constant 0 : index
    %c0_55 = arith.constant 0 : index
    %c0_56 = arith.constant 0 : index
    %c16_57 = arith.constant 16 : index
    %58 = vector.load %arg4[%c0_54, %c0_55, %c0_56, %c16_57] : memref<2x16x16x32xbf16, #tpu.memory_space<vmem>>, vector<1x16x16x8xbf16>
    %59 = vector.shape_cast %58 : vector<1x16x16x8xbf16> to vector<16x16x8xbf16>
    %60 = vector.shape_cast %57 : vector<16x16x8xbf16> to vector<1x16x16x8xbf16>
    tpu.vector_store %arg4[%c0_54, %c0_55, %c0_56, %c16_57], %60 {strides = array<i32>} : memref<2x16x16x32xbf16, #tpu.memory_space<vmem>>, vector<1x16x16x8xbf16>,
    %61 = vector.extract_strided_slice %3 {offsets = [2, 0, 0], sizes = [16, 16, 8], strides = [1, 1, 1]} : vector<18x16x8xbf16> to vector<16x16x8xbf16>
    %c0_58 = arith.constant 0 : index
    %c0_59 = arith.constant 0 : index
    %c0_60 = arith.constant 0 : index
    %c24_61 = arith.constant 24 : index
    %62 = vector.load %arg4[%c0_58, %c0_59, %c0_60, %c24_61] : memref<2x16x16x32xbf16, #tpu.memory_space<vmem>>, vector<1x16x16x8xbf16>
    %63 = vector.shape_cast %62 : vector<1x16x16x8xbf16> to vector<16x16x8xbf16>
    %64 = vector.shape_cast %61 : vector<16x16x8xbf16> to vector<1x16x16x8xbf16>
    tpu.vector_store %arg4[%c0_58, %c0_59, %c0_60, %c24_61], %64 {strides = array<i32>} : memref<2x16x16x32xbf16, #tpu.memory_space<vmem>>, vector<1x16x16x8xbf16>,
    %c0_62 = arith.constant 0 : index
    %c0_63 = arith.constant 0 : index
    %c0_64 = arith.constant 0 : index
    %c0_65 = arith.constant 0 : index
    %65 = vector.load %arg4[%c0_62, %c0_63, %c0_64, %c0_65] : memref<2x16x16x32xbf16, #tpu.memory_space<vmem>>, vector<1x16x16x32xbf16>
    %66 = vector.shape_cast %65 : vector<1x16x16x32xbf16> to vector<16x16x32xbf16>
    %67 = vector.shape_cast %66 : vector<16x16x32xbf16> to vector<256x32xbf16>
    %c2 = arith.constant 2 : index
    %c0_66 = arith.constant 0 : index
    %c0_67 = arith.constant 0 : index
    %68 = vector.load %arg2[%c2, %c0_66, %c0_67] : memref<4x32x8xbf16, #tpu.memory_space<vmem>>, vector<1x32x8xbf16>
    %69 = vector.shape_cast %68 : vector<1x32x8xbf16> to vector<32x8xbf16>
    %cst_68 = arith.constant dense<0.000000e+00> : vector<256x8xf32>
    %70 = tpu.matmul %67, %69, %cst_68 {dimension_numbers = #tpu.dot_dimension_numbers<[1], [0], [0], [1], [0, 0, 1, 1], [], []>} : vector<256x32xbf16>, vector<32x8xbf16>, vector<256x8xf32> -> vector<256x8xf32>
    %71 = vector.extract_strided_slice %3 {offsets = [1, 0, 0], sizes = [16, 16, 8], strides = [1, 1, 1]} : vector<18x16x8xbf16> to vector<16x16x8xbf16>
    %c1_69 = arith.constant 1 : index
    %c0_70 = arith.constant 0 : index
    %c0_71 = arith.constant 0 : index
    %c0_72 = arith.constant 0 : index
    %72 = vector.load %arg4[%c1_69, %c0_70, %c0_71, %c0_72] : memref<2x16x16x32xbf16, #tpu.memory_space<vmem>>, vector<1x16x16x8xbf16>
    %73 = vector.shape_cast %72 : vector<1x16x16x8xbf16> to vector<16x16x8xbf16>
    %74 = vector.shape_cast %71 : vector<16x16x8xbf16> to vector<1x16x16x8xbf16>
    tpu.vector_store %arg4[%c1_69, %c0_70, %c0_71, %c0_72], %74 {strides = array<i32>} : memref<2x16x16x32xbf16, #tpu.memory_space<vmem>>, vector<1x16x16x8xbf16>,
    %75 = vector.extract_strided_slice %4 {offsets = [1, 0, 0], sizes = [16, 16, 8], strides = [1, 1, 1]} : vector<18x16x8xbf16> to vector<16x16x8xbf16>
    %c1_73 = arith.constant 1 : index
    %c0_74 = arith.constant 0 : index
    %c0_75 = arith.constant 0 : index
    %c8_76 = arith.constant 8 : index
    %76 = vector.load %arg4[%c1_73, %c0_74, %c0_75, %c8_76] : memref<2x16x16x32xbf16, #tpu.memory_space<vmem>>, vector<1x16x16x8xbf16>
    %77 = vector.shape_cast %76 : vector<1x16x16x8xbf16> to vector<16x16x8xbf16>
    %78 = vector.shape_cast %75 : vector<16x16x8xbf16> to vector<1x16x16x8xbf16>
    tpu.vector_store %arg4[%c1_73, %c0_74, %c0_75, %c8_76], %78 {strides = array<i32>} : memref<2x16x16x32xbf16, #tpu.memory_space<vmem>>, vector<1x16x16x8xbf16>,
    %79 = vector.extract_strided_slice %3 {offsets = [2, 0, 0], sizes = [16, 16, 8], strides = [1, 1, 1]} : vector<18x16x8xbf16> to vector<16x16x8xbf16>
    %c1_77 = arith.constant 1 : index
    %c0_78 = arith.constant 0 : index
    %c0_79 = arith.constant 0 : index
    %c16_80 = arith.constant 16 : index
    %80 = vector.load %arg4[%c1_77, %c0_78, %c0_79, %c16_80] : memref<2x16x16x32xbf16, #tpu.memory_space<vmem>>, vector<1x16x16x8xbf16>
    %81 = vector.shape_cast %80 : vector<1x16x16x8xbf16> to vector<16x16x8xbf16>
    %82 = vector.shape_cast %79 : vector<16x16x8xbf16> to vector<1x16x16x8xbf16>
    tpu.vector_store %arg4[%c1_77, %c0_78, %c0_79, %c16_80], %82 {strides = array<i32>} : memref<2x16x16x32xbf16, #tpu.memory_space<vmem>>, vector<1x16x16x8xbf16>,
    %83 = vector.extract_strided_slice %4 {offsets = [2, 0, 0], sizes = [16, 16, 8], strides = [1, 1, 1]} : vector<18x16x8xbf16> to vector<16x16x8xbf16>
    %c1_81 = arith.constant 1 : index
    %c0_82 = arith.constant 0 : index
    %c0_83 = arith.constant 0 : index
    %c24_84 = arith.constant 24 : index
    %84 = vector.load %arg4[%c1_81, %c0_82, %c0_83, %c24_84] : memref<2x16x16x32xbf16, #tpu.memory_space<vmem>>, vector<1x16x16x8xbf16>
    %85 = vector.shape_cast %84 : vector<1x16x16x8xbf16> to vector<16x16x8xbf16>
    %86 = vector.shape_cast %83 : vector<16x16x8xbf16> to vector<1x16x16x8xbf16>
    tpu.vector_store %arg4[%c1_81, %c0_82, %c0_83, %c24_84], %86 {strides = array<i32>} : memref<2x16x16x32xbf16, #tpu.memory_space<vmem>>, vector<1x16x16x8xbf16>,
    %c1_85 = arith.constant 1 : index
    %c0_86 = arith.constant 0 : index
    %c0_87 = arith.constant 0 : index
    %c0_88 = arith.constant 0 : index
    %87 = vector.load %arg4[%c1_85, %c0_86, %c0_87, %c0_88] : memref<2x16x16x32xbf16, #tpu.memory_space<vmem>>, vector<1x16x16x32xbf16>
    %88 = vector.shape_cast %87 : vector<1x16x16x32xbf16> to vector<16x16x32xbf16>
    %89 = vector.shape_cast %88 : vector<16x16x32xbf16> to vector<256x32xbf16>
    %c3 = arith.constant 3 : index
    %c0_89 = arith.constant 0 : index
    %c0_90 = arith.constant 0 : index
    %90 = vector.load %arg2[%c3, %c0_89, %c0_90] : memref<4x32x8xbf16, #tpu.memory_space<vmem>>, vector<1x32x8xbf16>
    %91 = vector.shape_cast %90 : vector<1x32x8xbf16> to vector<32x8xbf16>
    %cst_91 = arith.constant dense<0.000000e+00> : vector<256x8xf32>
    %92 = tpu.matmul %89, %91, %cst_91 {dimension_numbers = #tpu.dot_dimension_numbers<[1], [0], [0], [1], [0, 0, 1, 1], [], []>} : vector<256x32xbf16>, vector<32x8xbf16>, vector<256x8xf32> -> vector<256x8xf32>
    %cst_92 = arith.constant 0.000000e+00 : f32
    %93 = vector.broadcast %cst_92 : f32 to vector<1x8xf32>
    %cst_93 = arith.constant dense<0.000000e+00> : vector<8xf32>
    %94 = vector.multi_reduction <add>, %26, %cst_93 [0] : vector<256x8xf32> to vector<8xf32>
    %95 = vector.shape_cast %94 : vector<8xf32> to vector<1x8xf32>
    %96 = arith.addf %93, %95 : vector<1x8xf32>
    %cst_94 = arith.constant dense<0.000000e+00> : vector<8xf32>
    %97 = vector.multi_reduction <add>, %48, %cst_94 [0] : vector<256x8xf32> to vector<8xf32>
    %98 = vector.shape_cast %97 : vector<8xf32> to vector<1x8xf32>
    %99 = arith.addf %96, %98 : vector<1x8xf32>
    %cst_95 = arith.constant dense<0.000000e+00> : vector<8xf32>
    %100 = vector.multi_reduction <add>, %70, %cst_95 [0] : vector<256x8xf32> to vector<8xf32>
    %101 = vector.shape_cast %100 : vector<8xf32> to vector<1x8xf32>
    %102 = arith.addf %99, %101 : vector<1x8xf32>
    %cst_96 = arith.constant dense<0.000000e+00> : vector<8xf32>
    %103 = vector.multi_reduction <add>, %92, %cst_96 [0] : vector<256x8xf32> to vector<8xf32>
    %104 = vector.shape_cast %103 : vector<8xf32> to vector<1x8xf32>
    %105 = arith.addf %102, %104 : vector<1x8xf32>
    %cst_97 = arith.constant 1.024000e+03 : f32
    %106 = vector.broadcast %cst_97 : f32 to vector<1x8xf32>
    %107 = arith.divf %105, %106 : vector<1x8xf32>
    %cst_98 = arith.constant 0.000000e+00 : f32
    %108 = vector.broadcast %cst_98 : f32 to vector<1x8xf32>
    %109 = vector.broadcast %107 : vector<1x8xf32> to vector<256x8xf32>
    %110 = arith.subf %26, %109 : vector<256x8xf32>
    %111 = arith.mulf %110, %110 : vector<256x8xf32>
    %cst_99 = arith.constant dense<0.000000e+00> : vector<8xf32>
    %112 = vector.multi_reduction <add>, %111, %cst_99 [0] : vector<256x8xf32> to vector<8xf32>
    %113 = vector.shape_cast %112 : vector<8xf32> to vector<1x8xf32>
    %114 = arith.addf %108, %113 : vector<1x8xf32>
    %115 = vector.broadcast %107 : vector<1x8xf32> to vector<256x8xf32>
    %116 = arith.subf %48, %115 : vector<256x8xf32>
    %117 = arith.mulf %116, %116 : vector<256x8xf32>
    %cst_100 = arith.constant dense<0.000000e+00> : vector<8xf32>
    %118 = vector.multi_reduction <add>, %117, %cst_100 [0] : vector<256x8xf32> to vector<8xf32>
    %119 = vector.shape_cast %118 : vector<8xf32> to vector<1x8xf32>
    %120 = arith.addf %114, %119 : vector<1x8xf32>
    %121 = vector.broadcast %107 : vector<1x8xf32> to vector<256x8xf32>
    %122 = arith.subf %70, %121 : vector<256x8xf32>
    %123 = arith.mulf %122, %122 : vector<256x8xf32>
    %cst_101 = arith.constant dense<0.000000e+00> : vector<8xf32>
    %124 = vector.multi_reduction <add>, %123, %cst_101 [0] : vector<256x8xf32> to vector<8xf32>
    %125 = vector.shape_cast %124 : vector<8xf32> to vector<1x8xf32>
    %126 = arith.addf %120, %125 : vector<1x8xf32>
    %127 = vector.broadcast %107 : vector<1x8xf32> to vector<256x8xf32>
    %128 = arith.subf %92, %127 : vector<256x8xf32>
    %129 = arith.mulf %128, %128 : vector<256x8xf32>
    %cst_102 = arith.constant dense<0.000000e+00> : vector<8xf32>
    %130 = vector.multi_reduction <add>, %129, %cst_102 [0] : vector<256x8xf32> to vector<8xf32>
    %131 = vector.shape_cast %130 : vector<8xf32> to vector<1x8xf32>
    %132 = arith.addf %126, %131 : vector<1x8xf32>
    %cst_103 = arith.constant 1.024000e+03 : f32
    %133 = vector.broadcast %cst_103 : f32 to vector<1x8xf32>
    %134 = arith.divf %132, %133 : vector<1x8xf32>
    %cst_104 = arith.constant 9.99999974E-6 : f32
    %135 = vector.broadcast %cst_104 : f32 to vector<1x8xf32>
    %136 = arith.addf %134, %135 : vector<1x8xf32>
    %137 = math.rsqrt %136 : vector<1x8xf32>
    %138 = vector.broadcast %107 : vector<1x8xf32> to vector<256x8xf32>
    %139 = arith.subf %26, %138 : vector<256x8xf32>
    %140 = vector.broadcast %137 : vector<1x8xf32> to vector<256x8xf32>
    %141 = arith.mulf %139, %140 : vector<256x8xf32>
    %cst_105 = arith.constant 0.000000e+00 : f32
    %142 = vector.broadcast %cst_105 : f32 to vector<256x8xf32>
    %143 = arith.maximumf %141, %142 : vector<256x8xf32>
    %c0_106 = arith.constant 0 : index
    %c0_107 = arith.constant 0 : index
    %c0_108 = arith.constant 0 : index
    %c0_109 = arith.constant 0 : index
    %144 = vector.load %arg3[%c0_106, %c0_107, %c0_108, %c0_109] : memref<1x4x256x8xf32, #tpu.memory_space<vmem>>, vector<1x1x256x8xf32>
    %145 = vector.shape_cast %144 : vector<1x1x256x8xf32> to vector<256x8xf32>
    %146 = vector.shape_cast %143 : vector<256x8xf32> to vector<1x1x256x8xf32>
    tpu.vector_store %arg3[%c0_106, %c0_107, %c0_108, %c0_109], %146 {strides = array<i32>} : memref<1x4x256x8xf32, #tpu.memory_space<vmem>>, vector<1x1x256x8xf32>,
    %147 = vector.broadcast %107 : vector<1x8xf32> to vector<256x8xf32>
    %148 = arith.subf %48, %147 : vector<256x8xf32>
    %149 = vector.broadcast %137 : vector<1x8xf32> to vector<256x8xf32>
    %150 = arith.mulf %148, %149 : vector<256x8xf32>
    %cst_110 = arith.constant 0.000000e+00 : f32
    %151 = vector.broadcast %cst_110 : f32 to vector<256x8xf32>
    %152 = arith.maximumf %150, %151 : vector<256x8xf32>
    %c0_111 = arith.constant 0 : index
    %c1_112 = arith.constant 1 : index
    %c0_113 = arith.constant 0 : index
    %c0_114 = arith.constant 0 : index
    %153 = vector.load %arg3[%c0_111, %c1_112, %c0_113, %c0_114] : memref<1x4x256x8xf32, #tpu.memory_space<vmem>>, vector<1x1x256x8xf32>
    %154 = vector.shape_cast %153 : vector<1x1x256x8xf32> to vector<256x8xf32>
    %155 = vector.shape_cast %152 : vector<256x8xf32> to vector<1x1x256x8xf32>
    tpu.vector_store %arg3[%c0_111, %c1_112, %c0_113, %c0_114], %155 {strides = array<i32>} : memref<1x4x256x8xf32, #tpu.memory_space<vmem>>, vector<1x1x256x8xf32>,
    %156 = vector.broadcast %107 : vector<1x8xf32> to vector<256x8xf32>
    %157 = arith.subf %70, %156 : vector<256x8xf32>
    %158 = vector.broadcast %137 : vector<1x8xf32> to vector<256x8xf32>
    %159 = arith.mulf %157, %158 : vector<256x8xf32>
    %cst_115 = arith.constant 0.000000e+00 : f32
    %160 = vector.broadcast %cst_115 : f32 to vector<256x8xf32>
    %161 = arith.maximumf %159, %160 : vector<256x8xf32>
    %c0_116 = arith.constant 0 : index
    %c2_117 = arith.constant 2 : index
    %c0_118 = arith.constant 0 : index
    %c0_119 = arith.constant 0 : index
    %162 = vector.load %arg3[%c0_116, %c2_117, %c0_118, %c0_119] : memref<1x4x256x8xf32, #tpu.memory_space<vmem>>, vector<1x1x256x8xf32>
    %163 = vector.shape_cast %162 : vector<1x1x256x8xf32> to vector<256x8xf32>
    %164 = vector.shape_cast %161 : vector<256x8xf32> to vector<1x1x256x8xf32>
    tpu.vector_store %arg3[%c0_116, %c2_117, %c0_118, %c0_119], %164 {strides = array<i32>} : memref<1x4x256x8xf32, #tpu.memory_space<vmem>>, vector<1x1x256x8xf32>,
    %165 = vector.broadcast %107 : vector<1x8xf32> to vector<256x8xf32>
    %166 = arith.subf %92, %165 : vector<256x8xf32>
    %167 = vector.broadcast %137 : vector<1x8xf32> to vector<256x8xf32>
    %168 = arith.mulf %166, %167 : vector<256x8xf32>
    %cst_120 = arith.constant 0.000000e+00 : f32
    %169 = vector.broadcast %cst_120 : f32 to vector<256x8xf32>
    %170 = arith.maximumf %168, %169 : vector<256x8xf32>
    %c0_121 = arith.constant 0 : index
    %c3_122 = arith.constant 3 : index
    %c0_123 = arith.constant 0 : index
    %c0_124 = arith.constant 0 : index
    %171 = vector.load %arg3[%c0_121, %c3_122, %c0_123, %c0_124] : memref<1x4x256x8xf32, #tpu.memory_space<vmem>>, vector<1x1x256x8xf32>
    %172 = vector.shape_cast %171 : vector<1x1x256x8xf32> to vector<256x8xf32>
    %173 = vector.shape_cast %170 : vector<256x8xf32> to vector<1x1x256x8xf32>
    tpu.vector_store %arg3[%c0_121, %c3_122, %c0_123, %c0_124], %173 {strides = array<i32>} : memref<1x4x256x8xf32, #tpu.memory_space<vmem>>, vector<1x1x256x8xf32>,
    return
  }
  func.func @transform_0(%arg0: i32) -> (i32, i32, i32, i32) {
    %c0_i32 = arith.constant 0 : i32
    %c0_i32_0 = arith.constant 0 : i32
    %c0_i32_1 = arith.constant 0 : i32
    %c0_i32_2 = arith.constant 0 : i32
    return %arg0, %c0_i32, %c0_i32_0, %c0_i32_1 : i32, i32, i32, i32
  }
  func.func @transform_1(%arg0: i32) -> (i32, i32, i32) {
    %c0_i32 = arith.constant 0 : i32
    %c0_i32_0 = arith.constant 0 : i32
    %c0_i32_1 = arith.constant 0 : i32
    %c0_i32_2 = arith.constant 0 : i32
    return %c0_i32, %c0_i32_0, %c0_i32_1 : i32, i32, i32
  }
  func.func @transform_2(%arg0: i32) -> (i32, i32, i32, i32) {
    %c0_i32 = arith.constant 0 : i32
    %c0_i32_0 = arith.constant 0 : i32
    %c0_i32_1 = arith.constant 0 : i32
    %c0_i32_2 = arith.constant 0 : i32
    return %arg0, %c0_i32, %c0_i32_0, %c0_i32_1 : i32, i32, i32, i32
  }
}

</mosaic_0001>

<llo_original>
// kernel: unet_up.1
$region0: #{unet_up.1}
  #allocation0 [shape = 'u32[]', space=smem, size = 0x4, offset = 0x4, fixed_abs, tag = 'smem constant byte address 0x4 - core index']
  #allocation1 [shape = 'u32[144,128]{1,0:T(1,128)}', space=vmem, size = 0x12000, scoped, tag = 'internal scratch']
  #allocation2 [shape = 'bf16[2,16,16,32]{3,2,1,0:T(16,128)(2,1)}', space=vmem, size = 0x20000, scoped, tag = 'scratch operand']
  %s0 = inlined_call_operand.vmem [shape: bf16[2,18,18,8], index: 0, kind: input, shape index: {}]
  %s1 = inlined_call_operand.vmem [shape: bf16[4,32,8], index: 1, kind: input, shape index: {}]
  %s2 = inlined_call_operand.vmem [shape: f32[2,4,256,8], index: 2, kind: output, shape index: {}]
  %s3 = sld [smem:[#allocation0]]
  $region41: #{unet_up.1} parent=0
    _
  %s5 = ssub.s32 1, %s3
  %s6 = scalar_select 0, %s5, %s3
  loop: start=0, step=1, limit=4
  $region2: #{unet_up.1} parent=0 // loop_pre_header
    _
  $region3: #{unet_up.1} parent=0 // loop_header
    %s8 = sphi 0, %s12
    %p9 = scmp.ge.s32.totalorder %s8, 4
    %s18 = sphi 0, %s20
    %s21 = sphi 0, %s18
    %s22 = sphi 0, %s21
    %s38 = sphi 0, %s22
    %s42 = sphi 0, %s42
    %s44 = sphi 0, %s42
    %s45 = sphi 0, %s44
    %s59 = sphi 0, %s45
    %s65 = sphi 0, %s67
    %s68 = sphi 0, %s65
    %s69 = sphi 0, %s68
    %s85 = sphi 0, %s69
  $region4: #{unet_up.1} parent=0 // loop_header_branch
    %11 = sbr.rel (%p9) target = $region8
  $region5: #{unet_up.1} parent=0 // loop_body
    %s13 = ssub.s32 %s8, 1
    %s14 = ssub.s32 %s8, 2
    %s15 = sadd.s32 %s8, 1
    %s16 = ssub.s32 %s8, %s15
    %p17 = scmp.eq.s32.totalorder %s16, 0
    %s19 = sadd.s32 %s18, 1
    %s20 = scalar_select %p17, %s18, %s19
    %p23 = pneg %p17
    %p24 = scmp.eq.s32.totalorder %s8, 1
    %p25 = por %p23, %p24
    %p26 = scmp.ne.s32.totalorder %s18, %s21
    %p27 = scmp.eq.s32.totalorder %s8, 0
    %p28 = por %p26, %p27
    %p29 = scmp.ne.s32.totalorder %s18, %s21
    %p30 = scmp.eq.s32.totalorder %s13, 1
    %p31 = por %p29, %p30
    %p32 = scmp.ne.s32.totalorder %s21, %s22
    %p33 = scmp.eq.s32.totalorder %s13, 0
    %p34 = por %p32, %p33
    %p35 = scmp.ne.s32.totalorder %s21, %s22
    %p36 = scmp.eq.s32.totalorder %s14, 1
    %p37 = por %p35, %p36
    %p39 = scmp.ne.s32.totalorder %s22, %s38
    %p40 = scmp.eq.s32.totalorder %s14, 0
    %p41 = por %p39, %p40
    %s43 = sadd.s32 %s42, 1
    %p46 = scmp.eq.s32.totalorder %s8, 1
    %p47 = scmp.ne.s32.totalorder %s42, %s44
    %p48 = scmp.eq.s32.totalorder %s8, 0
    %p49 = por %p47, %p48
    %p50 = scmp.ne.s32.totalorder %s42, %s44
    %p51 = scmp.eq.s32.totalorder %s13, 1
    %p52 = por %p50, %p51
    %p53 = scmp.ne.s32.totalorder %s44, %s45
    %p54 = scmp.eq.s32.totalorder %s13, 0
    %p55 = por %p53, %p54
    %p56 = scmp.ne.s32.totalorder %s44, %s45
    %p57 = scmp.eq.s32.totalorder %s14, 1
    %p58 = por %p56, %p57
    %p60 = scmp.ne.s32.totalorder %s45, %s59
    %p61 = scmp.eq.s32.totalorder %s14, 0
    %p62 = por %p60, %p61
    %s63 = ssub.s32 %s8, %s15
    %p64 = scmp.eq.s32.totalorder %s63, 0
    %s66 = sadd.s32 %s65, 1
    %s67 = scalar_select %p64, %s65, %s66
    %p70 = pneg %p64
    %p71 = scmp.eq.s32.totalorder %s8, 1
    %p72 = por %p70, %p71
    %p73 = scmp.ne.s32.totalorder %s65, %s68
    %p74 = scmp.eq.s32.totalorder %s8, 0
    %p75 = por %p73, %p74
    %p76 = scmp.ne.s32.totalorder %s65, %s68
    %p77 = scmp.eq.s32.totalorder %s13, 1
    %p78 = por %p76, %p77
    %p79 = scmp.ne.s32.totalorder %s68, %s69
    %p80 = scmp.eq.s32.totalorder %s13, 0
    %p81 = por %p79, %p80
    %p82 = scmp.ne.s32.totalorder %s68, %s69
    %p83 = scmp.eq.s32.totalorder %s14, 1
    %p84 = por %p82, %p83
    %p86 = scmp.ne.s32.totalorder %s69, %s85
    %p87 = scmp.eq.s32.totalorder %s14, 0
    %p88 = por %p86, %p87
    %p89 = scmp.le.s32.totalorder 1, %s8
    %p90 = scmp.lt.s32.totalorder %s8, 3
    %p91 = pnand %p89, %p90
    %p92 = pneg %p91
    // Predicated region
    $region9: #{unet_up.1} parent=5 // pred_check
      _
    $region10: #{unet_up.1} parent=5 // pred_check_branch
      %94 = sbr.rel (%p91) target = $region12
    $region11: #{unet_up.1} parent=5 // pred_region
      %s95 = ssub.s32 %s8, 1
      // Predicated region
      $region13: #{unet_up.1} parent=11 // pred_check
        %p96 = pneg %p55
      $region14: #{unet_up.1} parent=11 // pred_check_branch
        %98 = sbr.rel (%p96) target = $region16
      $region15: #{unet_up.1} parent=11 // pred_region
        _
      $region16: #{unet_up.1} parent=11 // pred_fallthru
        _
    $region12: #{unet_up.1} parent=5 // pred_fallthru
      _
    %p99 = scmp.lt.s32.totalorder %s8, 2
    // Predicated region
    $region17: #{unet_up.1} parent=5 // pred_check
      %p100 = pneg %p99
    $region18: #{unet_up.1} parent=5 // pred_check_branch
      %102 = sbr.rel (%p100) target = $region20
    $region19: #{unet_up.1} parent=5 // pred_region
      // Predicated region
      $region21: #{unet_up.1} parent=19 // pred_check
        %p103 = pneg %p28
      $region22: #{unet_up.1} parent=19 // pred_check_branch
        %105 = sbr.rel (%p103) target = $region24
      $region23: #{unet_up.1} parent=19 // pred_region
        %p106 = scmp.lt.s32.totalorder %s8, 1
        %s107 = scalar_select %p106, %s8, 1
        %s108 = smul.addr %s107, 54
        %s109 = smul.addr %s108, 4
        %s110 = scalar_lea.vmem %s0, %s109
      $region24: #{unet_up.1} parent=19 // pred_fallthru
        _
    $region20: #{unet_up.1} parent=5 // pred_fallthru
      _
    %p111 = scmp.le.s32.totalorder 1, %s8
    %p112 = scmp.lt.s32.totalorder %s8, 3
    %p113 = pnand %p111, %p112
    %p114 = pneg %p113
    // Predicated region
    $region25: #{unet_up.1} parent=5 // pred_check
      _
    $region26: #{unet_up.1} parent=5 // pred_check_branch
      %116 = sbr.rel (%p113) target = $region28
    $region27: #{unet_up.1} parent=5 // pred_region
      %s117 = ssub.s32 %s8, 1
      %p118 = scmp.lt.s32.totalorder %s13, 1
      %s119 = scalar_select %p118, %s13, 1
      %s120 = smul.addr %s119, 54
      %s121 = smul.addr %s120, 4
      %s122 = scalar_lea.vmem %s0, %s121
      %p123 = pneg %p34
      %p124 = pneg %p31
      %p125 = pneg %p55
      %p126 = pneg %p52
      %p127 = pneg %p81
      %p128 = pneg %p78
      %p129 = scmp.lt.s32.totalorder %s13, 1
      %s130 = scalar_select %p129, %s13, 1
      %s131 = smul.addr %s130, 128
      %s132 = smul.addr %s131, 8
      %s133 = scalar_lea.vmem %s2, %s132
      %p134 = scmp.lt.s32.totalorder %s13, 1
      %s135 = scalar_select %p134, %s13, 1
      %s136 = smul.addr %s135, 54
      %s137 = smul.addr %s136, 4
      %s138 = scalar_lea.vmem %s0, %s137
      %p139 = scmp.lt.s32.totalorder %s13, 1
      %s140 = scalar_select %p139, %s13, 1
      %s141 = smul.addr %s140, 128
      %s142 = smul.addr %s141, 8
      %s143 = scalar_lea.vmem %s2, %s142
      %v145 = vld [vmem:[%s138] sm:$0xf]
      %v146 = vld [vmem:[%s138 + $0x4] sm:$0xf]
      %v147 = vld [vmem:[%s138 + $0x8] sm:$0x1]
      %v148 = vld [vmem:[%s138 + $0xc] sm:$0xf]
      %v149 = vld [vmem:[%s138 + $0x10] sm:$0xf]
      %v150 = vld [vmem:[%s138 + $0x14] sm:$0x1]
      %v151 = vld [vmem:[%s138 + $0x18] sm:$0xf]
      %v152 = vld [vmem:[%s138 + $0x1c] sm:$0xf]
      %v153 = vld [vmem:[%s138 + $0x20] sm:$0x1]
      %v154 = vld [vmem:[%s138 + $0x24] sm:$0xf]
      %v155 = vld [vmem:[%s138 + $0x28] sm:$0xf]
      %v156 = vld [vmem:[%s138 + $0x2c] sm:$0x1]
      %v157 = vld [vmem:[%s138 + $0x30] sm:$0xf]
      %v158 = vld [vmem:[%s138 + $0x34] sm:$0xf]
      %v159 = vld [vmem:[%s138 + $0x38] sm:$0x1]
      %v160 = vld [vmem:[%s138 + $0x3c] sm:$0xf]
      %v161 = vld [vmem:[%s138 + $0x40] sm:$0xf]
      %v162 = vld [vmem:[%s138 + $0x44] sm:$0x1]
      %v163 = vld [vmem:[%s138 + $0x48] sm:$0xf]
      %v164 = vld [vmem:[%s138 + $0x4c] sm:$0xf]
      %v165 = vld [vmem:[%s138 + $0x50] sm:$0x1]
      %v166 = vld [vmem:[%s138 + $0x54] sm:$0xf]
      %v167 = vld [vmem:[%s138 + $0x58] sm:$0xf]
      %v168 = vld [vmem:[%s138 + $0x5c] sm:$0x1]
      %v169 = vld [vmem:[%s138 + $0x60] sm:$0xf]
      %v170 = vld [vmem:[%s138 + $0x64] sm:$0xf]
      %v171 = vld [vmem:[%s138 + $0x68] sm:$0x1]
      %v172 = vld [vmem:[%s138 + $0x6c] sm:$0xf]
      %v173 = vld [vmem:[%s138 + $0x70] sm:$0xf]
      %v174 = vld [vmem:[%s138 + $0x74] sm:$0x1]
      %v175 = vld [vmem:[%s138 + $0x78] sm:$0xf]
      %v176 = vld [vmem:[%s138 + $0x7c] sm:$0xf]
      %v177 = vld [vmem:[%s138 + $0x80] sm:$0x1]
      %v178 = vld [vmem:[%s138 + $0x84] sm:$0xf]
      %v179 = vld [vmem:[%s138 + $0x88] sm:$0xf]
      %v180 = vld [vmem:[%s138 + $0x8c] sm:$0x1]
      %v181 = vld [vmem:[%s138 + $0x90] sm:$0xf]
      %v182 = vld [vmem:[%s138 + $0x94] sm:$0xf]
      %v183 = vld [vmem:[%s138 + $0x98] sm:$0x1]
      %v184 = vld [vmem:[%s138 + $0x9c] sm:$0xf]
      %v185 = vld [vmem:[%s138 + $0xa0] sm:$0xf]
      %v186 = vld [vmem:[%s138 + $0xa4] sm:$0x1]
      %v187 = vld [vmem:[%s138 + $0xa8] sm:$0xf]
      %v188 = vld [vmem:[%s138 + $0xac] sm:$0xf]
      %v189 = vld [vmem:[%s138 + $0xb0] sm:$0x1]
      %v190 = vld [vmem:[%s138 + $0xb4] sm:$0xf]
      %v191 = vld [vmem:[%s138 + $0xb8] sm:$0xf]
      %v192 = vld [vmem:[%s138 + $0xbc] sm:$0x1]
      %v193 = vld [vmem:[%s138 + $0xc0] sm:$0xf]
      %v194 = vld [vmem:[%s138 + $0xc4] sm:$0xf]
      %v195 = vld [vmem:[%s138 + $0xc8] sm:$0x1]
      %v196 = vld [vmem:[%s138 + $0xcc] sm:$0xf]
      %v197 = vld [vmem:[%s138 + $0xd0] sm:$0xf]
      %v198 = vld [vmem:[%s138 + $0xd4] sm:$0x1]
      %v231 = vunpack.c.l.b16 %v145
      %v232 = vunpack.c.l.b16 %v146
      %v233 = vunpack.c.l.b16 %v148
      %v234 = vunpack.c.l.b16 %v149
      %v235 = vunpack.c.l.b16 %v151
      %v236 = vunpack.c.l.b16 %v152
      %v237 = vunpack.c.l.b16 %v154
      %v238 = vunpack.c.l.b16 %v155
      %v239 = vunpack.c.l.b16 %v157
      %v240 = vunpack.c.l.b16 %v158
      %v241 = vunpack.c.l.b16 %v160
      %v242 = vunpack.c.l.b16 %v161
      %v243 = vunpack.c.l.b16 %v163
      %v244 = vunpack.c.l.b16 %v164
      %v245 = vunpack.c.l.b16 %v166
      %v246 = vunpack.c.l.b16 %v167
      %v247 = vunpack.c.l.b16 %v169
      %v248 = vunpack.c.l.b16 %v170
      %v249 = vunpack.c.l.b16 %v172
      %v250 = vunpack.c.l.b16 %v173
      %v251 = vunpack.c.l.b16 %v175
      %v252 = vunpack.c.l.b16 %v176
      %v253 = vunpack.c.l.b16 %v178
      %v254 = vunpack.c.l.b16 %v179
      %v255 = vunpack.c.l.b16 %v181
      %v256 = vunpack.c.l.b16 %v182
      %v257 = vunpack.c.l.b16 %v184
      %v258 = vunpack.c.l.b16 %v185
      %v259 = vunpack.c.l.b16 %v187
      %v260 = vunpack.c.l.b16 %v188
      %v261 = vunpack.c.l.b16 %v190
      %v262 = vunpack.c.l.b16 %v191
      %v263 = vpack.c.b16 %v232, %v231
      %v264 = vpack.c.b16 %v234, %v233
      %v265 = vpack.c.b16 %v236, %v235
      %v266 = vpack.c.b16 %v238, %v237
      %v267 = vpack.c.b16 %v240, %v239
      %v268 = vpack.c.b16 %v242, %v241
      %v269 = vpack.c.b16 %v244, %v243
      %v270 = vpack.c.b16 %v246, %v245
      %v271 = vpack.c.b16 %v248, %v247
      %v272 = vpack.c.b16 %v250, %v249
      %v273 = vpack.c.b16 %v252, %v251
      %v274 = vpack.c.b16 %v254, %v253
      %v275 = vpack.c.b16 %v256, %v255
      %v276 = vpack.c.b16 %v258, %v257
      %v277 = vpack.c.b16 %v260, %v259
      %v278 = vpack.c.b16 %v262, %v261
      %vm295 = vcmask 64512
      %296 = vst.msk [vmem:[#allocation2] sm:$0xff] %vm295, %v263
      %297 = vst.msk [vmem:[#allocation2 + $0x8] sm:$0xff] %vm295, %v264
      %298 = vst.msk [vmem:[#allocation2 + $0x10] sm:$0xff] %vm295, %v265
      %299 = vst.msk [vmem:[#allocation2 + $0x18] sm:$0xff] %vm295, %v266
      %300 = vst.msk [vmem:[#allocation2 + $0x20] sm:$0xff] %vm295, %v267
      %301 = vst.msk [vmem:[#allocation2 + $0x28] sm:$0xff] %vm295, %v268
      %302 = vst.msk [vmem:[#allocation2 + $0x30] sm:$0xff] %vm295, %v269
      %303 = vst.msk [vmem:[#allocation2 + $0x38] sm:$0xff] %vm295, %v270
      %304 = vst.msk [vmem:[#allocation2 + $0x40] sm:$0xff] %vm295, %v271
      %305 = vst.msk [vmem:[#allocation2 + $0x48] sm:$0xff] %vm295, %v272
      %306 = vst.msk [vmem:[#allocation2 + $0x50] sm:$0xff] %vm295, %v273
      %307 = vst.msk [vmem:[#allocation2 + $0x58] sm:$0xff] %vm295, %v274
      %308 = vst.msk [vmem:[#allocation2 + $0x60] sm:$0xff] %vm295, %v275
      %309 = vst.msk [vmem:[#allocation2 + $0x68] sm:$0xff] %vm295, %v276
      %310 = vst.msk [vmem:[#allocation2 + $0x70] sm:$0xff] %vm295, %v277
      %311 = vst.msk [vmem:[#allocation2 + $0x78] sm:$0xff] %vm295, %v278
      %v328 = vunpack.c.l.b16 %v147
      %v329 = vunpack.c.l.b16 %v150
      %v330 = vunpack.c.l.b16 %v153
      %v331 = vunpack.c.l.b16 %v156
      %v332 = vunpack.c.l.b16 %v159
      %v333 = vunpack.c.l.b16 %v162
      %v334 = vunpack.c.l.b16 %v165
      %v335 = vunpack.c.l.b16 %v168
      %v336 = vunpack.c.l.b16 %v171
      %v337 = vunpack.c.l.b16 %v174
      %v338 = vunpack.c.l.b16 %v177
      %v339 = vunpack.c.l.b16 %v180
      %v340 = vunpack.c.l.b16 %v183
      %v341 = vunpack.c.l.b16 %v186
      %v342 = vunpack.c.l.b16 %v189
      %v343 = vunpack.c.l.b16 %v192
      %v344 = vpack.c.b16 %v328, %v328
      %v345 = vpack.c.b16 %v329, %v329
      %v346 = vpack.c.b16 %v330, %v330
      %v347 = vpack.c.b16 %v331, %v331
      %v348 = vpack.c.b16 %v332, %v332
      %v349 = vpack.c.b16 %v333, %v333
      %v350 = vpack.c.b16 %v334, %v334
      %v351 = vpack.c.b16 %v335, %v335
      %v352 = vpack.c.b16 %v336, %v336
      %v353 = vpack.c.b16 %v337, %v337
      %v354 = vpack.c.b16 %v338, %v338
      %v355 = vpack.c.b16 %v339, %v339
      %v356 = vpack.c.b16 %v340, %v340
      %v357 = vpack.c.b16 %v341, %v341
      %v358 = vpack.c.b16 %v342, %v342
      %v359 = vpack.c.b16 %v343, %v343
      %vm360 = vsmask.f32 7424
      %v362 = vshrl.u32 %v263, 16
      %v364 = vshll.u32 %v263, 16
      %v366 = vrot.slane %v364, 1
      %v367 = vor.u32 %v362, %v366
      %v369 = vshll.u32 %v344, 16
      %v371 = vrot.slane %v369, 1
      %v372 = vsel %vm360, %v367, %v371
      %v374 = vshrl.u32 %v264, 16
      %v376 = vshll.u32 %v264, 16
      %v378 = vrot.slane %v376, 1
      %v379 = vor.u32 %v374, %v378
      %v381 = vshll.u32 %v345, 16
      %v383 = vrot.slane %v381, 1
      %v384 = vsel %vm360, %v379, %v383
      %v386 = vshrl.u32 %v265, 16
      %v388 = vshll.u32 %v265, 16
      %v390 = vrot.slane %v388, 1
      %v391 = vor.u32 %v386, %v390
      %v393 = vshll.u32 %v346, 16
      %v395 = vrot.slane %v393, 1
      %v396 = vsel %vm360, %v391, %v395
      %v398 = vshrl.u32 %v266, 16
      %v400 = vshll.u32 %v266, 16
      %v402 = vrot.slane %v400, 1
      %v403 = vor.u32 %v398, %v402
      %v405 = vshll.u32 %v347, 16
      %v407 = vrot.slane %v405, 1
      %v408 = vsel %vm360, %v403, %v407
      %v410 = vshrl.u32 %v267, 16
      %v412 = vshll.u32 %v267, 16
      %v414 = vrot.slane %v412, 1
      %v415 = vor.u32 %v410, %v414
      %v417 = vshll.u32 %v348, 16
      %v419 = vrot.slane %v417, 1
      %v420 = vsel %vm360, %v415, %v419
      %v422 = vshrl.u32 %v268, 16
      %v424 = vshll.u32 %v268, 16
      %v426 = vrot.slane %v424, 1
      %v427 = vor.u32 %v422, %v426
      %v429 = vshll.u32 %v349, 16
      %v431 = vrot.slane %v429, 1
      %v432 = vsel %vm360, %v427, %v431
      %v434 = vshrl.u32 %v269, 16
      %v436 = vshll.u32 %v269, 16
      %v438 = vrot.slane %v436, 1
      %v439 = vor.u32 %v434, %v438
      %v441 = vshll.u32 %v350, 16
      %v443 = vrot.slane %v441, 1
      %v444 = vsel %vm360, %v439, %v443
      %v446 = vshrl.u32 %v270, 16
      %v448 = vshll.u32 %v270, 16
      %v450 = vrot.slane %v448, 1
      %v451 = vor.u32 %v446, %v450
      %v453 = vshll.u32 %v351, 16
      %v455 = vrot.slane %v453, 1
      %v456 = vsel %vm360, %v451, %v455
      %v458 = vshrl.u32 %v271, 16
      %v460 = vshll.u32 %v271, 16
      %v462 = vrot.slane %v460, 1
      %v463 = vor.u32 %v458, %v462
      %v465 = vshll.u32 %v352, 16
      %v467 = vrot.slane %v465, 1
      %v468 = vsel %vm360, %v463, %v467
      %v470 = vshrl.u32 %v272, 16
      %v472 = vshll.u32 %v272, 16
      %v474 = vrot.slane %v472, 1
      %v475 = vor.u32 %v470, %v474
      %v477 = vshll.u32 %v353, 16
      %v479 = vrot.slane %v477, 1
      %v480 = vsel %vm360, %v475, %v479
      %v482 = vshrl.u32 %v273, 16
      %v484 = vshll.u32 %v273, 16
      %v486 = vrot.slane %v484, 1
      %v487 = vor.u32 %v482, %v486
      %v489 = vshll.u32 %v354, 16
      %v491 = vrot.slane %v489, 1
      %v492 = vsel %vm360, %v487, %v491
      %v494 = vshrl.u32 %v274, 16
      %v496 = vshll.u32 %v274, 16
      %v498 = vrot.slane %v496, 1
      %v499 = vor.u32 %v494, %v498
      %v501 = vshll.u32 %v355, 16
      %v503 = vrot.slane %v501, 1
      %v504 = vsel %vm360, %v499, %v503
      %v506 = vshrl.u32 %v275, 16
      %v508 = vshll.u32 %v275, 16
      %v510 = vrot.slane %v508, 1
      %v511 = vor.u32 %v506, %v510
      %v513 = vshll.u32 %v356, 16
      %v515 = vrot.slane %v513, 1
      %v516 = vsel %vm360, %v511, %v515
      %v518 = vshrl.u32 %v276, 16
      %v520 = vshll.u32 %v276, 16
      %v522 = vrot.slane %v520, 1
      %v523 = vor.u32 %v518, %v522
      %v525 = vshll.u32 %v357, 16
      %v527 = vrot.slane %v525, 1
      %v528 = vsel %vm360, %v523, %v527
      %v530 = vshrl.u32 %v277, 16
      %v532 = vshll.u32 %v277, 16
      %v534 = vrot.slane %v532, 1
      %v535 = vor.u32 %v530, %v534
      %v537 = vshll.u32 %v358, 16
      %v539 = vrot.slane %v537, 1
      %v540 = vsel %vm360, %v535, %v539
      %v542 = vshrl.u32 %v278, 16
      %v544 = vshll.u32 %v278, 16
      %v546 = vrot.slane %v544, 1
      %v547 = vor.u32 %v542, %v546
      %v549 = vshll.u32 %v359, 16
      %v551 = vrot.slane %v549, 1
      %v552 = vsel %vm360, %v547, %v551
      %553 = vrot.lane.b32.xlu0 %v372, 8
      %v554 = vpop.permute.xlu0 %553
      %555 = vrot.lane.b32.xlu0 %v384, 8
      %v556 = vpop.permute.xlu0 %555
      %557 = vrot.lane.b32.xlu0 %v396, 8
      %v558 = vpop.permute.xlu0 %557
      %559 = vrot.lane.b32.xlu0 %v408, 8
      %v560 = vpop.permute.xlu0 %559
      %561 = vrot.lane.b32.xlu0 %v420, 8
      %v562 = vpop.permute.xlu0 %561
      %563 = vrot.lane.b32.xlu0 %v432, 8
      %v564 = vpop.permute.xlu0 %563
      %565 = vrot.lane.b32.xlu0 %v444, 8
      %v566 = vpop.permute.xlu0 %565
      %567 = vrot.lane.b32.xlu0 %v456, 8
      %v568 = vpop.permute.xlu0 %567
      %569 = vrot.lane.b32.xlu0 %v468, 8
      %v570 = vpop.permute.xlu0 %569
      %571 = vrot.lane.b32.xlu0 %v480, 8
      %v572 = vpop.permute.xlu0 %571
      %573 = vrot.lane.b32.xlu0 %v492, 8
      %v574 = vpop.permute.xlu0 %573
      %575 = vrot.lane.b32.xlu0 %v504, 8
      %v576 = vpop.permute.xlu0 %575
      %577 = vrot.lane.b32.xlu0 %v516, 8
      %v578 = vpop.permute.xlu0 %577
      %579 = vrot.lane.b32.xlu0 %v528, 8
      %v580 = vpop.permute.xlu0 %579
      %581 = vrot.lane.b32.xlu0 %v540, 8
      %v582 = vpop.permute.xlu0 %581
      %583 = vrot.lane.b32.xlu0 %v552, 8
      %v584 = vpop.permute.xlu0 %583
      %vm601 = vcmask 130112
      %602 = vst.msk [vmem:[#allocation2] sm:$0xff] %vm601, %v554
      %603 = vst.msk [vmem:[#allocation2 + $0x8] sm:$0xff] %vm601, %v556
      %604 = vst.msk [vmem:[#allocation2 + $0x10] sm:$0xff] %vm601, %v558
      %605 = vst.msk [vmem:[#allocation2 + $0x18] sm:$0xff] %vm601, %v560
      %606 = vst.msk [vmem:[#allocation2 + $0x20] sm:$0xff] %vm601, %v562
      %607 = vst.msk [vmem:[#allocation2 + $0x28] sm:$0xff] %vm601, %v564
      %608 = vst.msk [vmem:[#allocation2 + $0x30] sm:$0xff] %vm601, %v566
      %609 = vst.msk [vmem:[#allocation2 + $0x38] sm:$0xff] %vm601, %v568
      %610 = vst.msk [vmem:[#allocation2 + $0x40] sm:$0xff] %vm601, %v570
      %611 = vst.msk [vmem:[#allocation2 + $0x48] sm:$0xff] %vm601, %v572
      %612 = vst.msk [vmem:[#allocation2 + $0x50] sm:$0xff] %vm601, %v574
      %613 = vst.msk [vmem:[#allocation2 + $0x58] sm:$0xff] %vm601, %v576
      %614 = vst.msk [vmem:[#allocation2 + $0x60] sm:$0xff] %vm601, %v578
      %615 = vst.msk [vmem:[#allocation2 + $0x68] sm:$0xff] %vm601, %v580
      %616 = vst.msk [vmem:[#allocation2 + $0x70] sm:$0xff] %vm601, %v582
      %617 = vst.msk [vmem:[#allocation2 + $0x78] sm:$0xff] %vm601, %v584
      %v620 = vunpack.c.l.b16 %v193
      %v621 = vunpack.c.l.b16 %v194
      %v622 = vpack.c.b16 %v621, %v620
      %623 = vrot.lane.b32.xlu0 %v264, 16
      %v624 = vpop.permute.xlu0 %623
      %625 = vrot.lane.b32.xlu0 %v265, 16
      %v626 = vpop.permute.xlu0 %625
      %627 = vrot.lane.b32.xlu0 %v266, 16
      %v628 = vpop.permute.xlu0 %627
      %629 = vrot.lane.b32.xlu0 %v267, 16
      %v630 = vpop.permute.xlu0 %629
      %631 = vrot.lane.b32.xlu0 %v268, 16
      %v632 = vpop.permute.xlu0 %631
      %633 = vrot.lane.b32.xlu0 %v269, 16
      %v634 = vpop.permute.xlu0 %633
      %635 = vrot.lane.b32.xlu0 %v270, 16
      %v636 = vpop.permute.xlu0 %635
      %637 = vrot.lane.b32.xlu0 %v271, 16
      %v638 = vpop.permute.xlu0 %637
      %639 = vrot.lane.b32.xlu0 %v272, 16
      %v640 = vpop.permute.xlu0 %639
      %641 = vrot.lane.b32.xlu0 %v273, 16
      %v642 = vpop.permute.xlu0 %641
      %643 = vrot.lane.b32.xlu0 %v274, 16
      %v644 = vpop.permute.xlu0 %643
      %645 = vrot.lane.b32.xlu0 %v275, 16
      %v646 = vpop.permute.xlu0 %645
      %647 = vrot.lane.b32.xlu0 %v276, 16
      %v648 = vpop.permute.xlu0 %647
      %649 = vrot.lane.b32.xlu0 %v277, 16
      %v650 = vpop.permute.xlu0 %649
      %651 = vrot.lane.b32.xlu0 %v278, 16
      %v652 = vpop.permute.xlu0 %651
      %653 = vrot.lane.b32.xlu0 %v622, 16
      %v654 = vpop.permute.xlu0 %653
      %vm671 = vcmask 195712
      %672 = vst.msk [vmem:[#allocation2] sm:$0xff] %vm671, %v624
      %673 = vst.msk [vmem:[#allocation2 + $0x8] sm:$0xff] %vm671, %v626
      %674 = vst.msk [vmem:[#allocation2 + $0x10] sm:$0xff] %vm671, %v628
      %675 = vst.msk [vmem:[#allocation2 + $0x18] sm:$0xff] %vm671, %v630
      %676 = vst.msk [vmem:[#allocation2 + $0x20] sm:$0xff] %vm671, %v632
      %677 = vst.msk [vmem:[#allocation2 + $0x28] sm:$0xff] %vm671, %v634
      %678 = vst.msk [vmem:[#allocation2 + $0x30] sm:$0xff] %vm671, %v636
      %679 = vst.msk [vmem:[#allocation2 + $0x38] sm:$0xff] %vm671, %v638
      %680 = vst.msk [vmem:[#allocation2 + $0x40] sm:$0xff] %vm671, %v640
      %681 = vst.msk [vmem:[#allocation2 + $0x48] sm:$0xff] %vm671, %v642
      %682 = vst.msk [vmem:[#allocation2 + $0x50] sm:$0xff] %vm671, %v644
      %683 = vst.msk [vmem:[#allocation2 + $0x58] sm:$0xff] %vm671, %v646
      %684 = vst.msk [vmem:[#allocation2 + $0x60] sm:$0xff] %vm671, %v648
      %685 = vst.msk [vmem:[#allocation2 + $0x68] sm:$0xff] %vm671, %v650
      %686 = vst.msk [vmem:[#allocation2 + $0x70] sm:$0xff] %vm671, %v652
      %687 = vst.msk [vmem:[#allocation2 + $0x78] sm:$0xff] %vm671, %v654
      %v689 = vunpack.c.l.b16 %v195
      %v690 = vpack.c.b16 %v689, %v689
      %v692 = vshrl.u32 %v622, 16
      %v694 = vshll.u32 %v622, 16
      %v696 = vrot.slane %v694, 1
      %v697 = vor.u32 %v692, %v696
      %v699 = vshll.u32 %v690, 16
      %v701 = vrot.slane %v699, 1
      %v702 = vsel %vm360, %v697, %v701
      %703 = vrot.lane.b32.xlu0 %v384, 24
      %v704 = vpop.permute.xlu0 %703
      %705 = vrot.lane.b32.xlu0 %v396, 24
      %v706 = vpop.permute.xlu0 %705
      %707 = vrot.lane.b32.xlu0 %v408, 24
      %v708 = vpop.permute.xlu0 %707
      %709 = vrot.lane.b32.xlu0 %v420, 24
      %v710 = vpop.permute.xlu0 %709
      %711 = vrot.lane.b32.xlu0 %v432, 24
      %v712 = vpop.permute.xlu0 %711
      %713 = vrot.lane.b32.xlu0 %v444, 24
      %v714 = vpop.permute.xlu0 %713
      %715 = vrot.lane.b32.xlu0 %v456, 24
      %v716 = vpop.permute.xlu0 %715
      %717 = vrot.lane.b32.xlu0 %v468, 24
      %v718 = vpop.permute.xlu0 %717
      %719 = vrot.lane.b32.xlu0 %v480, 24
      %v720 = vpop.permute.xlu0 %719
      %721 = vrot.lane.b32.xlu0 %v492, 24
      %v722 = vpop.permute.xlu0 %721
      %723 = vrot.lane.b32.xlu0 %v504, 24
      %v724 = vpop.permute.xlu0 %723
      %725 = vrot.lane.b32.xlu0 %v516, 24
      %v726 = vpop.permute.xlu0 %725
      %727 = vrot.lane.b32.xlu0 %v528, 24
      %v728 = vpop.permute.xlu0 %727
      %729 = vrot.lane.b32.xlu0 %v540, 24
      %v730 = vpop.permute.xlu0 %729
      %731 = vrot.lane.b32.xlu0 %v552, 24
      %v732 = vpop.permute.xlu0 %731
      %733 = vrot.lane.b32.xlu0 %v702, 24
      %v734 = vpop.permute.xlu0 %733
      %vm751 = vcmask 261312
      %752 = vst.msk [vmem:[#allocation2] sm:$0xff] %vm751, %v704
      %753 = vst.msk [vmem:[#allocation2 + $0x8] sm:$0xff] %vm751, %v706
      %754 = vst.msk [vmem:[#allocation2 + $0x10] sm:$0xff] %vm751, %v708
      %755 = vst.msk [vmem:[#allocation2 + $0x18] sm:$0xff] %vm751, %v710
      %756 = vst.msk [vmem:[#allocation2 + $0x20] sm:$0xff] %vm751, %v712
      %757 = vst.msk [vmem:[#allocation2 + $0x28] sm:$0xff] %vm751, %v714
      %758 = vst.msk [vmem:[#allocation2 + $0x30] sm:$0xff] %vm751, %v716
      %759 = vst.msk [vmem:[#allocation2 + $0x38] sm:$0xff] %vm751, %v718
      %760 = vst.msk [vmem:[#allocation2 + $0x40] sm:$0xff] %vm751, %v720
      %761 = vst.msk [vmem:[#allocation2 + $0x48] sm:$0xff] %vm751, %v722
      %762 = vst.msk [vmem:[#allocation2 + $0x50] sm:$0xff] %vm751, %v724
      %763 = vst.msk [vmem:[#allocation2 + $0x58] sm:$0xff] %vm751, %v726
      %764 = vst.msk [vmem:[#allocation2 + $0x60] sm:$0xff] %vm751, %v728
      %765 = vst.msk [vmem:[#allocation2 + $0x68] sm:$0xff] %vm751, %v730
      %766 = vst.msk [vmem:[#allocation2 + $0x70] sm:$0xff] %vm751, %v732
      %767 = vst.msk [vmem:[#allocation2 + $0x78] sm:$0xff] %vm751, %v734
      %v768 = vld [vmem:[#allocation2] sm:$0xff]
      %v769 = vld [vmem:[#allocation2 + $0x8] sm:$0xff]
      %v770 = vld [vmem:[#allocation2 + $0x10] sm:$0xff]
      %v771 = vld [vmem:[#allocation2 + $0x18] sm:$0xff]
      %v772 = vld [vmem:[#allocation2 + $0x20] sm:$0xff]
      %v773 = vld [vmem:[#allocation2 + $0x28] sm:$0xff]
      %v774 = vld [vmem:[#allocation2 + $0x30] sm:$0xff]
      %v775 = vld [vmem:[#allocation2 + $0x38] sm:$0xff]
      %v776 = vld [vmem:[#allocation2 + $0x40] sm:$0xff]
      %v777 = vld [vmem:[#allocation2 + $0x48] sm:$0xff]
      %v778 = vld [vmem:[#allocation2 + $0x50] sm:$0xff]
      %v779 = vld [vmem:[#allocation2 + $0x58] sm:$0xff]
      %v780 = vld [vmem:[#allocation2 + $0x60] sm:$0xff]
      %v781 = vld [vmem:[#allocation2 + $0x68] sm:$0xff]
      %v782 = vld [vmem:[#allocation2 + $0x70] sm:$0xff]
      %v783 = vld [vmem:[#allocation2 + $0x78] sm:$0xff]
      %v784 = vld [vmem:[%s1] sm:$0xf]
      %v785 = vld [vmem:[%s1 + $0x4] sm:$0xf]
      %v786 = vld [vmem:[%s1 + $0x8] sm:$0xf]
      %v787 = vld [vmem:[%s1 + $0xc] sm:$0xf]
      %v792 = vunpack.c.l.b16 %v784
      %v793 = vunpack.c.l.b16 %v785
      %v794 = vunpack.c.l.b16 %v786
      %v795 = vunpack.c.l.b16 %v787
      %v796 = vpack.c.b16 %v793, %v792
      %v797 = vpack.c.b16 %v795, %v794
      %vm800 = vcmask 261120
      %v802 = vsel %vm800, %v768, 0
      %v805 = vsel %vm800, %v769, 0
      %v808 = vsel %vm800, %v770, 0
      %v811 = vsel %vm800, %v771, 0
      %v814 = vsel %vm800, %v772, 0
      %v817 = vsel %vm800, %v773, 0
      %v820 = vsel %vm800, %v774, 0
      %v823 = vsel %vm800, %v775, 0
      %v826 = vsel %vm800, %v776, 0
      %v829 = vsel %vm800, %v777, 0
      %v832 = vsel %vm800, %v778, 0
      %v835 = vsel %vm800, %v779, 0
      %v838 = vsel %vm800, %v780, 0
      %v841 = vsel %vm800, %v781, 0
      %v844 = vsel %vm800, %v782, 0
      %v847 = vsel %vm800, %v783, 0
      %849 = vmatprep.subr.bf16.mxu0 0
      %850 = vmatpush1.bf16.msra.mxu0 %v796
      %851 = vmatprep.subr.bf16.mxu0 0
      %852 = vmatpush1.bf16.msra.mxu0 %v797
      %853 = vmatprep.subr.bf16.mxu0 0
      %854 = vmatpush1.bf16.msra.mxu0 0
      %855 = vmatprep.subr.bf16.mxu0 0
      %856 = vmatpush1.bf16.msra.mxu0 0
      %857 = vmatprep.subr.bf16.mxu0 0
      %858 = vmatpush1.bf16.msra.mxu0 0
      %859 = vmatprep.subr.bf16.mxu0 0
      %860 = vmatpush1.bf16.msra.mxu0 0
      %861 = vmatprep.subr.bf16.mxu0 0
      %862 = vmatpush1.bf16.msra.mxu0 0
      %863 = vmatprep.subr.bf16.mxu0 0
      %864 = vmatpush1.bf16.msra.mxu0 0
      %865 = vmatprep.subr.bf16.mxu0 0
      %866 = vmatpush1.bf16.msra.mxu0 0
      %867 = vmatprep.subr.bf16.mxu0 0
      %868 = vmatpush1.bf16.msra.mxu0 0
      %869 = vmatprep.subr.bf16.mxu0 0
      %870 = vmatpush1.bf16.msra.mxu0 0
      %871 = vmatprep.subr.bf16.mxu0 0
      %872 = vmatpush1.bf16.msra.mxu0 0
      %873 = vmatprep.subr.bf16.mxu0 0
      %874 = vmatpush1.bf16.msra.mxu0 0
      %875 = vmatprep.subr.bf16.mxu0 0
      %876 = vmatpush1.bf16.msra.mxu0 0
      %877 = vmatprep.subr.bf16.mxu0 0
      %878 = vmatpush1.bf16.msra.mxu0 0
      %879 = vmatprep.subr.bf16.mxu0 0
      %880 = vmatpush1.bf16.msra.mxu0 0
      %881 = vmatprep.mubr.bf16.mxu0 0
      %882 = vmatmul.mubr.bf16.gmra.mrb[0].mxu0 %v802
      %v883 = vpop.f32.mrb[0].mxu0
      %v884 = vadd.f32 0.0, %v883
      %v885 = vpop.f32.mrb[0].mxu0
      %v886 = vpop.f32.mrb[0].mxu0
      %v887 = vadd.f32 0.0, %v886
      %v888 = vpop.f32.mrb[0].mxu0
      %889 = vmatprep.mubr.bf16.mxu0 0
      %890 = vmatmul.mubr.bf16.gmra.mrb[0].mxu0 %v805
      %v891 = vpop.f32.mrb[0].mxu0
      %v892 = vadd.f32 0.0, %v891
      %v893 = vpop.f32.mrb[0].mxu0
      %v894 = vpop.f32.mrb[0].mxu0
      %v895 = vadd.f32 0.0, %v894
      %v896 = vpop.f32.mrb[0].mxu0
      %897 = vmatprep.mubr.bf16.mxu0 0
      %898 = vmatmul.mubr.bf16.gmra.mrb[0].mxu0 %v808
      %v899 = vpop.f32.mrb[0].mxu0
      %v900 = vadd.f32 0.0, %v899
      %v901 = vpop.f32.mrb[0].mxu0
      %v902 = vpop.f32.mrb[0].mxu0
      %v903 = vadd.f32 0.0, %v902
      %v904 = vpop.f32.mrb[0].mxu0
      %905 = vmatprep.mubr.bf16.mxu0 0
      %906 = vmatmul.mubr.bf16.gmra.mrb[0].mxu0 %v811
      %v907 = vpop.f32.mrb[0].mxu0
      %v908 = vadd.f32 0.0, %v907
      %v909 = vpop.f32.mrb[0].mxu0
      %v910 = vpop.f32.mrb[0].mxu0
      %v911 = vadd.f32 0.0, %v910
      %v912 = vpop.f32.mrb[0].mxu0
      %913 = vmatprep.mubr.bf16.mxu0 0
      %914 = vmatmul.mubr.bf16.gmra.mrb[0].mxu0 %v814
      %v915 = vpop.f32.mrb[0].mxu0
      %v916 = vadd.f32 0.0, %v915
      %v917 = vpop.f32.mrb[0].mxu0
      %v918 = vpop.f32.mrb[0].mxu0
      %v919 = vadd.f32 0.0, %v918
      %v920 = vpop.f32.mrb[0].mxu0
      %921 = vmatprep.mubr.bf16.mxu0 0
      %922 = vmatmul.mubr.bf16.gmra.mrb[0].mxu0 %v817
      %v923 = vpop.f32.mrb[0].mxu0
      %v924 = vadd.f32 0.0, %v923
      %v925 = vpop.f32.mrb[0].mxu0
      %v926 = vpop.f32.mrb[0].mxu0
      %v927 = vadd.f32 0.0, %v926
      %v928 = vpop.f32.mrb[0].mxu0
      %929 = vmatprep.mubr.bf16.mxu0 0
      %930 = vmatmul.mubr.bf16.gmra.mrb[0].mxu0 %v820
      %v931 = vpop.f32.mrb[0].mxu0
      %v932 = vadd.f32 0.0, %v931
      %v933 = vpop.f32.mrb[0].mxu0
      %v934 = vpop.f32.mrb[0].mxu0
      %v935 = vadd.f32 0.0, %v934
      %v936 = vpop.f32.mrb[0].mxu0
      %937 = vmatprep.mubr.bf16.mxu0 0
      %938 = vmatmul.mubr.bf16.gmra.mrb[0].mxu0 %v823
      %v939 = vpop.f32.mrb[0].mxu0
      %v940 = vadd.f32 0.0, %v939
      %v941 = vpop.f32.mrb[0].mxu0
      %v942 = vpop.f32.mrb[0].mxu0
      %v943 = vadd.f32 0.0, %v942
      %v944 = vpop.f32.mrb[0].mxu0
      %945 = vmatprep.mubr.bf16.mxu0 0
      %946 = vmatmul.mubr.bf16.gmra.mrb[0].mxu0 %v826
      %v947 = vpop.f32.mrb[0].mxu0
      %v948 = vadd.f32 0.0, %v947
      %v949 = vpop.f32.mrb[0].mxu0
      %v950 = vpop.f32.mrb[0].mxu0
      %v951 = vadd.f32 0.0, %v950
      %v952 = vpop.f32.mrb[0].mxu0
      %953 = vmatprep.mubr.bf16.mxu0 0
      %954 = vmatmul.mubr.bf16.gmra.mrb[0].mxu0 %v829
      %v955 = vpop.f32.mrb[0].mxu0
      %v956 = vadd.f32 0.0, %v955
      %v957 = vpop.f32.mrb[0].mxu0
      %v958 = vpop.f32.mrb[0].mxu0
      %v959 = vadd.f32 0.0, %v958
      %v960 = vpop.f32.mrb[0].mxu0
      %961 = vmatprep.mubr.bf16.mxu0 0
      %962 = vmatmul.mubr.bf16.gmra.mrb[0].mxu0 %v832
      %v963 = vpop.f32.mrb[0].mxu0
      %v964 = vadd.f32 0.0, %v963
      %v965 = vpop.f32.mrb[0].mxu0
      %v966 = vpop.f32.mrb[0].mxu0
      %v967 = vadd.f32 0.0, %v966
      %v968 = vpop.f32.mrb[0].mxu0
      %969 = vmatprep.mubr.bf16.mxu0 0
      %970 = vmatmul.mubr.bf16.gmra.mrb[0].mxu0 %v835
      %v971 = vpop.f32.mrb[0].mxu0
      %v972 = vadd.f32 0.0, %v971
      %v973 = vpop.f32.mrb[0].mxu0
      %v974 = vpop.f32.mrb[0].mxu0
      %v975 = vadd.f32 0.0, %v974
      %v976 = vpop.f32.mrb[0].mxu0
      %977 = vmatprep.mubr.bf16.mxu0 0
      %978 = vmatmul.mubr.bf16.gmra.mrb[0].mxu0 %v838
      %v979 = vpop.f32.mrb[0].mxu0
      %v980 = vadd.f32 0.0, %v979
      %v981 = vpop.f32.mrb[0].mxu0
      %v982 = vpop.f32.mrb[0].mxu0
      %v983 = vadd.f32 0.0, %v982
      %v984 = vpop.f32.mrb[0].mxu0
      %985 = vmatprep.mubr.bf16.mxu0 0
      %986 = vmatmul.mubr.bf16.gmra.mrb[0].mxu0 %v841
      %v987 = vpop.f32.mrb[0].mxu0
      %v988 = vadd.f32 0.0, %v987
      %v989 = vpop.f32.mrb[0].mxu0
      %v990 = vpop.f32.mrb[0].mxu0
      %v991 = vadd.f32 0.0, %v990
      %v992 = vpop.f32.mrb[0].mxu0
      %993 = vmatprep.mubr.bf16.mxu0 0
      %994 = vmatmul.mubr.bf16.gmra.mrb[0].mxu0 %v844
      %v995 = vpop.f32.mrb[0].mxu0
      %v996 = vadd.f32 0.0, %v995
      %v997 = vpop.f32.mrb[0].mxu0
      %v998 = vpop.f32.mrb[0].mxu0
      %v999 = vadd.f32 0.0, %v998
      %v1000 = vpop.f32.mrb[0].mxu0
      %1001 = vmatprep.mubr.bf16.mxu0 0
      %1002 = vmatmul.mubr.bf16.gmra.mrb[0].mxu0 %v847
      %v1003 = vpop.f32.mrb[0].mxu0
      %v1004 = vadd.f32 0.0, %v1003
      %v1005 = vpop.f32.mrb[0].mxu0
      %v1006 = vpop.f32.mrb[0].mxu0
      %v1007 = vadd.f32 0.0, %v1006
      %v1008 = vpop.f32.mrb[0].mxu0
      %1009 = vdwg.mxu0
      %s1026 = scalar_lea.vmem [#allocation2], 128
      %1027 = vst.msk [vmem:[%s1026] sm:$0xff] %vm295, %v372
      %1028 = vst.msk [vmem:[%s1026 + $0x8] sm:$0xff] %vm295, %v384
      %1029 = vst.msk [vmem:[%s1026 + $0x10] sm:$0xff] %vm295, %v396
      %1030 = vst.msk [vmem:[%s1026 + $0x18] sm:$0xff] %vm295, %v408
      %1031 = vst.msk [vmem:[%s1026 + $0x20] sm:$0xff] %vm295, %v420
      %1032 = vst.msk [vmem:[%s1026 + $0x28] sm:$0xff] %vm295, %v432
      %1033 = vst.msk [vmem:[%s1026 + $0x30] sm:$0xff] %vm295, %v444
      %1034 = vst.msk [vmem:[%s1026 + $0x38] sm:$0xff] %vm295, %v456
      %1035 = vst.msk [vmem:[%s1026 + $0x40] sm:$0xff] %vm295, %v468
      %1036 = vst.msk [vmem:[%s1026 + $0x48] sm:$0xff] %vm295, %v480
      %1037 = vst.msk [vmem:[%s1026 + $0x50] sm:$0xff] %vm295, %v492
      %1038 = vst.msk [vmem:[%s1026 + $0x58] sm:$0xff] %vm295, %v504
      %1039 = vst.msk [vmem:[%s1026 + $0x60] sm:$0xff] %vm295, %v516
      %1040 = vst.msk [vmem:[%s1026 + $0x68] sm:$0xff] %vm295, %v528
      %1041 = vst.msk [vmem:[%s1026 + $0x70] sm:$0xff] %vm295, %v540
      %1042 = vst.msk [vmem:[%s1026 + $0x78] sm:$0xff] %vm295, %v552
      %vm1043 = vcmask 1046528
      %v1044 = vrot.slane %v263, 1
      %v1045 = vrot.slane %v344, 1
      %v1046 = vsel %vm1043, %v1044, %v1045
      %v1047 = vrot.slane %v264, 1
      %v1048 = vrot.slane %v345, 1
      %v1049 = vsel %vm1043, %v1047, %v1048
      %v1050 = vrot.slane %v265, 1
      %v1051 = vrot.slane %v346, 1
      %v1052 = vsel %vm1043, %v1050, %v1051
      %v1053 = vrot.slane %v266, 1
      %v1054 = vrot.slane %v347, 1
      %v1055 = vsel %vm1043, %v1053, %v1054
      %v1056 = vrot.slane %v267, 1
      %v1057 = vrot.slane %v348, 1
      %v1058 = vsel %vm1043, %v1056, %v1057
      %v1059 = vrot.slane %v268, 1
      %v1060 = vrot.slane %v349, 1
      %v1061 = vsel %vm1043, %v1059, %v1060
      %v1062 = vrot.slane %v269, 1
      %v1063 = vrot.slane %v350, 1
      %v1064 = vsel %vm1043, %v1062, %v1063
      %v1065 = vrot.slane %v270, 1
      %v1066 = vrot.slane %v351, 1
      %v1067 = vsel %vm1043, %v1065, %v1066
      %v1068 = vrot.slane %v271, 1
      %v1069 = vrot.slane %v352, 1
      %v1070 = vsel %vm1043, %v1068, %v1069
      %v1071 = vrot.slane %v272, 1
      %v1072 = vrot.slane %v353, 1
      %v1073 = vsel %vm1043, %v1071, %v1072
      %v1074 = vrot.slane %v273, 1
      %v1075 = vrot.slane %v354, 1
      %v1076 = vsel %vm1043, %v1074, %v1075
      %v1077 = vrot.slane %v274, 1
      %v1078 = vrot.slane %v355, 1
      %v1079 = vsel %vm1043, %v1077, %v1078
      %v1080 = vrot.slane %v275, 1
      %v1081 = vrot.slane %v356, 1
      %v1082 = vsel %vm1043, %v1080, %v1081
      %v1083 = vrot.slane %v276, 1
      %v1084 = vrot.slane %v357, 1
      %v1085 = vsel %vm1043, %v1083, %v1084
      %v1086 = vrot.slane %v277, 1
      %v1087 = vrot.slane %v358, 1
      %v1088 = vsel %vm1043, %v1086, %v1087
      %v1089 = vrot.slane %v278, 1
      %v1090 = vrot.slane %v359, 1
      %v1091 = vsel %vm1043, %v1089, %v1090
      %1092 = vrot.lane.b32.xlu0 %v1046, 8
      %v1093 = vpop.permute.xlu0 %1092
      %1094 = vrot.lane.b32.xlu0 %v1049, 8
      %v1095 = vpop.permute.xlu0 %1094
      %1096 = vrot.lane.b32.xlu0 %v1052, 8
      %v1097 = vpop.permute.xlu0 %1096
      %1098 = vrot.lane.b32.xlu0 %v1055, 8
      %v1099 = vpop.permute.xlu0 %1098
      %1100 = vrot.lane.b32.xlu0 %v1058, 8
      %v1101 = vpop.permute.xlu0 %1100
      %1102 = vrot.lane.b32.xlu0 %v1061, 8
      %v1103 = vpop.permute.xlu0 %1102
      %1104 = vrot.lane.b32.xlu0 %v1064, 8
      %v1105 = vpop.permute.xlu0 %1104
      %1106 = vrot.lane.b32.xlu0 %v1067, 8
      %v1107 = vpop.permute.xlu0 %1106
      %1108 = vrot.lane.b32.xlu0 %v1070, 8
      %v1109 = vpop.permute.xlu0 %1108
      %1110 = vrot.lane.b32.xlu0 %v1073, 8
      %v1111 = vpop.permute.xlu0 %1110
      %1112 = vrot.lane.b32.xlu0 %v1076, 8
      %v1113 = vpop.permute.xlu0 %1112
      %1114 = vrot.lane.b32.xlu0 %v1079, 8
      %v1115 = vpop.permute.xlu0 %1114
      %1116 = vrot.lane.b32.xlu0 %v1082, 8
      %v1117 = vpop.permute.xlu0 %1116
      %1118 = vrot.lane.b32.xlu0 %v1085, 8
      %v1119 = vpop.permute.xlu0 %1118
      %1120 = vrot.lane.b32.xlu0 %v1088, 8
      %v1121 = vpop.permute.xlu0 %1120
      %1122 = vrot.lane.b32.xlu0 %v1091, 8
      %v1123 = vpop.permute.xlu0 %1122
      %1140 = vst.msk [vmem:[%s1026] sm:$0xff] %vm601, %v1093
      %1141 = vst.msk [vmem:[%s1026 + $0x8] sm:$0xff] %vm601, %v1095
      %1142 = vst.msk [vmem:[%s1026 + $0x10] sm:$0xff] %vm601, %v1097
      %1143 = vst.msk [vmem:[%s1026 + $0x18] sm:$0xff] %vm601, %v1099
      %1144 = vst.msk [vmem:[%s1026 + $0x20] sm:$0xff] %vm601, %v1101
      %1145 = vst.msk [vmem:[%s1026 + $0x28] sm:$0xff] %vm601, %v1103
      %1146 = vst.msk [vmem:[%s1026 + $0x30] sm:$0xff] %vm601, %v1105
      %1147 = vst.msk [vmem:[%s1026 + $0x38] sm:$0xff] %vm601, %v1107
      %1148 = vst.msk [vmem:[%s1026 + $0x40] sm:$0xff] %vm601, %v1109
      %1149 = vst.msk [vmem:[%s1026 + $0x48] sm:$0xff] %vm601, %v1111
      %1150 = vst.msk [vmem:[%s1026 + $0x50] sm:$0xff] %vm601, %v1113
      %1151 = vst.msk [vmem:[%s1026 + $0x58] sm:$0xff] %vm601, %v1115
      %1152 = vst.msk [vmem:[%s1026 + $0x60] sm:$0xff] %vm601, %v1117
      %1153 = vst.msk [vmem:[%s1026 + $0x68] sm:$0xff] %vm601, %v1119
      %1154 = vst.msk [vmem:[%s1026 + $0x70] sm:$0xff] %vm601, %v1121
      %1155 = vst.msk [vmem:[%s1026 + $0x78] sm:$0xff] %vm601, %v1123
      %1156 = vrot.lane.b32.xlu0 %v384, 16
      %v1157 = vpop.permute.xlu0 %1156
      %1158 = vrot.lane.b32.xlu0 %v396, 16
      %v1159 = vpop.permute.xlu0 %1158
      %1160 = vrot.lane.b32.xlu0 %v408, 16
      %v1161 = vpop.permute.xlu0 %1160
      %1162 = vrot.lane.b32.xlu0 %v420, 16
      %v1163 = vpop.permute.xlu0 %1162
      %1164 = vrot.lane.b32.xlu0 %v432, 16
      %v1165 = vpop.permute.xlu0 %1164
      %1166 = vrot.lane.b32.xlu0 %v444, 16
      %v1167 = vpop.permute.xlu0 %1166
      %1168 = vrot.lane.b32.xlu0 %v456, 16
      %v1169 = vpop.permute.xlu0 %1168
      %1170 = vrot.lane.b32.xlu0 %v468, 16
      %v1171 = vpop.permute.xlu0 %1170
      %1172 = vrot.lane.b32.xlu0 %v480, 16
      %v1173 = vpop.permute.xlu0 %1172
      %1174 = vrot.lane.b32.xlu0 %v492, 16
      %v1175 = vpop.permute.xlu0 %1174
      %1176 = vrot.lane.b32.xlu0 %v504, 16
      %v1177 = vpop.permute.xlu0 %1176
      %1178 = vrot.lane.b32.xlu0 %v516, 16
      %v1179 = vpop.permute.xlu0 %1178
      %1180 = vrot.lane.b32.xlu0 %v528, 16
      %v1181 = vpop.permute.xlu0 %1180
      %1182 = vrot.lane.b32.xlu0 %v540, 16
      %v1183 = vpop.permute.xlu0 %1182
      %1184 = vrot.lane.b32.xlu0 %v552, 16
      %v1185 = vpop.permute.xlu0 %1184
      %1186 = vrot.lane.b32.xlu0 %v702, 16
      %v1187 = vpop.permute.xlu0 %1186
      %1204 = vst.msk [vmem:[%s1026] sm:$0xff] %vm671, %v1157
      %1205 = vst.msk [vmem:[%s1026 + $0x8] sm:$0xff] %vm671, %v1159
      %1206 = vst.msk [vmem:[%s1026 + $0x10] sm:$0xff] %vm671, %v1161
      %1207 = vst.msk [vmem:[%s1026 + $0x18] sm:$0xff] %vm671, %v1163
      %1208 = vst.msk [vmem:[%s1026 + $0x20] sm:$0xff] %vm671, %v1165
      %1209 = vst.msk [vmem:[%s1026 + $0x28] sm:$0xff] %vm671, %v1167
      %1210 = vst.msk [vmem:[%s1026 + $0x30] sm:$0xff] %vm671, %v1169
      %1211 = vst.msk [vmem:[%s1026 + $0x38] sm:$0xff] %vm671, %v1171
      %1212 = vst.msk [vmem:[%s1026 + $0x40] sm:$0xff] %vm671, %v1173
      %1213 = vst.msk [vmem:[%s1026 + $0x48] sm:$0xff] %vm671, %v1175
      %1214 = vst.msk [vmem:[%s1026 + $0x50] sm:$0xff] %vm671, %v1177
      %1215 = vst.msk [vmem:[%s1026 + $0x58] sm:$0xff] %vm671, %v1179
      %1216 = vst.msk [vmem:[%s1026 + $0x60] sm:$0xff] %vm671, %v1181
      %1217 = vst.msk [vmem:[%s1026 + $0x68] sm:$0xff] %vm671, %v1183
      %1218 = vst.msk [vmem:[%s1026 + $0x70] sm:$0xff] %vm671, %v1185
      %1219 = vst.msk [vmem:[%s1026 + $0x78] sm:$0xff] %vm671, %v1187
      %v1220 = vrot.slane %v622, 1
      %v1221 = vrot.slane %v690, 1
      %v1222 = vsel %vm1043, %v1220, %v1221
      %1223 = vrot.lane.b32.xlu0 %v1049, 24
      %v1224 = vpop.permute.xlu0 %1223
      %1225 = vrot.lane.b32.xlu0 %v1052, 24
      %v1226 = vpop.permute.xlu0 %1225
      %1227 = vrot.lane.b32.xlu0 %v1055, 24
      %v1228 = vpop.permute.xlu0 %1227
      %1229 = vrot.lane.b32.xlu0 %v1058, 24
      %v1230 = vpop.permute.xlu0 %1229
      %1231 = vrot.lane.b32.xlu0 %v1061, 24
      %v1232 = vpop.permute.xlu0 %1231
      %1233 = vrot.lane.b32.xlu0 %v1064, 24
      %v1234 = vpop.permute.xlu0 %1233
      %1235 = vrot.lane.b32.xlu0 %v1067, 24
      %v1236 = vpop.permute.xlu0 %1235
      %1237 = vrot.lane.b32.xlu0 %v1070, 24
      %v1238 = vpop.permute.xlu0 %1237
      %1239 = vrot.lane.b32.xlu0 %v1073, 24
      %v1240 = vpop.permute.xlu0 %1239
      %1241 = vrot.lane.b32.xlu0 %v1076, 24
      %v1242 = vpop.permute.xlu0 %1241
      %1243 = vrot.lane.b32.xlu0 %v1079, 24
      %v1244 = vpop.permute.xlu0 %1243
      %1245 = vrot.lane.b32.xlu0 %v1082, 24
      %v1246 = vpop.permute.xlu0 %1245
      %1247 = vrot.lane.b32.xlu0 %v1085, 24
      %v1248 = vpop.permute.xlu0 %1247
      %1249 = vrot.lane.b32.xlu0 %v1088, 24
      %v1250 = vpop.permute.xlu0 %1249
      %1251 = vrot.lane.b32.xlu0 %v1091, 24
      %v1252 = vpop.permute.xlu0 %1251
      %1253 = vrot.lane.b32.xlu0 %v1222, 24
      %v1254 = vpop.permute.xlu0 %1253
      %1271 = vst.msk [vmem:[%s1026] sm:$0xff] %vm751, %v1224
      %1272 = vst.msk [vmem:[%s1026 + $0x8] sm:$0xff] %vm751, %v1226
      %1273 = vst.msk [vmem:[%s1026 + $0x10] sm:$0xff] %vm751, %v1228
      %1274 = vst.msk [vmem:[%s1026 + $0x18] sm:$0xff] %vm751, %v1230
      %1275 = vst.msk [vmem:[%s1026 + $0x20] sm:$0xff] %vm751, %v1232
      %1276 = vst.msk [vmem:[%s1026 + $0x28] sm:$0xff] %vm751, %v1234
      %1277 = vst.msk [vmem:[%s1026 + $0x30] sm:$0xff] %vm751, %v1236
      %1278 = vst.msk [vmem:[%s1026 + $0x38] sm:$0xff] %vm751, %v1238
      %1279 = vst.msk [vmem:[%s1026 + $0x40] sm:$0xff] %vm751, %v1240
      %1280 = vst.msk [vmem:[%s1026 + $0x48] sm:$0xff] %vm751, %v1242
      %1281 = vst.msk [vmem:[%s1026 + $0x50] sm:$0xff] %vm751, %v1244
      %1282 = vst.msk [vmem:[%s1026 + $0x58] sm:$0xff] %vm751, %v1246
      %1283 = vst.msk [vmem:[%s1026 + $0x60] sm:$0xff] %vm751, %v1248
      %1284 = vst.msk [vmem:[%s1026 + $0x68] sm:$0xff] %vm751, %v1250
      %1285 = vst.msk [vmem:[%s1026 + $0x70] sm:$0xff] %vm751, %v1252
      %1286 = vst.msk [vmem:[%s1026 + $0x78] sm:$0xff] %vm751, %v1254
      %v1287 = vld [vmem:[%s1026] sm:$0xff]
      %v1288 = vld [vmem:[%s1026 + $0x8] sm:$0xff]
      %v1289 = vld [vmem:[%s1026 + $0x10] sm:$0xff]
      %v1290 = vld [vmem:[%s1026 + $0x18] sm:$0xff]
      %v1291 = vld [vmem:[%s1026 + $0x20] sm:$0xff]
      %v1292 = vld [vmem:[%s1026 + $0x28] sm:$0xff]
      %v1293 = vld [vmem:[%s1026 + $0x30] sm:$0xff]
      %v1294 = vld [vmem:[%s1026 + $0x38] sm:$0xff]
      %v1295 = vld [vmem:[%s1026 + $0x40] sm:$0xff]
      %v1296 = vld [vmem:[%s1026 + $0x48] sm:$0xff]
      %v1297 = vld [vmem:[%s1026 + $0x50] sm:$0xff]
      %v1298 = vld [vmem:[%s1026 + $0x58] sm:$0xff]
      %v1299 = vld [vmem:[%s1026 + $0x60] sm:$0xff]
      %v1300 = vld [vmem:[%s1026 + $0x68] sm:$0xff]
      %v1301 = vld [vmem:[%s1026 + $0x70] sm:$0xff]
      %v1302 = vld [vmem:[%s1026 + $0x78] sm:$0xff]
      %s1303 = scalar_lea.vmem %s1, 16
      %v1304 = vld [vmem:[%s1303] sm:$0xf]
      %v1305 = vld [vmem:[%s1303 + $0x4] sm:$0xf]
      %v1306 = vld [vmem:[%s1303 + $0x8] sm:$0xf]
      %v1307 = vld [vmem:[%s1303 + $0xc] sm:$0xf]
      %v1312 = vunpack.c.l.b16 %v1304
      %v1313 = vunpack.c.l.b16 %v1305
      %v1314 = vunpack.c.l.b16 %v1306
      %v1315 = vunpack.c.l.b16 %v1307
      %v1316 = vpack.c.b16 %v1313, %v1312
      %v1317 = vpack.c.b16 %v1315, %v1314
      %v1321 = vsel %vm800, %v1287, 0
      %v1324 = vsel %vm800, %v1288, 0
      %v1327 = vsel %vm800, %v1289, 0
      %v1330 = vsel %vm800, %v1290, 0
      %v1333 = vsel %vm800, %v1291, 0
      %v1336 = vsel %vm800, %v1292, 0
      %v1339 = vsel %vm800, %v1293, 0
      %v1342 = vsel %vm800, %v1294, 0
      %v1345 = vsel %vm800, %v1295, 0
      %v1348 = vsel %vm800, %v1296, 0
      %v1351 = vsel %vm800, %v1297, 0
      %v1354 = vsel %vm800, %v1298, 0
      %v1357 = vsel %vm800, %v1299, 0
      %v1360 = vsel %vm800, %v1300, 0
      %v1363 = vsel %vm800, %v1301, 0
      %v1366 = vsel %vm800, %v1302, 0
      %1368 = vmatprep.subr.bf16.mxu0 0
      %1369 = vmatpush1.bf16.msra.mxu0 %v1316
      %1370 = vmatprep.subr.bf16.mxu0 0
      %1371 = vmatpush1.bf16.msra.mxu0 %v1317
      %1372 = vmatprep.subr.bf16.mxu0 0
      %1373 = vmatpush1.bf16.msra.mxu0 0
      %1374 = vmatprep.subr.bf16.mxu0 0
      %1375 = vmatpush1.bf16.msra.mxu0 0
      %1376 = vmatprep.subr.bf16.mxu0 0
      %1377 = vmatpush1.bf16.msra.mxu0 0
      %1378 = vmatprep.subr.bf16.mxu0 0
      %1379 = vmatpush1.bf16.msra.mxu0 0
      %1380 = vmatprep.subr.bf16.mxu0 0
      %1381 = vmatpush1.bf16.msra.mxu0 0
      %1382 = vmatprep.subr.bf16.mxu0 0
      %1383 = vmatpush1.bf16.msra.mxu0 0
      %1384 = vmatprep.subr.bf16.mxu0 0
      %1385 = vmatpush1.bf16.msra.mxu0 0
      %1386 = vmatprep.subr.bf16.mxu0 0
      %1387 = vmatpush1.bf16.msra.mxu0 0
      %1388 = vmatprep.subr.bf16.mxu0 0
      %1389 = vmatpush1.bf16.msra.mxu0 0
      %1390 = vmatprep.subr.bf16.mxu0 0
      %1391 = vmatpush1.bf16.msra.mxu0 0
      %1392 = vmatprep.subr.bf16.mxu0 0
      %1393 = vmatpush1.bf16.msra.mxu0 0
      %1394 = vmatprep.subr.bf16.mxu0 0
      %1395 = vmatpush1.bf16.msra.mxu0 0
      %1396 = vmatprep.subr.bf16.mxu0 0
      %1397 = vmatpush1.bf16.msra.mxu0 0
      %1398 = vmatprep.subr.bf16.mxu0 0
      %1399 = vmatpush1.bf16.msra.mxu0 0
      %1400 = vmatprep.mubr.bf16.mxu0 0
      %1401 = vmatmul.mubr.bf16.gmra.mrb[0].mxu0 %v1321
      %v1402 = vpop.f32.mrb[0].mxu0
      %v1403 = vadd.f32 0.0, %v1402
      %v1404 = vpop.f32.mrb[0].mxu0
      %v1405 = vpop.f32.mrb[0].mxu0
      %v1406 = vadd.f32 0.0, %v1405
      %v1407 = vpop.f32.mrb[0].mxu0
      %1408 = vmatprep.mubr.bf16.mxu0 0
      %1409 = vmatmul.mubr.bf16.gmra.mrb[0].mxu0 %v1324
      %v1410 = vpop.f32.mrb[0].mxu0
      %v1411 = vadd.f32 0.0, %v1410
      %v1412 = vpop.f32.mrb[0].mxu0
      %v1413 = vpop.f32.mrb[0].mxu0
      %v1414 = vadd.f32 0.0, %v1413
      %v1415 = vpop.f32.mrb[0].mxu0
      %1416 = vmatprep.mubr.bf16.mxu0 0
      %1417 = vmatmul.mubr.bf16.gmra.mrb[0].mxu0 %v1327
      %v1418 = vpop.f32.mrb[0].mxu0
      %v1419 = vadd.f32 0.0, %v1418
      %v1420 = vpop.f32.mrb[0].mxu0
      %v1421 = vpop.f32.mrb[0].mxu0
      %v1422 = vadd.f32 0.0, %v1421
      %v1423 = vpop.f32.mrb[0].mxu0
      %1424 = vmatprep.mubr.bf16.mxu0 0
      %1425 = vmatmul.mubr.bf16.gmra.mrb[0].mxu0 %v1330
      %v1426 = vpop.f32.mrb[0].mxu0
      %v1427 = vadd.f32 0.0, %v1426
      %v1428 = vpop.f32.mrb[0].mxu0
      %v1429 = vpop.f32.mrb[0].mxu0
      %v1430 = vadd.f32 0.0, %v1429
      %v1431 = vpop.f32.mrb[0].mxu0
      %1432 = vmatprep.mubr.bf16.mxu0 0
      %1433 = vmatmul.mubr.bf16.gmra.mrb[0].mxu0 %v1333
      %v1434 = vpop.f32.mrb[0].mxu0
      %v1435 = vadd.f32 0.0, %v1434
      %v1436 = vpop.f32.mrb[0].mxu0
      %v1437 = vpop.f32.mrb[0].mxu0
      %v1438 = vadd.f32 0.0, %v1437
      %v1439 = vpop.f32.mrb[0].mxu0
      %1440 = vmatprep.mubr.bf16.mxu0 0
      %1441 = vmatmul.mubr.bf16.gmra.mrb[0].mxu0 %v1336
      %v1442 = vpop.f32.mrb[0].mxu0
      %v1443 = vadd.f32 0.0, %v1442
      %v1444 = vpop.f32.mrb[0].mxu0
      %v1445 = vpop.f32.mrb[0].mxu0
      %v1446 = vadd.f32 0.0, %v1445
      %v1447 = vpop.f32.mrb[0].mxu0
      %1448 = vmatprep.mubr.bf16.mxu0 0
      %1449 = vmatmul.mubr.bf16.gmra.mrb[0].mxu0 %v1339
      %v1450 = vpop.f32.mrb[0].mxu0
      %v1451 = vadd.f32 0.0, %v1450
      %v1452 = vpop.f32.mrb[0].mxu0
      %v1453 = vpop.f32.mrb[0].mxu0
      %v1454 = vadd.f32 0.0, %v1453
      %v1455 = vpop.f32.mrb[0].mxu0
      %1456 = vmatprep.mubr.bf16.mxu0 0
      %1457 = vmatmul.mubr.bf16.gmra.mrb[0].mxu0 %v1342
      %v1458 = vpop.f32.mrb[0].mxu0
      %v1459 = vadd.f32 0.0, %v1458
      %v1460 = vpop.f32.mrb[0].mxu0
      %v1461 = vpop.f32.mrb[0].mxu0
      %v1462 = vadd.f32 0.0, %v1461
      %v1463 = vpop.f32.mrb[0].mxu0
      %1464 = vmatprep.mubr.bf16.mxu0 0
      %1465 = vmatmul.mubr.bf16.gmra.mrb[0].mxu0 %v1345
      %v1466 = vpop.f32.mrb[0].mxu0
      %v1467 = vadd.f32 0.0, %v1466
      %v1468 = vpop.f32.mrb[0].mxu0
      %v1469 = vpop.f32.mrb[0].mxu0
      %v1470 = vadd.f32 0.0, %v1469
      %v1471 = vpop.f32.mrb[0].mxu0
      %1472 = vmatprep.mubr.bf16.mxu0 0
      %1473 = vmatmul.mubr.bf16.gmra.mrb[0].mxu0 %v1348
      %v1474 = vpop.f32.mrb[0].mxu0
      %v1475 = vadd.f32 0.0, %v1474
      %v1476 = vpop.f32.mrb[0].mxu0
      %v1477 = vpop.f32.mrb[0].mxu0
      %v1478 = vadd.f32 0.0, %v1477
      %v1479 = vpop.f32.mrb[0].mxu0
      %1480 = vmatprep.mubr.bf16.mxu0 0
      %1481 = vmatmul.mubr.bf16.gmra.mrb[0].mxu0 %v1351
      %v1482 = vpop.f32.mrb[0].mxu0
      %v1483 = vadd.f32 0.0, %v1482
      %v1484 = vpop.f32.mrb[0].mxu0
      %v1485 = vpop.f32.mrb[0].mxu0
      %v1486 = vadd.f32 0.0, %v1485
      %v1487 = vpop.f32.mrb[0].mxu0
      %1488 = vmatprep.mubr.bf16.mxu0 0
      %1489 = vmatmul.mubr.bf16.gmra.mrb[0].mxu0 %v1354
      %v1490 = vpop.f32.mrb[0].mxu0
      %v1491 = vadd.f32 0.0, %v1490
      %v1492 = vpop.f32.mrb[0].mxu0
      %v1493 = vpop.f32.mrb[0].mxu0
      %v1494 = vadd.f32 0.0, %v1493
      %v1495 = vpop.f32.mrb[0].mxu0
      %1496 = vmatprep.mubr.bf16.mxu0 0
      %1497 = vmatmul.mubr.bf16.gmra.mrb[0].mxu0 %v1357
      %v1498 = vpop.f32.mrb[0].mxu0
      %v1499 = vadd.f32 0.0, %v1498
      %v1500 = vpop.f32.mrb[0].mxu0
      %v1501 = vpop.f32.mrb[0].mxu0
      %v1502 = vadd.f32 0.0, %v1501
      %v1503 = vpop.f32.mrb[0].mxu0
      %1504 = vmatprep.mubr.bf16.mxu0 0
      %1505 = vmatmul.mubr.bf16.gmra.mrb[0].mxu0 %v1360
      %v1506 = vpop.f32.mrb[0].mxu0
      %v1507 = vadd.f32 0.0, %v1506
      %v1508 = vpop.f32.mrb[0].mxu0
      %v1509 = vpop.f32.mrb[0].mxu0
      %v1510 = vadd.f32 0.0, %v1509
      %v1511 = vpop.f32.mrb[0].mxu0
      %1512 = vmatprep.mubr.bf16.mxu0 0
      %1513 = vmatmul.mubr.bf16.gmra.mrb[0].mxu0 %v1363
      %v1514 = vpop.f32.mrb[0].mxu0
      %v1515 = vadd.f32 0.0, %v1514
      %v1516 = vpop.f32.mrb[0].mxu0
      %v1517 = vpop.f32.mrb[0].mxu0
      %v1518 = vadd.f32 0.0, %v1517
      %v1519 = vpop.f32.mrb[0].mxu0
      %1520 = vmatprep.mubr.bf16.mxu0 0
      %1521 = vmatmul.mubr.bf16.gmra.mrb[0].mxu0 %v1366
      %v1522 = vpop.f32.mrb[0].mxu0
      %v1523 = vadd.f32 0.0, %v1522
      %v1524 = vpop.f32.mrb[0].mxu0
      %v1525 = vpop.f32.mrb[0].mxu0
      %v1526 = vadd.f32 0.0, %v1525
      %v1527 = vpop.f32.mrb[0].mxu0
      %1528 = vdwg.mxu0
      %1530 = vst.msk [vmem:[#allocation2] sm:$0xff] %vm295, %v264
      %1531 = vst.msk [vmem:[#allocation2 + $0x8] sm:$0xff] %vm295, %v265
      %1532 = vst.msk [vmem:[#allocation2 + $0x10] sm:$0xff] %vm295, %v266
      %1533 = vst.msk [vmem:[#allocation2 + $0x18] sm:$0xff] %vm295, %v267
      %1534 = vst.msk [vmem:[#allocation2 + $0x20] sm:$0xff] %vm295, %v268
      %1535 = vst.msk [vmem:[#allocation2 + $0x28] sm:$0xff] %vm295, %v269
      %1536 = vst.msk [vmem:[#allocation2 + $0x30] sm:$0xff] %vm295, %v270
      %1537 = vst.msk [vmem:[#allocation2 + $0x38] sm:$0xff] %vm295, %v271
      %1538 = vst.msk [vmem:[#allocation2 + $0x40] sm:$0xff] %vm295, %v272
      %1539 = vst.msk [vmem:[#allocation2 + $0x48] sm:$0xff] %vm295, %v273
      %1540 = vst.msk [vmem:[#allocation2 + $0x50] sm:$0xff] %vm295, %v274
      %1541 = vst.msk [vmem:[#allocation2 + $0x58] sm:$0xff] %vm295, %v275
      %1542 = vst.msk [vmem:[#allocation2 + $0x60] sm:$0xff] %vm295, %v276
      %1543 = vst.msk [vmem:[#allocation2 + $0x68] sm:$0xff] %vm295, %v277
      %1544 = vst.msk [vmem:[#allocation2 + $0x70] sm:$0xff] %vm295, %v278
      %1545 = vst.msk [vmem:[#allocation2 + $0x78] sm:$0xff] %vm295, %v622
      %1546 = vrot.lane.b32.xlu0 %v702, 8
      %v1547 = vpop.permute.xlu0 %1546
      %1549 = vst.msk [vmem:[#allocation2] sm:$0xff] %vm601, %v556
      %1550 = vst.msk [vmem:[#allocation2 + $0x8] sm:$0xff] %vm601, %v558
      %1551 = vst.msk [vmem:[#allocation2 + $0x10] sm:$0xff] %vm601, %v560
      %1552 = vst.msk [vmem:[#allocation2 + $0x18] sm:$0xff] %vm601, %v562
      %1553 = vst.msk [vmem:[#allocation2 + $0x20] sm:$0xff] %vm601, %v564
      %1554 = vst.msk [vmem:[#allocation2 + $0x28] sm:$0xff] %vm601, %v566
      %1555 = vst.msk [vmem:[#allocation2 + $0x30] sm:$0xff] %vm601, %v568
      %1556 = vst.msk [vmem:[#allocation2 + $0x38] sm:$0xff] %vm601, %v570
      %1557 = vst.msk [vmem:[#allocation2 + $0x40] sm:$0xff] %vm601, %v572
      %1558 = vst.msk [vmem:[#allocation2 + $0x48] sm:$0xff] %vm601, %v574
      %1559 = vst.msk [vmem:[#allocation2 + $0x50] sm:$0xff] %vm601, %v576
      %1560 = vst.msk [vmem:[#allocation2 + $0x58] sm:$0xff] %vm601, %v578
      %1561 = vst.msk [vmem:[#allocation2 + $0x60] sm:$0xff] %vm601, %v580
      %1562 = vst.msk [vmem:[#allocation2 + $0x68] sm:$0xff] %vm601, %v582
      %1563 = vst.msk [vmem:[#allocation2 + $0x70] sm:$0xff] %vm601, %v584
      %1564 = vst.msk [vmem:[#allocation2 + $0x78] sm:$0xff] %vm601, %v1547
      %v1567 = vunpack.c.l.b16 %v196
      %v1568 = vunpack.c.l.b16 %v197
      %v1569 = vpack.c.b16 %v1568, %v1567
      %1570 = vrot.lane.b32.xlu0 %v1569, 16
      %v1571 = vpop.permute.xlu0 %1570
      %1573 = vst.msk [vmem:[#allocation2] sm:$0xff] %vm671, %v626
      %1574 = vst.msk [vmem:[#allocation2 + $0x8] sm:$0xff] %vm671, %v628
      %1575 = vst.msk [vmem:[#allocation2 + $0x10] sm:$0xff] %vm671, %v630
      %1576 = vst.msk [vmem:[#allocation2 + $0x18] sm:$0xff] %vm671, %v632
      %1577 = vst.msk [vmem:[#allocation2 + $0x20] sm:$0xff] %vm671, %v634
      %1578 = vst.msk [vmem:[#allocation2 + $0x28] sm:$0xff] %vm671, %v636
      %1579 = vst.msk [vmem:[#allocation2 + $0x30] sm:$0xff] %vm671, %v638
      %1580 = vst.msk [vmem:[#allocation2 + $0x38] sm:$0xff] %vm671, %v640
      %1581 = vst.msk [vmem:[#allocation2 + $0x40] sm:$0xff] %vm671, %v642
      %1582 = vst.msk [vmem:[#allocation2 + $0x48] sm:$0xff] %vm671, %v644
      %1583 = vst.msk [vmem:[#allocation2 + $0x50] sm:$0xff] %vm671, %v646
      %1584 = vst.msk [vmem:[#allocation2 + $0x58] sm:$0xff] %vm671, %v648
      %1585 = vst.msk [vmem:[#allocation2 + $0x60] sm:$0xff] %vm671, %v650
      %1586 = vst.msk [vmem:[#allocation2 + $0x68] sm:$0xff] %vm671, %v652
      %1587 = vst.msk [vmem:[#allocation2 + $0x70] sm:$0xff] %vm671, %v654
      %1588 = vst.msk [vmem:[#allocation2 + $0x78] sm:$0xff] %vm671, %v1571
      %v1590 = vunpack.c.l.b16 %v198
      %v1591 = vpack.c.b16 %v1590, %v1590
      %v1593 = vshrl.u32 %v1569, 16
      %v1595 = vshll.u32 %v1569, 16
      %v1597 = vrot.slane %v1595, 1
      %v1598 = vor.u32 %v1593, %v1597
      %v1600 = vshll.u32 %v1591, 16
      %v1602 = vrot.slane %v1600, 1
      %v1603 = vsel %vm360, %v1598, %v1602
      %1604 = vrot.lane.b32.xlu0 %v1603, 24
      %v1605 = vpop.permute.xlu0 %1604
      %1607 = vst.msk [vmem:[#allocation2] sm:$0xff] %vm751, %v706
      %1608 = vst.msk [vmem:[#allocation2 + $0x8] sm:$0xff] %vm751, %v708
      %1609 = vst.msk [vmem:[#allocation2 + $0x10] sm:$0xff] %vm751, %v710
      %1610 = vst.msk [vmem:[#allocation2 + $0x18] sm:$0xff] %vm751, %v712
      %1611 = vst.msk [vmem:[#allocation2 + $0x20] sm:$0xff] %vm751, %v714
      %1612 = vst.msk [vmem:[#allocation2 + $0x28] sm:$0xff] %vm751, %v716
      %1613 = vst.msk [vmem:[#allocation2 + $0x30] sm:$0xff] %vm751, %v718
      %1614 = vst.msk [vmem:[#allocation2 + $0x38] sm:$0xff] %vm751, %v720
      %1615 = vst.msk [vmem:[#allocation2 + $0x40] sm:$0xff] %vm751, %v722
      %1616 = vst.msk [vmem:[#allocation2 + $0x48] sm:$0xff] %vm751, %v724
      %1617 = vst.msk [vmem:[#allocation2 + $0x50] sm:$0xff] %vm751, %v726
      %1618 = vst.msk [vmem:[#allocation2 + $0x58] sm:$0xff] %vm751, %v728
      %1619 = vst.msk [vmem:[#allocation2 + $0x60] sm:$0xff] %vm751, %v730
      %1620 = vst.msk [vmem:[#allocation2 + $0x68] sm:$0xff] %vm751, %v732
      %1621 = vst.msk [vmem:[#allocation2 + $0x70] sm:$0xff] %vm751, %v734
      %1622 = vst.msk [vmem:[#allocation2 + $0x78] sm:$0xff] %vm751, %v1605
      %v1623 = vld [vmem:[#allocation2] sm:$0xff]
      %v1624 = vld [vmem:[#allocation2 + $0x8] sm:$0xff]
      %v1625 = vld [vmem:[#allocation2 + $0x10] sm:$0xff]
      %v1626 = vld [vmem:[#allocation2 + $0x18] sm:$0xff]
      %v1627 = vld [vmem:[#allocation2 + $0x20] sm:$0xff]
      %v1628 = vld [vmem:[#allocation2 + $0x28] sm:$0xff]
      %v1629 = vld [vmem:[#allocation2 + $0x30] sm:$0xff]
      %v1630 = vld [vmem:[#allocation2 + $0x38] sm:$0xff]
      %v1631 = vld [vmem:[#allocation2 + $0x40] sm:$0xff]
      %v1632 = vld [vmem:[#allocation2 + $0x48] sm:$0xff]
      %v1633 = vld [vmem:[#allocation2 + $0x50] sm:$0xff]
      %v1634 = vld [vmem:[#allocation2 + $0x58] sm:$0xff]
      %v1635 = vld [vmem:[#allocation2 + $0x60] sm:$0xff]
      %v1636 = vld [vmem:[#allocation2 + $0x68] sm:$0xff]
      %v1637 = vld [vmem:[#allocation2 + $0x70] sm:$0xff]
      %v1638 = vld [vmem:[#allocation2 + $0x78] sm:$0xff]
      %s1639 = scalar_lea.vmem %s1, 32
      %v1640 = vld [vmem:[%s1639] sm:$0xf]
      %v1641 = vld [vmem:[%s1639 + $0x4] sm:$0xf]
      %v1642 = vld [vmem:[%s1639 + $0x8] sm:$0xf]
      %v1643 = vld [vmem:[%s1639 + $0xc] sm:$0xf]
      %v1648 = vunpack.c.l.b16 %v1640
      %v1649 = vunpack.c.l.b16 %v1641
      %v1650 = vunpack.c.l.b16 %v1642
      %v1651 = vunpack.c.l.b16 %v1643
      %v1652 = vpack.c.b16 %v1649, %v1648
      %v1653 = vpack.c.b16 %v1651, %v1650
      %v1657 = vsel %vm800, %v1623, 0
      %v1660 = vsel %vm800, %v1624, 0
      %v1663 = vsel %vm800, %v1625, 0
      %v1666 = vsel %vm800, %v1626, 0
      %v1669 = vsel %vm800, %v1627, 0
      %v1672 = vsel %vm800, %v1628, 0
      %v1675 = vsel %vm800, %v1629, 0
      %v1678 = vsel %vm800, %v1630, 0
      %v1681 = vsel %vm800, %v1631, 0
      %v1684 = vsel %vm800, %v1632, 0
      %v1687 = vsel %vm800, %v1633, 0
      %v1690 = vsel %vm800, %v1634, 0
      %v1693 = vsel %vm800, %v1635, 0
      %v1696 = vsel %vm800, %v1636, 0
      %v1699 = vsel %vm800, %v1637, 0
      %v1702 = vsel %vm800, %v1638, 0
      %1704 = vmatprep.subr.bf16.mxu0 0
      %1705 = vmatpush1.bf16.msra.mxu0 %v1652
      %1706 = vmatprep.subr.bf16.mxu0 0
      %1707 = vmatpush1.bf16.msra.mxu0 %v1653
      %1708 = vmatprep.subr.bf16.mxu0 0
      %1709 = vmatpush1.bf16.msra.mxu0 0
      %1710 = vmatprep.subr.bf16.mxu0 0
      %1711 = vmatpush1.bf16.msra.mxu0 0
      %1712 = vmatprep.subr.bf16.mxu0 0
      %1713 = vmatpush1.bf16.msra.mxu0 0
      %1714 = vmatprep.subr.bf16.mxu0 0
      %1715 = vmatpush1.bf16.msra.mxu0 0
      %1716 = vmatprep.subr.bf16.mxu0 0
      %1717 = vmatpush1.bf16.msra.mxu0 0
      %1718 = vmatprep.subr.bf16.mxu0 0
      %1719 = vmatpush1.bf16.msra.mxu0 0
      %1720 = vmatprep.subr.bf16.mxu0 0
      %1721 = vmatpush1.bf16.msra.mxu0 0
      %1722 = vmatprep.subr.bf16.mxu0 0
      %1723 = vmatpush1.bf16.msra.mxu0 0
      %1724 = vmatprep.subr.bf16.mxu0 0
      %1725 = vmatpush1.bf16.msra.mxu0 0
      %1726 = vmatprep.subr.bf16.mxu0 0
      %1727 = vmatpush1.bf16.msra.mxu0 0
      %1728 = vmatprep.subr.bf16.mxu0 0
      %1729 = vmatpush1.bf16.msra.mxu0 0
      %1730 = vmatprep.subr.bf16.mxu0 0
      %1731 = vmatpush1.bf16.msra.mxu0 0
      %1732 = vmatprep.subr.bf16.mxu0 0
      %1733 = vmatpush1.bf16.msra.mxu0 0
      %1734 = vmatprep.subr.bf16.mxu0 0
      %1735 = vmatpush1.bf16.msra.mxu0 0
      %1736 = vmatprep.mubr.bf16.mxu0 0
      %1737 = vmatmul.mubr.bf16.gmra.mrb[0].mxu0 %v1657
      %v1738 = vpop.f32.mrb[0].mxu0
      %v1739 = vadd.f32 0.0, %v1738
      %v1740 = vpop.f32.mrb[0].mxu0
      %v1741 = vpop.f32.mrb[0].mxu0
      %v1742 = vadd.f32 0.0, %v1741
      %v1743 = vpop.f32.mrb[0].mxu0
      %1744 = vmatprep.mubr.bf16.mxu0 0
      %1745 = vmatmul.mubr.bf16.gmra.mrb[0].mxu0 %v1660
      %v1746 = vpop.f32.mrb[0].mxu0
      %v1747 = vadd.f32 0.0, %v1746
      %v1748 = vpop.f32.mrb[0].mxu0
      %v1749 = vpop.f32.mrb[0].mxu0
      %v1750 = vadd.f32 0.0, %v1749
      %v1751 = vpop.f32.mrb[0].mxu0
      %1752 = vmatprep.mubr.bf16.mxu0 0
      %1753 = vmatmul.mubr.bf16.gmra.mrb[0].mxu0 %v1663
      %v1754 = vpop.f32.mrb[0].mxu0
      %v1755 = vadd.f32 0.0, %v1754
      %v1756 = vpop.f32.mrb[0].mxu0
      %v1757 = vpop.f32.mrb[0].mxu0
      %v1758 = vadd.f32 0.0, %v1757
      %v1759 = vpop.f32.mrb[0].mxu0
      %1760 = vmatprep.mubr.bf16.mxu0 0
      %1761 = vmatmul.mubr.bf16.gmra.mrb[0].mxu0 %v1666
      %v1762 = vpop.f32.mrb[0].mxu0
      %v1763 = vadd.f32 0.0, %v1762
      %v1764 = vpop.f32.mrb[0].mxu0
      %v1765 = vpop.f32.mrb[0].mxu0
      %v1766 = vadd.f32 0.0, %v1765
      %v1767 = vpop.f32.mrb[0].mxu0
      %1768 = vmatprep.mubr.bf16.mxu0 0
      %1769 = vmatmul.mubr.bf16.gmra.mrb[0].mxu0 %v1669
      %v1770 = vpop.f32.mrb[0].mxu0
      %v1771 = vadd.f32 0.0, %v1770
      %v1772 = vpop.f32.mrb[0].mxu0
      %v1773 = vpop.f32.mrb[0].mxu0
      %v1774 = vadd.f32 0.0, %v1773
      %v1775 = vpop.f32.mrb[0].mxu0
      %1776 = vmatprep.mubr.bf16.mxu0 0
      %1777 = vmatmul.mubr.bf16.gmra.mrb[0].mxu0 %v1672
      %v1778 = vpop.f32.mrb[0].mxu0
      %v1779 = vadd.f32 0.0, %v1778
      %v1780 = vpop.f32.mrb[0].mxu0
      %v1781 = vpop.f32.mrb[0].mxu0
      %v1782 = vadd.f32 0.0, %v1781
      %v1783 = vpop.f32.mrb[0].mxu0
      %1784 = vmatprep.mubr.bf16.mxu0 0
      %1785 = vmatmul.mubr.bf16.gmra.mrb[0].mxu0 %v1675
      %v1786 = vpop.f32.mrb[0].mxu0
      %v1787 = vadd.f32 0.0, %v1786
      %v1788 = vpop.f32.mrb[0].mxu0
      %v1789 = vpop.f32.mrb[0].mxu0
      %v1790 = vadd.f32 0.0, %v1789
      %v1791 = vpop.f32.mrb[0].mxu0
      %1792 = vmatprep.mubr.bf16.mxu0 0
      %1793 = vmatmul.mubr.bf16.gmra.mrb[0].mxu0 %v1678
      %v1794 = vpop.f32.mrb[0].mxu0
      %v1795 = vadd.f32 0.0, %v1794
      %v1796 = vpop.f32.mrb[0].mxu0
      %v1797 = vpop.f32.mrb[0].mxu0
      %v1798 = vadd.f32 0.0, %v1797
      %v1799 = vpop.f32.mrb[0].mxu0
      %1800 = vmatprep.mubr.bf16.mxu0 0
      %1801 = vmatmul.mubr.bf16.gmra.mrb[0].mxu0 %v1681
      %v1802 = vpop.f32.mrb[0].mxu0
      %v1803 = vadd.f32 0.0, %v1802
      %v1804 = vpop.f32.mrb[0].mxu0
      %v1805 = vpop.f32.mrb[0].mxu0
      %v1806 = vadd.f32 0.0, %v1805
      %v1807 = vpop.f32.mrb[0].mxu0
      %1808 = vmatprep.mubr.bf16.mxu0 0
      %1809 = vmatmul.mubr.bf16.gmra.mrb[0].mxu0 %v1684
      %v1810 = vpop.f32.mrb[0].mxu0
      %v1811 = vadd.f32 0.0, %v1810
      %v1812 = vpop.f32.mrb[0].mxu0
      %v1813 = vpop.f32.mrb[0].mxu0
      %v1814 = vadd.f32 0.0, %v1813
      %v1815 = vpop.f32.mrb[0].mxu0
      %1816 = vmatprep.mubr.bf16.mxu0 0
      %1817 = vmatmul.mubr.bf16.gmra.mrb[0].mxu0 %v1687
      %v1818 = vpop.f32.mrb[0].mxu0
      %v1819 = vadd.f32 0.0, %v1818
      %v1820 = vpop.f32.mrb[0].mxu0
      %v1821 = vpop.f32.mrb[0].mxu0
      %v1822 = vadd.f32 0.0, %v1821
      %v1823 = vpop.f32.mrb[0].mxu0
      %1824 = vmatprep.mubr.bf16.mxu0 0
      %1825 = vmatmul.mubr.bf16.gmra.mrb[0].mxu0 %v1690
      %v1826 = vpop.f32.mrb[0].mxu0
      %v1827 = vadd.f32 0.0, %v1826
      %v1828 = vpop.f32.mrb[0].mxu0
      %v1829 = vpop.f32.mrb[0].mxu0
      %v1830 = vadd.f32 0.0, %v1829
      %v1831 = vpop.f32.mrb[0].mxu0
      %1832 = vmatprep.mubr.bf16.mxu0 0
      %1833 = vmatmul.mubr.bf16.gmra.mrb[0].mxu0 %v1693
      %v1834 = vpop.f32.mrb[0].mxu0
      %v1835 = vadd.f32 0.0, %v1834
      %v1836 = vpop.f32.mrb[0].mxu0
      %v1837 = vpop.f32.mrb[0].mxu0
      %v1838 = vadd.f32 0.0, %v1837
      %v1839 = vpop.f32.mrb[0].mxu0
      %1840 = vmatprep.mubr.bf16.mxu0 0
      %1841 = vmatmul.mubr.bf16.gmra.mrb[0].mxu0 %v1696
      %v1842 = vpop.f32.mrb[0].mxu0
      %v1843 = vadd.f32 0.0, %v1842
      %v1844 = vpop.f32.mrb[0].mxu0
      %v1845 = vpop.f32.mrb[0].mxu0
      %v1846 = vadd.f32 0.0, %v1845
      %v1847 = vpop.f32.mrb[0].mxu0
      %1848 = vmatprep.mubr.bf16.mxu0 0
      %1849 = vmatmul.mubr.bf16.gmra.mrb[0].mxu0 %v1699
      %v1850 = vpop.f32.mrb[0].mxu0
      %v1851 = vadd.f32 0.0, %v1850
      %v1852 = vpop.f32.mrb[0].mxu0
      %v1853 = vpop.f32.mrb[0].mxu0
      %v1854 = vadd.f32 0.0, %v1853
      %v1855 = vpop.f32.mrb[0].mxu0
      %1856 = vmatprep.mubr.bf16.mxu0 0
      %1857 = vmatmul.mubr.bf16.gmra.mrb[0].mxu0 %v1702
      %v1858 = vpop.f32.mrb[0].mxu0
      %v1859 = vadd.f32 0.0, %v1858
      %v1860 = vpop.f32.mrb[0].mxu0
      %v1861 = vpop.f32.mrb[0].mxu0
      %v1862 = vadd.f32 0.0, %v1861
      %v1863 = vpop.f32.mrb[0].mxu0
      %1864 = vdwg.mxu0
      %1866 = vst.msk [vmem:[%s1026] sm:$0xff] %vm295, %v384
      %1867 = vst.msk [vmem:[%s1026 + $0x8] sm:$0xff] %vm295, %v396
      %1868 = vst.msk [vmem:[%s1026 + $0x10] sm:$0xff] %vm295, %v408
      %1869 = vst.msk [vmem:[%s1026 + $0x18] sm:$0xff] %vm295, %v420
      %1870 = vst.msk [vmem:[%s1026 + $0x20] sm:$0xff] %vm295, %v432
      %1871 = vst.msk [vmem:[%s1026 + $0x28] sm:$0xff] %vm295, %v444
      %1872 = vst.msk [vmem:[%s1026 + $0x30] sm:$0xff] %vm295, %v456
      %1873 = vst.msk [vmem:[%s1026 + $0x38] sm:$0xff] %vm295, %v468
      %1874 = vst.msk [vmem:[%s1026 + $0x40] sm:$0xff] %vm295, %v480
      %1875 = vst.msk [vmem:[%s1026 + $0x48] sm:$0xff] %vm295, %v492
      %1876 = vst.msk [vmem:[%s1026 + $0x50] sm:$0xff] %vm295, %v504
      %1877 = vst.msk [vmem:[%s1026 + $0x58] sm:$0xff] %vm295, %v516
      %1878 = vst.msk [vmem:[%s1026 + $0x60] sm:$0xff] %vm295, %v528
      %1879 = vst.msk [vmem:[%s1026 + $0x68] sm:$0xff] %vm295, %v540
      %1880 = vst.msk [vmem:[%s1026 + $0x70] sm:$0xff] %vm295, %v552
      %1881 = vst.msk [vmem:[%s1026 + $0x78] sm:$0xff] %vm295, %v702
      %1882 = vrot.lane.b32.xlu0 %v1222, 8
      %v1883 = vpop.permute.xlu0 %1882
      %1885 = vst.msk [vmem:[%s1026] sm:$0xff] %vm601, %v1095
      %1886 = vst.msk [vmem:[%s1026 + $0x8] sm:$0xff] %vm601, %v1097
      %1887 = vst.msk [vmem:[%s1026 + $0x10] sm:$0xff] %vm601, %v1099
      %1888 = vst.msk [vmem:[%s1026 + $0x18] sm:$0xff] %vm601, %v1101
      %1889 = vst.msk [vmem:[%s1026 + $0x20] sm:$0xff] %vm601, %v1103
      %1890 = vst.msk [vmem:[%s1026 + $0x28] sm:$0xff] %vm601, %v1105
      %1891 = vst.msk [vmem:[%s1026 + $0x30] sm:$0xff] %vm601, %v1107
      %1892 = vst.msk [vmem:[%s1026 + $0x38] sm:$0xff] %vm601, %v1109
      %1893 = vst.msk [vmem:[%s1026 + $0x40] sm:$0xff] %vm601, %v1111
      %1894 = vst.msk [vmem:[%s1026 + $0x48] sm:$0xff] %vm601, %v1113
      %1895 = vst.msk [vmem:[%s1026 + $0x50] sm:$0xff] %vm601, %v1115
      %1896 = vst.msk [vmem:[%s1026 + $0x58] sm:$0xff] %vm601, %v1117
      %1897 = vst.msk [vmem:[%s1026 + $0x60] sm:$0xff] %vm601, %v1119
      %1898 = vst.msk [vmem:[%s1026 + $0x68] sm:$0xff] %vm601, %v1121
      %1899 = vst.msk [vmem:[%s1026 + $0x70] sm:$0xff] %vm601, %v1123
      %1900 = vst.msk [vmem:[%s1026 + $0x78] sm:$0xff] %vm601, %v1883
      %1901 = vrot.lane.b32.xlu0 %v1603, 16
      %v1902 = vpop.permute.xlu0 %1901
      %1904 = vst.msk [vmem:[%s1026] sm:$0xff] %vm671, %v1159
      %1905 = vst.msk [vmem:[%s1026 + $0x8] sm:$0xff] %vm671, %v1161
      %1906 = vst.msk [vmem:[%s1026 + $0x10] sm:$0xff] %vm671, %v1163
      %1907 = vst.msk [vmem:[%s1026 + $0x18] sm:$0xff] %vm671, %v1165
      %1908 = vst.msk [vmem:[%s1026 + $0x20] sm:$0xff] %vm671, %v1167
      %1909 = vst.msk [vmem:[%s1026 + $0x28] sm:$0xff] %vm671, %v1169
      %1910 = vst.msk [vmem:[%s1026 + $0x30] sm:$0xff] %vm671, %v1171
      %1911 = vst.msk [vmem:[%s1026 + $0x38] sm:$0xff] %vm671, %v1173
      %1912 = vst.msk [vmem:[%s1026 + $0x40] sm:$0xff] %vm671, %v1175
      %1913 = vst.msk [vmem:[%s1026 + $0x48] sm:$0xff] %vm671, %v1177
      %1914 = vst.msk [vmem:[%s1026 + $0x50] sm:$0xff] %vm671, %v1179
      %1915 = vst.msk [vmem:[%s1026 + $0x58] sm:$0xff] %vm671, %v1181
      %1916 = vst.msk [vmem:[%s1026 + $0x60] sm:$0xff] %vm671, %v1183
      %1917 = vst.msk [vmem:[%s1026 + $0x68] sm:$0xff] %vm671, %v1185
      %1918 = vst.msk [vmem:[%s1026 + $0x70] sm:$0xff] %vm671, %v1187
      %1919 = vst.msk [vmem:[%s1026 + $0x78] sm:$0xff] %vm671, %v1902
      %v1920 = vrot.slane %v1569, 1
      %v1921 = vrot.slane %v1591, 1
      %v1922 = vsel %vm1043, %v1920, %v1921
      %1923 = vrot.lane.b32.xlu0 %v1922, 24
      %v1924 = vpop.permute.xlu0 %1923
      %1926 = vst.msk [vmem:[%s1026] sm:$0xff] %vm751, %v1226
      %1927 = vst.msk [vmem:[%s1026 + $0x8] sm:$0xff] %vm751, %v1228
      %1928 = vst.msk [vmem:[%s1026 + $0x10] sm:$0xff] %vm751, %v1230
      %1929 = vst.msk [vmem:[%s1026 + $0x18] sm:$0xff] %vm751, %v1232
      %1930 = vst.msk [vmem:[%s1026 + $0x20] sm:$0xff] %vm751, %v1234
      %1931 = vst.msk [vmem:[%s1026 + $0x28] sm:$0xff] %vm751, %v1236
      %1932 = vst.msk [vmem:[%s1026 + $0x30] sm:$0xff] %vm751, %v1238
      %1933 = vst.msk [vmem:[%s1026 + $0x38] sm:$0xff] %vm751, %v1240
      %1934 = vst.msk [vmem:[%s1026 + $0x40] sm:$0xff] %vm751, %v1242
      %1935 = vst.msk [vmem:[%s1026 + $0x48] sm:$0xff] %vm751, %v1244
      %1936 = vst.msk [vmem:[%s1026 + $0x50] sm:$0xff] %vm751, %v1246
      %1937 = vst.msk [vmem:[%s1026 + $0x58] sm:$0xff] %vm751, %v1248
      %1938 = vst.msk [vmem:[%s1026 + $0x60] sm:$0xff] %vm751, %v1250
      %1939 = vst.msk [vmem:[%s1026 + $0x68] sm:$0xff] %vm751, %v1252
      %1940 = vst.msk [vmem:[%s1026 + $0x70] sm:$0xff] %vm751, %v1254
      %1941 = vst.msk [vmem:[%s1026 + $0x78] sm:$0xff] %vm751, %v1924
      %v1942 = vld [vmem:[%s1026] sm:$0xff]
      %v1943 = vld [vmem:[%s1026 + $0x8] sm:$0xff]
      %v1944 = vld [vmem:[%s1026 + $0x10] sm:$0xff]
      %v1945 = vld [vmem:[%s1026 + $0x18] sm:$0xff]
      %v1946 = vld [vmem:[%s1026 + $0x20] sm:$0xff]
      %v1947 = vld [vmem:[%s1026 + $0x28] sm:$0xff]
      %v1948 = vld [vmem:[%s1026 + $0x30] sm:$0xff]
      %v1949 = vld [vmem:[%s1026 + $0x38] sm:$0xff]
      %v1950 = vld [vmem:[%s1026 + $0x40] sm:$0xff]
      %v1951 = vld [vmem:[%s1026 + $0x48] sm:$0xff]
      %v1952 = vld [vmem:[%s1026 + $0x50] sm:$0xff]
      %v1953 = vld [vmem:[%s1026 + $0x58] sm:$0xff]
      %v1954 = vld [vmem:[%s1026 + $0x60] sm:$0xff]
      %v1955 = vld [vmem:[%s1026 + $0x68] sm:$0xff]
      %v1956 = vld [vmem:[%s1026 + $0x70] sm:$0xff]
      %v1957 = vld [vmem:[%s1026 + $0x78] sm:$0xff]
      %s1958 = scalar_lea.vmem %s1, 48
      %v1959 = vld [vmem:[%s1958] sm:$0xf]
      %v1960 = vld [vmem:[%s1958 + $0x4] sm:$0xf]
      %v1961 = vld [vmem:[%s1958 + $0x8] sm:$0xf]
      %v1962 = vld [vmem:[%s1958 + $0xc] sm:$0xf]
      %v1967 = vunpack.c.l.b16 %v1959
      %v1968 = vunpack.c.l.b16 %v1960
      %v1969 = vunpack.c.l.b16 %v1961
      %v1970 = vunpack.c.l.b16 %v1962
      %v1971 = vpack.c.b16 %v1968, %v1967
      %v1972 = vpack.c.b16 %v1970, %v1969
      %v1976 = vsel %vm800, %v1942, 0
      %v1979 = vsel %vm800, %v1943, 0
      %v1982 = vsel %vm800, %v1944, 0
      %v1985 = vsel %vm800, %v1945, 0
      %v1988 = vsel %vm800, %v1946, 0
      %v1991 = vsel %vm800, %v1947, 0
      %v1994 = vsel %vm800, %v1948, 0
      %v1997 = vsel %vm800, %v1949, 0
      %v2000 = vsel %vm800, %v1950, 0
      %v2003 = vsel %vm800, %v1951, 0
      %v2006 = vsel %vm800, %v1952, 0
      %v2009 = vsel %vm800, %v1953, 0
      %v2012 = vsel %vm800, %v1954, 0
      %v2015 = vsel %vm800, %v1955, 0
      %v2018 = vsel %vm800, %v1956, 0
      %v2021 = vsel %vm800, %v1957, 0
      %2023 = vmatprep.subr.bf16.mxu0 0
      %2024 = vmatpush1.bf16.msra.mxu0 %v1971
      %2025 = vmatprep.subr.bf16.mxu0 0
      %2026 = vmatpush1.bf16.msra.mxu0 %v1972
      %2027 = vmatprep.subr.bf16.mxu0 0
      %2028 = vmatpush1.bf16.msra.mxu0 0
      %2029 = vmatprep.subr.bf16.mxu0 0
      %2030 = vmatpush1.bf16.msra.mxu0 0
      %2031 = vmatprep.subr.bf16.mxu0 0
      %2032 = vmatpush1.bf16.msra.mxu0 0
      %2033 = vmatprep.subr.bf16.mxu0 0
      %2034 = vmatpush1.bf16.msra.mxu0 0
      %2035 = vmatprep.subr.bf16.mxu0 0
      %2036 = vmatpush1.bf16.msra.mxu0 0
      %2037 = vmatprep.subr.bf16.mxu0 0
      %2038 = vmatpush1.bf16.msra.mxu0 0
      %2039 = vmatprep.subr.bf16.mxu0 0
      %2040 = vmatpush1.bf16.msra.mxu0 0
      %2041 = vmatprep.subr.bf16.mxu0 0
      %2042 = vmatpush1.bf16.msra.mxu0 0
      %2043 = vmatprep.subr.bf16.mxu0 0
      %2044 = vmatpush1.bf16.msra.mxu0 0
      %2045 = vmatprep.subr.bf16.mxu0 0
      %2046 = vmatpush1.bf16.msra.mxu0 0
      %2047 = vmatprep.subr.bf16.mxu0 0
      %2048 = vmatpush1.bf16.msra.mxu0 0
      %2049 = vmatprep.subr.bf16.mxu0 0
      %2050 = vmatpush1.bf16.msra.mxu0 0
      %2051 = vmatprep.subr.bf16.mxu0 0
      %2052 = vmatpush1.bf16.msra.mxu0 0
      %2053 = vmatprep.subr.bf16.mxu0 0
      %2054 = vmatpush1.bf16.msra.mxu0 0
      %2055 = vmatprep.mubr.bf16.mxu0 0
      %2056 = vmatmul.mubr.bf16.gmra.mrb[0].mxu0 %v1976
      %v2057 = vpop.f32.mrb[0].mxu0
      %v2058 = vadd.f32 0.0, %v2057
      %v2059 = vpop.f32.mrb[0].mxu0
      %v2060 = vpop.f32.mrb[0].mxu0
      %v2061 = vadd.f32 0.0, %v2060
      %v2062 = vpop.f32.mrb[0].mxu0
      %2063 = vmatprep.mubr.bf16.mxu0 0
      %2064 = vmatmul.mubr.bf16.gmra.mrb[0].mxu0 %v1979
      %v2065 = vpop.f32.mrb[0].mxu0
      %v2066 = vadd.f32 0.0, %v2065
      %v2067 = vpop.f32.mrb[0].mxu0
      %v2068 = vpop.f32.mrb[0].mxu0
      %v2069 = vadd.f32 0.0, %v2068
      %v2070 = vpop.f32.mrb[0].mxu0
      %2071 = vmatprep.mubr.bf16.mxu0 0
      %2072 = vmatmul.mubr.bf16.gmra.mrb[0].mxu0 %v1982
      %v2073 = vpop.f32.mrb[0].mxu0
      %v2074 = vadd.f32 0.0, %v2073
      %v2075 = vpop.f32.mrb[0].mxu0
      %v2076 = vpop.f32.mrb[0].mxu0
      %v2077 = vadd.f32 0.0, %v2076
      %v2078 = vpop.f32.mrb[0].mxu0
      %2079 = vmatprep.mubr.bf16.mxu0 0
      %2080 = vmatmul.mubr.bf16.gmra.mrb[0].mxu0 %v1985
      %v2081 = vpop.f32.mrb[0].mxu0
      %v2082 = vadd.f32 0.0, %v2081
      %v2083 = vpop.f32.mrb[0].mxu0
      %v2084 = vpop.f32.mrb[0].mxu0
      %v2085 = vadd.f32 0.0, %v2084
      %v2086 = vpop.f32.mrb[0].mxu0
      %2087 = vmatprep.mubr.bf16.mxu0 0
      %2088 = vmatmul.mubr.bf16.gmra.mrb[0].mxu0 %v1988
      %v2089 = vpop.f32.mrb[0].mxu0
      %v2090 = vadd.f32 0.0, %v2089
      %v2091 = vpop.f32.mrb[0].mxu0
      %v2092 = vpop.f32.mrb[0].mxu0
      %v2093 = vadd.f32 0.0, %v2092
      %v2094 = vpop.f32.mrb[0].mxu0
      %2095 = vmatprep.mubr.bf16.mxu0 0
      %2096 = vmatmul.mubr.bf16.gmra.mrb[0].mxu0 %v1991
      %v2097 = vpop.f32.mrb[0].mxu0
      %v2098 = vadd.f32 0.0, %v2097
      %v2099 = vpop.f32.mrb[0].mxu0
      %v2100 = vpop.f32.mrb[0].mxu0
      %v2101 = vadd.f32 0.0, %v2100
      %v2102 = vpop.f32.mrb[0].mxu0
      %2103 = vmatprep.mubr.bf16.mxu0 0
      %2104 = vmatmul.mubr.bf16.gmra.mrb[0].mxu0 %v1994
      %v2105 = vpop.f32.mrb[0].mxu0
      %v2106 = vadd.f32 0.0, %v2105
      %v2107 = vpop.f32.mrb[0].mxu0
      %v2108 = vpop.f32.mrb[0].mxu0
      %v2109 = vadd.f32 0.0, %v2108
      %v2110 = vpop.f32.mrb[0].mxu0
      %2111 = vmatprep.mubr.bf16.mxu0 0
      %2112 = vmatmul.mubr.bf16.gmra.mrb[0].mxu0 %v1997
      %v2113 = vpop.f32.mrb[0].mxu0
      %v2114 = vadd.f32 0.0, %v2113
      %v2115 = vpop.f32.mrb[0].mxu0
      %v2116 = vpop.f32.mrb[0].mxu0
      %v2117 = vadd.f32 0.0, %v2116
      %v2118 = vpop.f32.mrb[0].mxu0
      %2119 = vmatprep.mubr.bf16.mxu0 0
      %2120 = vmatmul.mubr.bf16.gmra.mrb[0].mxu0 %v2000
      %v2121 = vpop.f32.mrb[0].mxu0
      %v2122 = vadd.f32 0.0, %v2121
      %v2123 = vpop.f32.mrb[0].mxu0
      %v2124 = vpop.f32.mrb[0].mxu0
      %v2125 = vadd.f32 0.0, %v2124
      %v2126 = vpop.f32.mrb[0].mxu0
      %2127 = vmatprep.mubr.bf16.mxu0 0
      %2128 = vmatmul.mubr.bf16.gmra.mrb[0].mxu0 %v2003
      %v2129 = vpop.f32.mrb[0].mxu0
      %v2130 = vadd.f32 0.0, %v2129
      %v2131 = vpop.f32.mrb[0].mxu0
      %v2132 = vpop.f32.mrb[0].mxu0
      %v2133 = vadd.f32 0.0, %v2132
      %v2134 = vpop.f32.mrb[0].mxu0
      %2135 = vmatprep.mubr.bf16.mxu0 0
      %2136 = vmatmul.mubr.bf16.gmra.mrb[0].mxu0 %v2006
      %v2137 = vpop.f32.mrb[0].mxu0
      %v2138 = vadd.f32 0.0, %v2137
      %v2139 = vpop.f32.mrb[0].mxu0
      %v2140 = vpop.f32.mrb[0].mxu0
      %v2141 = vadd.f32 0.0, %v2140
      %v2142 = vpop.f32.mrb[0].mxu0
      %2143 = vmatprep.mubr.bf16.mxu0 0
      %2144 = vmatmul.mubr.bf16.gmra.mrb[0].mxu0 %v2009
      %v2145 = vpop.f32.mrb[0].mxu0
      %v2146 = vadd.f32 0.0, %v2145
      %v2147 = vpop.f32.mrb[0].mxu0
      %v2148 = vpop.f32.mrb[0].mxu0
      %v2149 = vadd.f32 0.0, %v2148
      %v2150 = vpop.f32.mrb[0].mxu0
      %2151 = vmatprep.mubr.bf16.mxu0 0
      %2152 = vmatmul.mubr.bf16.gmra.mrb[0].mxu0 %v2012
      %v2153 = vpop.f32.mrb[0].mxu0
      %v2154 = vadd.f32 0.0, %v2153
      %v2155 = vpop.f32.mrb[0].mxu0
      %v2156 = vpop.f32.mrb[0].mxu0
      %v2157 = vadd.f32 0.0, %v2156
      %v2158 = vpop.f32.mrb[0].mxu0
      %2159 = vmatprep.mubr.bf16.mxu0 0
      %2160 = vmatmul.mubr.bf16.gmra.mrb[0].mxu0 %v2015
      %v2161 = vpop.f32.mrb[0].mxu0
      %v2162 = vadd.f32 0.0, %v2161
      %v2163 = vpop.f32.mrb[0].mxu0
      %v2164 = vpop.f32.mrb[0].mxu0
      %v2165 = vadd.f32 0.0, %v2164
      %v2166 = vpop.f32.mrb[0].mxu0
      %2167 = vmatprep.mubr.bf16.mxu0 0
      %2168 = vmatmul.mubr.bf16.gmra.mrb[0].mxu0 %v2018
      %v2169 = vpop.f32.mrb[0].mxu0
      %v2170 = vadd.f32 0.0, %v2169
      %v2171 = vpop.f32.mrb[0].mxu0
      %v2172 = vpop.f32.mrb[0].mxu0
      %v2173 = vadd.f32 0.0, %v2172
      %v2174 = vpop.f32.mrb[0].mxu0
      %2175 = vmatprep.mubr.bf16.mxu0 0
      %2176 = vmatmul.mubr.bf16.gmra.mrb[0].mxu0 %v2021
      %v2177 = vpop.f32.mrb[0].mxu0
      %v2178 = vadd.f32 0.0, %v2177
      %v2179 = vpop.f32.mrb[0].mxu0
      %v2180 = vpop.f32.mrb[0].mxu0
      %v2181 = vadd.f32 0.0, %v2180
      %v2182 = vpop.f32.mrb[0].mxu0
      %2183 = vdwg.mxu0
      %v2184 = vsel %vm295, %v884, 0.0
      %v2185 = vsel %vm295, %v887, 0.0
      %v2186 = vadd.f32 %v2184, %v2185
      %v2187 = vsel %vm295, %v892, 0.0
      %v2188 = vadd.f32 %v2186, %v2187
      %v2189 = vsel %vm295, %v895, 0.0
      %v2190 = vadd.f32 %v2188, %v2189
      %v2191 = vsel %vm295, %v900, 0.0
      %v2192 = vadd.f32 %v2190, %v2191
      %v2193 = vsel %vm295, %v903, 0.0
      %v2194 = vadd.f32 %v2192, %v2193
      %v2195 = vsel %vm295, %v908, 0.0
      %v2196 = vadd.f32 %v2194, %v2195
      %v2197 = vsel %vm295, %v911, 0.0
      %v2198 = vadd.f32 %v2196, %v2197
      %v2199 = vsel %vm295, %v916, 0.0
      %v2200 = vadd.f32 %v2198, %v2199
      %v2201 = vsel %vm295, %v919, 0.0
      %v2202 = vadd.f32 %v2200, %v2201
      %v2203 = vsel %vm295, %v924, 0.0
      %v2204 = vadd.f32 %v2202, %v2203
      %v2205 = vsel %vm295, %v927, 0.0
      %v2206 = vadd.f32 %v2204, %v2205
      %v2207 = vsel %vm295, %v932, 0.0
      %v2208 = vadd.f32 %v2206, %v2207
      %v2209 = vsel %vm295, %v935, 0.0
      %v2210 = vadd.f32 %v2208, %v2209
      %v2211 = vsel %vm295, %v940, 0.0
      %v2212 = vadd.f32 %v2210, %v2211
      %v2213 = vsel %vm295, %v943, 0.0
      %v2214 = vadd.f32 %v2212, %v2213
      %v2215 = vsel %vm295, %v948, 0.0
      %v2216 = vadd.f32 %v2214, %v2215
      %v2217 = vsel %vm295, %v951, 0.0
      %v2218 = vadd.f32 %v2216, %v2217
      %v2219 = vsel %vm295, %v956, 0.0
      %v2220 = vadd.f32 %v2218, %v2219
      %v2221 = vsel %vm295, %v959, 0.0
      %v2222 = vadd.f32 %v2220, %v2221
      %v2223 = vsel %vm295, %v964, 0.0
      %v2224 = vadd.f32 %v2222, %v2223
      %v2225 = vsel %vm295, %v967, 0.0
      %v2226 = vadd.f32 %v2224, %v2225
      %v2227 = vsel %vm295, %v972, 0.0
      %v2228 = vadd.f32 %v2226, %v2227
      %v2229 = vsel %vm295, %v975, 0.0
      %v2230 = vadd.f32 %v2228, %v2229
      %v2231 = vsel %vm295, %v980, 0.0
      %v2232 = vadd.f32 %v2230, %v2231
      %v2233 = vsel %vm295, %v983, 0.0
      %v2234 = vadd.f32 %v2232, %v2233
      %v2235 = vsel %vm295, %v988, 0.0
      %v2236 = vadd.f32 %v2234, %v2235
      %v2237 = vsel %vm295, %v991, 0.0
      %v2238 = vadd.f32 %v2236, %v2237
      %v2239 = vsel %vm295, %v996, 0.0
      %v2240 = vadd.f32 %v2238, %v2239
      %v2241 = vsel %vm295, %v999, 0.0
      %v2242 = vadd.f32 %v2240, %v2241
      %v2243 = vsel %vm295, %v1004, 0.0
      %v2244 = vadd.f32 %v2242, %v2243
      %v2245 = vsel %vm295, %v1007, 0.0
      %v2246 = vadd.f32 %v2244, %v2245
      %v2247 = vrot.slane %v2246, 4
      %v2248 = vadd.f32 %v2246, %v2247
      %v2249 = vrot.slane %v2248, 2
      %v2250 = vadd.f32 %v2248, %v2249
      %v2251 = vrot.slane %v2250, 1
      %v2252 = vadd.f32 %v2250, %v2251
      %v2253 = vadd.f32 %v2252, 0.0
      %v2254 = vsel %vm295, %v1403, 0.0
      %v2255 = vsel %vm295, %v1406, 0.0
      %v2256 = vadd.f32 %v2254, %v2255
      %v2257 = vsel %vm295, %v1411, 0.0
      %v2258 = vadd.f32 %v2256, %v2257
      %v2259 = vsel %vm295, %v1414, 0.0
      %v2260 = vadd.f32 %v2258, %v2259
      %v2261 = vsel %vm295, %v1419, 0.0
      %v2262 = vadd.f32 %v2260, %v2261
      %v2263 = vsel %vm295, %v1422, 0.0
      %v2264 = vadd.f32 %v2262, %v2263
      %v2265 = vsel %vm295, %v1427, 0.0
      %v2266 = vadd.f32 %v2264, %v2265
      %v2267 = vsel %vm295, %v1430, 0.0
      %v2268 = vadd.f32 %v2266, %v2267
      %v2269 = vsel %vm295, %v1435, 0.0
      %v2270 = vadd.f32 %v2268, %v2269
      %v2271 = vsel %vm295, %v1438, 0.0
      %v2272 = vadd.f32 %v2270, %v2271
      %v2273 = vsel %vm295, %v1443, 0.0
      %v2274 = vadd.f32 %v2272, %v2273
      %v2275 = vsel %vm295, %v1446, 0.0
      %v2276 = vadd.f32 %v2274, %v2275
      %v2277 = vsel %vm295, %v1451, 0.0
      %v2278 = vadd.f32 %v2276, %v2277
      %v2279 = vsel %vm295, %v1454, 0.0
      %v2280 = vadd.f32 %v2278, %v2279
      %v2281 = vsel %vm295, %v1459, 0.0
      %v2282 = vadd.f32 %v2280, %v2281
      %v2283 = vsel %vm295, %v1462, 0.0
      %v2284 = vadd.f32 %v2282, %v2283
      %v2285 = vsel %vm295, %v1467, 0.0
      %v2286 = vadd.f32 %v2284, %v2285
      %v2287 = vsel %vm295, %v1470, 0.0
      %v2288 = vadd.f32 %v2286, %v2287
      %v2289 = vsel %vm295, %v1475, 0.0
      %v2290 = vadd.f32 %v2288, %v2289
      %v2291 = vsel %vm295, %v1478, 0.0
      %v2292 = vadd.f32 %v2290, %v2291
      %v2293 = vsel %vm295, %v1483, 0.0
      %v2294 = vadd.f32 %v2292, %v2293
      %v2295 = vsel %vm295, %v1486, 0.0
      %v2296 = vadd.f32 %v2294, %v2295
      %v2297 = vsel %vm295, %v1491, 0.0
      %v2298 = vadd.f32 %v2296, %v2297
      %v2299 = vsel %vm295, %v1494, 0.0
      %v2300 = vadd.f32 %v2298, %v2299
      %v2301 = vsel %vm295, %v1499, 0.0
      %v2302 = vadd.f32 %v2300, %v2301
      %v2303 = vsel %vm295, %v1502, 0.0
      %v2304 = vadd.f32 %v2302, %v2303
      %v2305 = vsel %vm295, %v1507, 0.0
      %v2306 = vadd.f32 %v2304, %v2305
      %v2307 = vsel %vm295, %v1510, 0.0
      %v2308 = vadd.f32 %v2306, %v2307
      %v2309 = vsel %vm295, %v1515, 0.0
      %v2310 = vadd.f32 %v2308, %v2309
      %v2311 = vsel %vm295, %v1518, 0.0
      %v2312 = vadd.f32 %v2310, %v2311
      %v2313 = vsel %vm295, %v1523, 0.0
      %v2314 = vadd.f32 %v2312, %v2313
      %v2315 = vsel %vm295, %v1526, 0.0
      %v2316 = vadd.f32 %v2314, %v2315
      %v2317 = vrot.slane %v2316, 4
      %v2318 = vadd.f32 %v2316, %v2317
      %v2319 = vrot.slane %v2318, 2
      %v2320 = vadd.f32 %v2318, %v2319
      %v2321 = vrot.slane %v2320, 1
      %v2322 = vadd.f32 %v2320, %v2321
      %v2323 = vadd.f32 %v2253, %v2322
      %v2324 = vsel %vm295, %v1739, 0.0
      %v2325 = vsel %vm295, %v1742, 0.0
      %v2326 = vadd.f32 %v2324, %v2325
      %v2327 = vsel %vm295, %v1747, 0.0
      %v2328 = vadd.f32 %v2326, %v2327
      %v2329 = vsel %vm295, %v1750, 0.0
      %v2330 = vadd.f32 %v2328, %v2329
      %v2331 = vsel %vm295, %v1755, 0.0
      %v2332 = vadd.f32 %v2330, %v2331
      %v2333 = vsel %vm295, %v1758, 0.0
      %v2334 = vadd.f32 %v2332, %v2333
      %v2335 = vsel %vm295, %v1763, 0.0
      %v2336 = vadd.f32 %v2334, %v2335
      %v2337 = vsel %vm295, %v1766, 0.0
      %v2338 = vadd.f32 %v2336, %v2337
      %v2339 = vsel %vm295, %v1771, 0.0
      %v2340 = vadd.f32 %v2338, %v2339
      %v2341 = vsel %vm295, %v1774, 0.0
      %v2342 = vadd.f32 %v2340, %v2341
      %v2343 = vsel %vm295, %v1779, 0.0
      %v2344 = vadd.f32 %v2342, %v2343
      %v2345 = vsel %vm295, %v1782, 0.0
      %v2346 = vadd.f32 %v2344, %v2345
      %v2347 = vsel %vm295, %v1787, 0.0
      %v2348 = vadd.f32 %v2346, %v2347
      %v2349 = vsel %vm295, %v1790, 0.0
      %v2350 = vadd.f32 %v2348, %v2349
      %v2351 = vsel %vm295, %v1795, 0.0
      %v2352 = vadd.f32 %v2350, %v2351
      %v2353 = vsel %vm295, %v1798, 0.0
      %v2354 = vadd.f32 %v2352, %v2353
      %v2355 = vsel %vm295, %v1803, 0.0
      %v2356 = vadd.f32 %v2354, %v2355
      %v2357 = vsel %vm295, %v1806, 0.0
      %v2358 = vadd.f32 %v2356, %v2357
      %v2359 = vsel %vm295, %v1811, 0.0
      %v2360 = vadd.f32 %v2358, %v2359
      %v2361 = vsel %vm295, %v1814, 0.0
      %v2362 = vadd.f32 %v2360, %v2361
      %v2363 = vsel %vm295, %v1819, 0.0
      %v2364 = vadd.f32 %v2362, %v2363
      %v2365 = vsel %vm295, %v1822, 0.0
      %v2366 = vadd.f32 %v2364, %v2365
      %v2367 = vsel %vm295, %v1827, 0.0
      %v2368 = vadd.f32 %v2366, %v2367
      %v2369 = vsel %vm295, %v1830, 0.0
      %v2370 = vadd.f32 %v2368, %v2369
      %v2371 = vsel %vm295, %v1835, 0.0
      %v2372 = vadd.f32 %v2370, %v2371
      %v2373 = vsel %vm295, %v1838, 0.0
      %v2374 = vadd.f32 %v2372, %v2373
      %v2375 = vsel %vm295, %v1843, 0.0
      %v2376 = vadd.f32 %v2374, %v2375
      %v2377 = vsel %vm295, %v1846, 0.0
      %v2378 = vadd.f32 %v2376, %v2377
      %v2379 = vsel %vm295, %v1851, 0.0
      %v2380 = vadd.f32 %v2378, %v2379
      %v2381 = vsel %vm295, %v1854, 0.0
      %v2382 = vadd.f32 %v2380, %v2381
      %v2383 = vsel %vm295, %v1859, 0.0
      %v2384 = vadd.f32 %v2382, %v2383
      %v2385 = vsel %vm295, %v1862, 0.0
      %v2386 = vadd.f32 %v2384, %v2385
      %v2387 = vrot.slane %v2386, 4
      %v2388 = vadd.f32 %v2386, %v2387
      %v2389 = vrot.slane %v2388, 2
      %v2390 = vadd.f32 %v2388, %v2389
      %v2391 = vrot.slane %v2390, 1
      %v2392 = vadd.f32 %v2390, %v2391
      %v2393 = vadd.f32 %v2323, %v2392
      %v2394 = vsel %vm295, %v2058, 0.0
      %v2395 = vsel %vm295, %v2061, 0.0
      %v2396 = vadd.f32 %v2394, %v2395
      %v2397 = vsel %vm295, %v2066, 0.0
      %v2398 = vadd.f32 %v2396, %v2397
      %v2399 = vsel %vm295, %v2069, 0.0
      %v2400 = vadd.f32 %v2398, %v2399
      %v2401 = vsel %vm295, %v2074, 0.0
      %v2402 = vadd.f32 %v2400, %v2401
      %v2403 = vsel %vm295, %v2077, 0.0
      %v2404 = vadd.f32 %v2402, %v2403
      %v2405 = vsel %vm295, %v2082, 0.0
      %v2406 = vadd.f32 %v2404, %v2405
      %v2407 = vsel %vm295, %v2085, 0.0
      %v2408 = vadd.f32 %v2406, %v2407
      %v2409 = vsel %vm295, %v2090, 0.0
      %v2410 = vadd.f32 %v2408, %v2409
      %v2411 = vsel %vm295, %v2093, 0.0
      %v2412 = vadd.f32 %v2410, %v2411
      %v2413 = vsel %vm295, %v2098, 0.0
      %v2414 = vadd.f32 %v2412, %v2413
      %v2415 = vsel %vm295, %v2101, 0.0
      %v2416 = vadd.f32 %v2414, %v2415
      %v2417 = vsel %vm295, %v2106, 0.0
      %v2418 = vadd.f32 %v2416, %v2417
      %v2419 = vsel %vm295, %v2109, 0.0
      %v2420 = vadd.f32 %v2418, %v2419
      %v2421 = vsel %vm295, %v2114, 0.0
      %v2422 = vadd.f32 %v2420, %v2421
      %v2423 = vsel %vm295, %v2117, 0.0
      %v2424 = vadd.f32 %v2422, %v2423
      %v2425 = vsel %vm295, %v2122, 0.0
      %v2426 = vadd.f32 %v2424, %v2425
      %v2427 = vsel %vm295, %v2125, 0.0
      %v2428 = vadd.f32 %v2426, %v2427
      %v2429 = vsel %vm295, %v2130, 0.0
      %v2430 = vadd.f32 %v2428, %v2429
      %v2431 = vsel %vm295, %v2133, 0.0
      %v2432 = vadd.f32 %v2430, %v2431
      %v2433 = vsel %vm295, %v2138, 0.0
      %v2434 = vadd.f32 %v2432, %v2433
      %v2435 = vsel %vm295, %v2141, 0.0
      %v2436 = vadd.f32 %v2434, %v2435
      %v2437 = vsel %vm295, %v2146, 0.0
      %v2438 = vadd.f32 %v2436, %v2437
      %v2439 = vsel %vm295, %v2149, 0.0
      %v2440 = vadd.f32 %v2438, %v2439
      %v2441 = vsel %vm295, %v2154, 0.0
      %v2442 = vadd.f32 %v2440, %v2441
      %v2443 = vsel %vm295, %v2157, 0.0
      %v2444 = vadd.f32 %v2442, %v2443
      %v2445 = vsel %vm295, %v2162, 0.0
      %v2446 = vadd.f32 %v2444, %v2445
      %v2447 = vsel %vm295, %v2165, 0.0
      %v2448 = vadd.f32 %v2446, %v2447
      %v2449 = vsel %vm295, %v2170, 0.0
      %v2450 = vadd.f32 %v2448, %v2449
      %v2451 = vsel %vm295, %v2173, 0.0
      %v2452 = vadd.f32 %v2450, %v2451
      %v2453 = vsel %vm295, %v2178, 0.0
      %v2454 = vadd.f32 %v2452, %v2453
      %v2455 = vsel %vm295, %v2181, 0.0
      %v2456 = vadd.f32 %v2454, %v2455
      %v2457 = vrot.slane %v2456, 4
      %v2458 = vadd.f32 %v2456, %v2457
      %v2459 = vrot.slane %v2458, 2
      %v2460 = vadd.f32 %v2458, %v2459
      %v2461 = vrot.slane %v2460, 1
      %v2462 = vadd.f32 %v2460, %v2461
      %v2463 = vadd.f32 %v2393, %v2462
      %v2464 = vrcp.pop 1024.0
      %v2465 = vmul.f32 %v2463, %v2464
      %v2466 = vsub.f32 %v884, %v2465
      %v2467 = vsub.f32 %v887, %v2465
      %v2468 = vsub.f32 %v892, %v2465
      %v2469 = vsub.f32 %v895, %v2465
      %v2470 = vsub.f32 %v900, %v2465
      %v2471 = vsub.f32 %v903, %v2465
      %v2472 = vsub.f32 %v908, %v2465
      %v2473 = vsub.f32 %v911, %v2465
      %v2474 = vsub.f32 %v916, %v2465
      %v2475 = vsub.f32 %v919, %v2465
      %v2476 = vsub.f32 %v924, %v2465
      %v2477 = vsub.f32 %v927, %v2465
      %v2478 = vsub.f32 %v932, %v2465
      %v2479 = vsub.f32 %v935, %v2465
      %v2480 = vsub.f32 %v940, %v2465
      %v2481 = vsub.f32 %v943, %v2465
      %v2482 = vsub.f32 %v948, %v2465
      %v2483 = vsub.f32 %v951, %v2465
      %v2484 = vsub.f32 %v956, %v2465
      %v2485 = vsub.f32 %v959, %v2465
      %v2486 = vsub.f32 %v964, %v2465
      %v2487 = vsub.f32 %v967, %v2465
      %v2488 = vsub.f32 %v972, %v2465
      %v2489 = vsub.f32 %v975, %v2465
      %v2490 = vsub.f32 %v980, %v2465
      %v2491 = vsub.f32 %v983, %v2465
      %v2492 = vsub.f32 %v988, %v2465
      %v2493 = vsub.f32 %v991, %v2465
      %v2494 = vsub.f32 %v996, %v2465
      %v2495 = vsub.f32 %v999, %v2465
      %v2496 = vsub.f32 %v1004, %v2465
      %v2497 = vsub.f32 %v1007, %v2465
      %v2498 = vmul.f32 %v2466, %v2466
      %v2499 = vmul.f32 %v2467, %v2467
      %v2500 = vmul.f32 %v2468, %v2468
      %v2501 = vmul.f32 %v2469, %v2469
      %v2502 = vmul.f32 %v2470, %v2470
      %v2503 = vmul.f32 %v2471, %v2471
      %v2504 = vmul.f32 %v2472, %v2472
      %v2505 = vmul.f32 %v2473, %v2473
      %v2506 = vmul.f32 %v2474, %v2474
      %v2507 = vmul.f32 %v2475, %v2475
      %v2508 = vmul.f32 %v2476, %v2476
      %v2509 = vmul.f32 %v2477, %v2477
      %v2510 = vmul.f32 %v2478, %v2478
      %v2511 = vmul.f32 %v2479, %v2479
      %v2512 = vmul.f32 %v2480, %v2480
      %v2513 = vmul.f32 %v2481, %v2481
      %v2514 = vmul.f32 %v2482, %v2482
      %v2515 = vmul.f32 %v2483, %v2483
      %v2516 = vmul.f32 %v2484, %v2484
      %v2517 = vmul.f32 %v2485, %v2485
      %v2518 = vmul.f32 %v2486, %v2486
      %v2519 = vmul.f32 %v2487, %v2487
      %v2520 = vmul.f32 %v2488, %v2488
      %v2521 = vmul.f32 %v2489, %v2489
      %v2522 = vmul.f32 %v2490, %v2490
      %v2523 = vmul.f32 %v2491, %v2491
      %v2524 = vmul.f32 %v2492, %v2492
      %v2525 = vmul.f32 %v2493, %v2493
      %v2526 = vmul.f32 %v2494, %v2494
      %v2527 = vmul.f32 %v2495, %v2495
      %v2528 = vmul.f32 %v2496, %v2496
      %v2529 = vmul.f32 %v2497, %v2497
      %v2530 = vsel %vm295, %v2498, 0.0
      %v2531 = vsel %vm295, %v2499, 0.0
      %v2532 = vadd.f32 %v2530, %v2531
      %v2533 = vsel %vm295, %v2500, 0.0
      %v2534 = vadd.f32 %v2532, %v2533
      %v2535 = vsel %vm295, %v2501, 0.0
      %v2536 = vadd.f32 %v2534, %v2535
      %v2537 = vsel %vm295, %v2502, 0.0
      %v2538 = vadd.f32 %v2536, %v2537
      %v2539 = vsel %vm295, %v2503, 0.0
      %v2540 = vadd.f32 %v2538, %v2539
      %v2541 = vsel %vm295, %v2504, 0.0
      %v2542 = vadd.f32 %v2540, %v2541
      %v2543 = vsel %vm295, %v2505, 0.0
      %v2544 = vadd.f32 %v2542, %v2543
      %v2545 = vsel %vm295, %v2506, 0.0
      %v2546 = vadd.f32 %v2544, %v2545
      %v2547 = vsel %vm295, %v2507, 0.0
      %v2548 = vadd.f32 %v2546, %v2547
      %v2549 = vsel %vm295, %v2508, 0.0
      %v2550 = vadd.f32 %v2548, %v2549
      %v2551 = vsel %vm295, %v2509, 0.0
      %v2552 = vadd.f32 %v2550, %v2551
      %v2553 = vsel %vm295, %v2510, 0.0
      %v2554 = vadd.f32 %v2552, %v2553
      %v2555 = vsel %vm295, %v2511, 0.0
      %v2556 = vadd.f32 %v2554, %v2555
      %v2557 = vsel %vm295, %v2512, 0.0
      %v2558 = vadd.f32 %v2556, %v2557
      %v2559 = vsel %vm295, %v2513, 0.0
      %v2560 = vadd.f32 %v2558, %v2559
      %v2561 = vsel %vm295, %v2514, 0.0
      %v2562 = vadd.f32 %v2560, %v2561
      %v2563 = vsel %vm295, %v2515, 0.0
      %v2564 = vadd.f32 %v2562, %v2563
      %v2565 = vsel %vm295, %v2516, 0.0
      %v2566 = vadd.f32 %v2564, %v2565
      %v2567 = vsel %vm295, %v2517, 0.0
      %v2568 = vadd.f32 %v2566, %v2567
      %v2569 = vsel %vm295, %v2518, 0.0
      %v2570 = vadd.f32 %v2568, %v2569
      %v2571 = vsel %vm295, %v2519, 0.0
      %v2572 = vadd.f32 %v2570, %v2571
      %v2573 = vsel %vm295, %v2520, 0.0
      %v2574 = vadd.f32 %v2572, %v2573
      %v2575 = vsel %vm295, %v2521, 0.0
      %v2576 = vadd.f32 %v2574, %v2575
      %v2577 = vsel %vm295, %v2522, 0.0
      %v2578 = vadd.f32 %v2576, %v2577
      %v2579 = vsel %vm295, %v2523, 0.0
      %v2580 = vadd.f32 %v2578, %v2579
      %v2581 = vsel %vm295, %v2524, 0.0
      %v2582 = vadd.f32 %v2580, %v2581
      %v2583 = vsel %vm295, %v2525, 0.0
      %v2584 = vadd.f32 %v2582, %v2583
      %v2585 = vsel %vm295, %v2526, 0.0
      %v2586 = vadd.f32 %v2584, %v2585
      %v2587 = vsel %vm295, %v2527, 0.0
      %v2588 = vadd.f32 %v2586, %v2587
      %v2589 = vsel %vm295, %v2528, 0.0
      %v2590 = vadd.f32 %v2588, %v2589
      %v2591 = vsel %vm295, %v2529, 0.0
      %v2592 = vadd.f32 %v2590, %v2591
      %v2593 = vrot.slane %v2592, 4
      %v2594 = vadd.f32 %v2592, %v2593
      %v2595 = vrot.slane %v2594, 2
      %v2596 = vadd.f32 %v2594, %v2595
      %v2597 = vrot.slane %v2596, 1
      %v2598 = vadd.f32 %v2596, %v2597
      %v2599 = vadd.f32 %v2598, 0.0
      %v2600 = vsub.f32 %v1403, %v2465
      %v2601 = vsub.f32 %v1406, %v2465
      %v2602 = vsub.f32 %v1411, %v2465
      %v2603 = vsub.f32 %v1414, %v2465
      %v2604 = vsub.f32 %v1419, %v2465
      %v2605 = vsub.f32 %v1422, %v2465
      %v2606 = vsub.f32 %v1427, %v2465
      %v2607 = vsub.f32 %v1430, %v2465
      %v2608 = vsub.f32 %v1435, %v2465
      %v2609 = vsub.f32 %v1438, %v2465
      %v2610 = vsub.f32 %v1443, %v2465
      %v2611 = vsub.f32 %v1446, %v2465
      %v2612 = vsub.f32 %v1451, %v2465
      %v2613 = vsub.f32 %v1454, %v2465
      %v2614 = vsub.f32 %v1459, %v2465
      %v2615 = vsub.f32 %v1462, %v2465
      %v2616 = vsub.f32 %v1467, %v2465
      %v2617 = vsub.f32 %v1470, %v2465
      %v2618 = vsub.f32 %v1475, %v2465
      %v2619 = vsub.f32 %v1478, %v2465
      %v2620 = vsub.f32 %v1483, %v2465
      %v2621 = vsub.f32 %v1486, %v2465
      %v2622 = vsub.f32 %v1491, %v2465
      %v2623 = vsub.f32 %v1494, %v2465
      %v2624 = vsub.f32 %v1499, %v2465
      %v2625 = vsub.f32 %v1502, %v2465
      %v2626 = vsub.f32 %v1507, %v2465
      %v2627 = vsub.f32 %v1510, %v2465
      %v2628 = vsub.f32 %v1515, %v2465
      %v2629 = vsub.f32 %v1518, %v2465
      %v2630 = vsub.f32 %v1523, %v2465
      %v2631 = vsub.f32 %v1526, %v2465
      %v2632 = vmul.f32 %v2600, %v2600
      %v2633 = vmul.f32 %v2601, %v2601
      %v2634 = vmul.f32 %v2602, %v2602
      %v2635 = vmul.f32 %v2603, %v2603
      %v2636 = vmul.f32 %v2604, %v2604
      %v2637 = vmul.f32 %v2605, %v2605
      %v2638 = vmul.f32 %v2606, %v2606
      %v2639 = vmul.f32 %v2607, %v2607
      %v2640 = vmul.f32 %v2608, %v2608
      %v2641 = vmul.f32 %v2609, %v2609
      %v2642 = vmul.f32 %v2610, %v2610
      %v2643 = vmul.f32 %v2611, %v2611
      %v2644 = vmul.f32 %v2612, %v2612
      %v2645 = vmul.f32 %v2613, %v2613
      %v2646 = vmul.f32 %v2614, %v2614
      %v2647 = vmul.f32 %v2615, %v2615
      %v2648 = vmul.f32 %v2616, %v2616
      %v2649 = vmul.f32 %v2617, %v2617
      %v2650 = vmul.f32 %v2618, %v2618
      %v2651 = vmul.f32 %v2619, %v2619
      %v2652 = vmul.f32 %v2620, %v2620
      %v2653 = vmul.f32 %v2621, %v2621
      %v2654 = vmul.f32 %v2622, %v2622
      %v2655 = vmul.f32 %v2623, %v2623
      %v2656 = vmul.f32 %v2624, %v2624
      %v2657 = vmul.f32 %v2625, %v2625
      %v2658 = vmul.f32 %v2626, %v2626
      %v2659 = vmul.f32 %v2627, %v2627
      %v2660 = vmul.f32 %v2628, %v2628
      %v2661 = vmul.f32 %v2629, %v2629
      %v2662 = vmul.f32 %v2630, %v2630
      %v2663 = vmul.f32 %v2631, %v2631
      %v2664 = vsel %vm295, %v2632, 0.0
      %v2665 = vsel %vm295, %v2633, 0.0
      %v2666 = vadd.f32 %v2664, %v2665
      %v2667 = vsel %vm295, %v2634, 0.0
      %v2668 = vadd.f32 %v2666, %v2667
      %v2669 = vsel %vm295, %v2635, 0.0
      %v2670 = vadd.f32 %v2668, %v2669
      %v2671 = vsel %vm295, %v2636, 0.0
      %v2672 = vadd.f32 %v2670, %v2671
      %v2673 = vsel %vm295, %v2637, 0.0
      %v2674 = vadd.f32 %v2672, %v2673
      %v2675 = vsel %vm295, %v2638, 0.0
      %v2676 = vadd.f32 %v2674, %v2675
      %v2677 = vsel %vm295, %v2639, 0.0
      %v2678 = vadd.f32 %v2676, %v2677
      %v2679 = vsel %vm295, %v2640, 0.0
      %v2680 = vadd.f32 %v2678, %v2679
      %v2681 = vsel %vm295, %v2641, 0.0
      %v2682 = vadd.f32 %v2680, %v2681
      %v2683 = vsel %vm295, %v2642, 0.0
      %v2684 = vadd.f32 %v2682, %v2683
      %v2685 = vsel %vm295, %v2643, 0.0
      %v2686 = vadd.f32 %v2684, %v2685
      %v2687 = vsel %vm295, %v2644, 0.0
      %v2688 = vadd.f32 %v2686, %v2687
      %v2689 = vsel %vm295, %v2645, 0.0
      %v2690 = vadd.f32 %v2688, %v2689
      %v2691 = vsel %vm295, %v2646, 0.0
      %v2692 = vadd.f32 %v2690, %v2691
      %v2693 = vsel %vm295, %v2647, 0.0
      %v2694 = vadd.f32 %v2692, %v2693
      %v2695 = vsel %vm295, %v2648, 0.0
      %v2696 = vadd.f32 %v2694, %v2695
      %v2697 = vsel %vm295, %v2649, 0.0
      %v2698 = vadd.f32 %v2696, %v2697
      %v2699 = vsel %vm295, %v2650, 0.0
      %v2700 = vadd.f32 %v2698, %v2699
      %v2701 = vsel %vm295, %v2651, 0.0
      %v2702 = vadd.f32 %v2700, %v2701
      %v2703 = vsel %vm295, %v2652, 0.0
      %v2704 = vadd.f32 %v2702, %v2703
      %v2705 = vsel %vm295, %v2653, 0.0
      %v2706 = vadd.f32 %v2704, %v2705
      %v2707 = vsel %vm295, %v2654, 0.0
      %v2708 = vadd.f32 %v2706, %v2707
      %v2709 = vsel %vm295, %v2655, 0.0
      %v2710 = vadd.f32 %v2708, %v2709
      %v2711 = vsel %vm295, %v2656, 0.0
      %v2712 = vadd.f32 %v2710, %v2711
      %v2713 = vsel %vm295, %v2657, 0.0
      %v2714 = vadd.f32 %v2712, %v2713
      %v2715 = vsel %vm295, %v2658, 0.0
      %v2716 = vadd.f32 %v2714, %v2715
      %v2717 = vsel %vm295, %v2659, 0.0
      %v2718 = vadd.f32 %v2716, %v2717
      %v2719 = vsel %vm295, %v2660, 0.0
      %v2720 = vadd.f32 %v2718, %v2719
      %v2721 = vsel %vm295, %v2661, 0.0
      %v2722 = vadd.f32 %v2720, %v2721
      %v2723 = vsel %vm295, %v2662, 0.0
      %v2724 = vadd.f32 %v2722, %v2723
      %v2725 = vsel %vm295, %v2663, 0.0
      %v2726 = vadd.f32 %v2724, %v2725
      %v2727 = vrot.slane %v2726, 4
      %v2728 = vadd.f32 %v2726, %v2727
      %v2729 = vrot.slane %v2728, 2
      %v2730 = vadd.f32 %v2728, %v2729
      %v2731 = vrot.slane %v2730, 1
      %v2732 = vadd.f32 %v2730, %v2731
      %v2733 = vadd.f32 %v2599, %v2732
      %v2734 = vsub.f32 %v1739, %v2465
      %v2735 = vsub.f32 %v1742, %v2465
      %v2736 = vsub.f32 %v1747, %v2465
      %v2737 = vsub.f32 %v1750, %v2465
      %v2738 = vsub.f32 %v1755, %v2465
      %v2739 = vsub.f32 %v1758, %v2465
      %v2740 = vsub.f32 %v1763, %v2465
      %v2741 = vsub.f32 %v1766, %v2465
      %v2742 = vsub.f32 %v1771, %v2465
      %v2743 = vsub.f32 %v1774, %v2465
      %v2744 = vsub.f32 %v1779, %v2465
      %v2745 = vsub.f32 %v1782, %v2465
      %v2746 = vsub.f32 %v1787, %v2465
      %v2747 = vsub.f32 %v1790, %v2465
      %v2748 = vsub.f32 %v1795, %v2465
      %v2749 = vsub.f32 %v1798, %v2465
      %v2750 = vsub.f32 %v1803, %v2465
      %v2751 = vsub.f32 %v1806, %v2465
      %v2752 = vsub.f32 %v1811, %v2465
      %v2753 = vsub.f32 %v1814, %v2465
      %v2754 = vsub.f32 %v1819, %v2465
      %v2755 = vsub.f32 %v1822, %v2465
      %v2756 = vsub.f32 %v1827, %v2465
      %v2757 = vsub.f32 %v1830, %v2465
      %v2758 = vsub.f32 %v1835, %v2465
      %v2759 = vsub.f32 %v1838, %v2465
      %v2760 = vsub.f32 %v1843, %v2465
      %v2761 = vsub.f32 %v1846, %v2465
      %v2762 = vsub.f32 %v1851, %v2465
      %v2763 = vsub.f32 %v1854, %v2465
      %v2764 = vsub.f32 %v1859, %v2465
      %v2765 = vsub.f32 %v1862, %v2465
      %v2766 = vmul.f32 %v2734, %v2734
      %v2767 = vmul.f32 %v2735, %v2735
      %v2768 = vmul.f32 %v2736, %v2736
      %v2769 = vmul.f32 %v2737, %v2737
      %v2770 = vmul.f32 %v2738, %v2738
      %v2771 = vmul.f32 %v2739, %v2739
      %v2772 = vmul.f32 %v2740, %v2740
      %v2773 = vmul.f32 %v2741, %v2741
      %v2774 = vmul.f32 %v2742, %v2742
      %v2775 = vmul.f32 %v2743, %v2743
      %v2776 = vmul.f32 %v2744, %v2744
      %v2777 = vmul.f32 %v2745, %v2745
      %v2778 = vmul.f32 %v2746, %v2746
      %v2779 = vmul.f32 %v2747, %v2747
      %v2780 = vmul.f32 %v2748, %v2748
      %v2781 = vmul.f32 %v2749, %v2749
      %v2782 = vmul.f32 %v2750, %v2750
      %v2783 = vmul.f32 %v2751, %v2751
      %v2784 = vmul.f32 %v2752, %v2752
      %v2785 = vmul.f32 %v2753, %v2753
      %v2786 = vmul.f32 %v2754, %v2754
      %v2787 = vmul.f32 %v2755, %v2755
      %v2788 = vmul.f32 %v2756, %v2756
      %v2789 = vmul.f32 %v2757, %v2757
      %v2790 = vmul.f32 %v2758, %v2758
      %v2791 = vmul.f32 %v2759, %v2759
      %v2792 = vmul.f32 %v2760, %v2760
      %v2793 = vmul.f32 %v2761, %v2761
      %v2794 = vmul.f32 %v2762, %v2762
      %v2795 = vmul.f32 %v2763, %v2763
      %v2796 = vmul.f32 %v2764, %v2764
      %v2797 = vmul.f32 %v2765, %v2765
      %v2798 = vsel %vm295, %v2766, 0.0
      %v2799 = vsel %vm295, %v2767, 0.0
      %v2800 = vadd.f32 %v2798, %v2799
      %v2801 = vsel %vm295, %v2768, 0.0
      %v2802 = vadd.f32 %v2800, %v2801
      %v2803 = vsel %vm295, %v2769, 0.0
      %v2804 = vadd.f32 %v2802, %v2803
      %v2805 = vsel %vm295, %v2770, 0.0
      %v2806 = vadd.f32 %v2804, %v2805
      %v2807 = vsel %vm295, %v2771, 0.0
      %v2808 = vadd.f32 %v2806, %v2807
      %v2809 = vsel %vm295, %v2772, 0.0
      %v2810 = vadd.f32 %v2808, %v2809
      %v2811 = vsel %vm295, %v2773, 0.0
      %v2812 = vadd.f32 %v2810, %v2811
      %v2813 = vsel %vm295, %v2774, 0.0
      %v2814 = vadd.f32 %v2812, %v2813
      %v2815 = vsel %vm295, %v2775, 0.0
      %v2816 = vadd.f32 %v2814, %v2815
      %v2817 = vsel %vm295, %v2776, 0.0
      %v2818 = vadd.f32 %v2816, %v2817
      %v2819 = vsel %vm295, %v2777, 0.0
      %v2820 = vadd.f32 %v2818, %v2819
      %v2821 = vsel %vm295, %v2778, 0.0
      %v2822 = vadd.f32 %v2820, %v2821
      %v2823 = vsel %vm295, %v2779, 0.0
      %v2824 = vadd.f32 %v2822, %v2823
      %v2825 = vsel %vm295, %v2780, 0.0
      %v2826 = vadd.f32 %v2824, %v2825
      %v2827 = vsel %vm295, %v2781, 0.0
      %v2828 = vadd.f32 %v2826, %v2827
      %v2829 = vsel %vm295, %v2782, 0.0
      %v2830 = vadd.f32 %v2828, %v2829
      %v2831 = vsel %vm295, %v2783, 0.0
      %v2832 = vadd.f32 %v2830, %v2831
      %v2833 = vsel %vm295, %v2784, 0.0
      %v2834 = vadd.f32 %v2832, %v2833
      %v2835 = vsel %vm295, %v2785, 0.0
      %v2836 = vadd.f32 %v2834, %v2835
      %v2837 = vsel %vm295, %v2786, 0.0
      %v2838 = vadd.f32 %v2836, %v2837
      %v2839 = vsel %vm295, %v2787, 0.0
      %v2840 = vadd.f32 %v2838, %v2839
      %v2841 = vsel %vm295, %v2788, 0.0
      %v2842 = vadd.f32 %v2840, %v2841
      %v2843 = vsel %vm295, %v2789, 0.0
      %v2844 = vadd.f32 %v2842, %v2843
      %v2845 = vsel %vm295, %v2790, 0.0
      %v2846 = vadd.f32 %v2844, %v2845
      %v2847 = vsel %vm295, %v2791, 0.0
      %v2848 = vadd.f32 %v2846, %v2847
      %v2849 = vsel %vm295, %v2792, 0.0
      %v2850 = vadd.f32 %v2848, %v2849
      %v2851 = vsel %vm295, %v2793, 0.0
      %v2852 = vadd.f32 %v2850, %v2851
      %v2853 = vsel %vm295, %v2794, 0.0
      %v2854 = vadd.f32 %v2852, %v2853
      %v2855 = vsel %vm295, %v2795, 0.0
      %v2856 = vadd.f32 %v2854, %v2855
      %v2857 = vsel %vm295, %v2796, 0.0
      %v2858 = vadd.f32 %v2856, %v2857
      %v2859 = vsel %vm295, %v2797, 0.0
      %v2860 = vadd.f32 %v2858, %v2859
      %v2861 = vrot.slane %v2860, 4
      %v2862 = vadd.f32 %v2860, %v2861
      %v2863 = vrot.slane %v2862, 2
      %v2864 = vadd.f32 %v2862, %v2863
      %v2865 = vrot.slane %v2864, 1
      %v2866 = vadd.f32 %v2864, %v2865
      %v2867 = vadd.f32 %v2733, %v2866
      %v2868 = vsub.f32 %v2058, %v2465
      %v2869 = vsub.f32 %v2061, %v2465
      %v2870 = vsub.f32 %v2066, %v2465
      %v2871 = vsub.f32 %v2069, %v2465
      %v2872 = vsub.f32 %v2074, %v2465
      %v2873 = vsub.f32 %v2077, %v2465
      %v2874 = vsub.f32 %v2082, %v2465
      %v2875 = vsub.f32 %v2085, %v2465
      %v2876 = vsub.f32 %v2090, %v2465
      %v2877 = vsub.f32 %v2093, %v2465
      %v2878 = vsub.f32 %v2098, %v2465
      %v2879 = vsub.f32 %v2101, %v2465
      %v2880 = vsub.f32 %v2106, %v2465
      %v2881 = vsub.f32 %v2109, %v2465
      %v2882 = vsub.f32 %v2114, %v2465
      %v2883 = vsub.f32 %v2117, %v2465
      %v2884 = vsub.f32 %v2122, %v2465
      %v2885 = vsub.f32 %v2125, %v2465
      %v2886 = vsub.f32 %v2130, %v2465
      %v2887 = vsub.f32 %v2133, %v2465
      %v2888 = vsub.f32 %v2138, %v2465
      %v2889 = vsub.f32 %v2141, %v2465
      %v2890 = vsub.f32 %v2146, %v2465
      %v2891 = vsub.f32 %v2149, %v2465
      %v2892 = vsub.f32 %v2154, %v2465
      %v2893 = vsub.f32 %v2157, %v2465
      %v2894 = vsub.f32 %v2162, %v2465
      %v2895 = vsub.f32 %v2165, %v2465
      %v2896 = vsub.f32 %v2170, %v2465
      %v2897 = vsub.f32 %v2173, %v2465
      %v2898 = vsub.f32 %v2178, %v2465
      %v2899 = vsub.f32 %v2181, %v2465
      %v2900 = vmul.f32 %v2868, %v2868
      %v2901 = vmul.f32 %v2869, %v2869
      %v2902 = vmul.f32 %v2870, %v2870
      %v2903 = vmul.f32 %v2871, %v2871
      %v2904 = vmul.f32 %v2872, %v2872
      %v2905 = vmul.f32 %v2873, %v2873
      %v2906 = vmul.f32 %v2874, %v2874
      %v2907 = vmul.f32 %v2875, %v2875
      %v2908 = vmul.f32 %v2876, %v2876
      %v2909 = vmul.f32 %v2877, %v2877
      %v2910 = vmul.f32 %v2878, %v2878
      %v2911 = vmul.f32 %v2879, %v2879
      %v2912 = vmul.f32 %v2880, %v2880
      %v2913 = vmul.f32 %v2881, %v2881
      %v2914 = vmul.f32 %v2882, %v2882
      %v2915 = vmul.f32 %v2883, %v2883
      %v2916 = vmul.f32 %v2884, %v2884
      %v2917 = vmul.f32 %v2885, %v2885
      %v2918 = vmul.f32 %v2886, %v2886
      %v2919 = vmul.f32 %v2887, %v2887
      %v2920 = vmul.f32 %v2888, %v2888
      %v2921 = vmul.f32 %v2889, %v2889
      %v2922 = vmul.f32 %v2890, %v2890
      %v2923 = vmul.f32 %v2891, %v2891
      %v2924 = vmul.f32 %v2892, %v2892
      %v2925 = vmul.f32 %v2893, %v2893
      %v2926 = vmul.f32 %v2894, %v2894
      %v2927 = vmul.f32 %v2895, %v2895
      %v2928 = vmul.f32 %v2896, %v2896
      %v2929 = vmul.f32 %v2897, %v2897
      %v2930 = vmul.f32 %v2898, %v2898
      %v2931 = vmul.f32 %v2899, %v2899
      %v2932 = vsel %vm295, %v2900, 0.0
      %v2933 = vsel %vm295, %v2901, 0.0
      %v2934 = vadd.f32 %v2932, %v2933
      %v2935 = vsel %vm295, %v2902, 0.0
      %v2936 = vadd.f32 %v2934, %v2935
      %v2937 = vsel %vm295, %v2903, 0.0
      %v2938 = vadd.f32 %v2936, %v2937
      %v2939 = vsel %vm295, %v2904, 0.0
      %v2940 = vadd.f32 %v2938, %v2939
      %v2941 = vsel %vm295, %v2905, 0.0
      %v2942 = vadd.f32 %v2940, %v2941
      %v2943 = vsel %vm295, %v2906, 0.0
      %v2944 = vadd.f32 %v2942, %v2943
      %v2945 = vsel %vm295, %v2907, 0.0
      %v2946 = vadd.f32 %v2944, %v2945
      %v2947 = vsel %vm295, %v2908, 0.0
      %v2948 = vadd.f32 %v2946, %v2947
      %v2949 = vsel %vm295, %v2909, 0.0
      %v2950 = vadd.f32 %v2948, %v2949
      %v2951 = vsel %vm295, %v2910, 0.0
      %v2952 = vadd.f32 %v2950, %v2951
      %v2953 = vsel %vm295, %v2911, 0.0
      %v2954 = vadd.f32 %v2952, %v2953
      %v2955 = vsel %vm295, %v2912, 0.0
      %v2956 = vadd.f32 %v2954, %v2955
      %v2957 = vsel %vm295, %v2913, 0.0
      %v2958 = vadd.f32 %v2956, %v2957
      %v2959 = vsel %vm295, %v2914, 0.0
      %v2960 = vadd.f32 %v2958, %v2959
      %v2961 = vsel %vm295, %v2915, 0.0
      %v2962 = vadd.f32 %v2960, %v2961
      %v2963 = vsel %vm295, %v2916, 0.0
      %v2964 = vadd.f32 %v2962, %v2963
      %v2965 = vsel %vm295, %v2917, 0.0
      %v2966 = vadd.f32 %v2964, %v2965
      %v2967 = vsel %vm295, %v2918, 0.0
      %v2968 = vadd.f32 %v2966, %v2967
      %v2969 = vsel %vm295, %v2919, 0.0
      %v2970 = vadd.f32 %v2968, %v2969
      %v2971 = vsel %vm295, %v2920, 0.0
      %v2972 = vadd.f32 %v2970, %v2971
      %v2973 = vsel %vm295, %v2921, 0.0
      %v2974 = vadd.f32 %v2972, %v2973
      %v2975 = vsel %vm295, %v2922, 0.0
      %v2976 = vadd.f32 %v2974, %v2975
      %v2977 = vsel %vm295, %v2923, 0.0
      %v2978 = vadd.f32 %v2976, %v2977
      %v2979 = vsel %vm295, %v2924, 0.0
      %v2980 = vadd.f32 %v2978, %v2979
      %v2981 = vsel %vm295, %v2925, 0.0
      %v2982 = vadd.f32 %v2980, %v2981
      %v2983 = vsel %vm295, %v2926, 0.0
      %v2984 = vadd.f32 %v2982, %v2983
      %v2985 = vsel %vm295, %v2927, 0.0
      %v2986 = vadd.f32 %v2984, %v2985
      %v2987 = vsel %vm295, %v2928, 0.0
      %v2988 = vadd.f32 %v2986, %v2987
      %v2989 = vsel %vm295, %v2929, 0.0
      %v2990 = vadd.f32 %v2988, %v2989
      %v2991 = vsel %vm295, %v2930, 0.0
      %v2992 = vadd.f32 %v2990, %v2991
      %v2993 = vsel %vm295, %v2931, 0.0
      %v2994 = vadd.f32 %v2992, %v2993
      %v2995 = vrot.slane %v2994, 4
      %v2996 = vadd.f32 %v2994, %v2995
      %v2997 = vrot.slane %v2996, 2
      %v2998 = vadd.f32 %v2996, %v2997
      %v2999 = vrot.slane %v2998, 1
      %v3000 = vadd.f32 %v2998, %v2999
      %v3001 = vadd.f32 %v2867, %v3000
      %v3002 = vmul.f32 %v3001, %v2464
      %v3003 = vadd.f32 %v3002, 1e-05
      %v3004 = vrsqrt.pop %v3003
      %v3005 = vmul.f32 %v2466, %v3004
      %v3006 = vmul.f32 %v2467, %v3004
      %v3007 = vmul.f32 %v2468, %v3004
      %v3008 = vmul.f32 %v2469, %v3004
      %v3009 = vmul.f32 %v2470, %v3004
      %v3010 = vmul.f32 %v2471, %v3004
      %v3011 = vmul.f32 %v2472, %v3004
      %v3012 = vmul.f32 %v2473, %v3004
      %v3013 = vmul.f32 %v2474, %v3004
      %v3014 = vmul.f32 %v2475, %v3004
      %v3015 = vmul.f32 %v2476, %v3004
      %v3016 = vmul.f32 %v2477, %v3004
      %v3017 = vmul.f32 %v2478, %v3004
      %v3018 = vmul.f32 %v2479, %v3004
      %v3019 = vmul.f32 %v2480, %v3004
      %v3020 = vmul.f32 %v2481, %v3004
      %v3021 = vmul.f32 %v2482, %v3004
      %v3022 = vmul.f32 %v2483, %v3004
      %v3023 = vmul.f32 %v2484, %v3004
      %v3024 = vmul.f32 %v2485, %v3004
      %v3025 = vmul.f32 %v2486, %v3004
      %v3026 = vmul.f32 %v2487, %v3004
      %v3027 = vmul.f32 %v2488, %v3004
      %v3028 = vmul.f32 %v2489, %v3004
      %v3029 = vmul.f32 %v2490, %v3004
      %v3030 = vmul.f32 %v2491, %v3004
      %v3031 = vmul.f32 %v2492, %v3004
      %v3032 = vmul.f32 %v2493, %v3004
      %v3033 = vmul.f32 %v2494, %v3004
      %v3034 = vmul.f32 %v2495, %v3004
      %v3035 = vmul.f32 %v2496, %v3004
      %v3036 = vmul.f32 %v2497, %v3004
      %v3037 = vmax.f32 %v3005, 0.0
      %v3038 = vmax.f32 %v3006, 0.0
      %v3039 = vmax.f32 %v3007, 0.0
      %v3040 = vmax.f32 %v3008, 0.0
      %v3041 = vmax.f32 %v3009, 0.0
      %v3042 = vmax.f32 %v3010, 0.0
      %v3043 = vmax.f32 %v3011, 0.0
      %v3044 = vmax.f32 %v3012, 0.0
      %v3045 = vmax.f32 %v3013, 0.0
      %v3046 = vmax.f32 %v3014, 0.0
      %v3047 = vmax.f32 %v3015, 0.0
      %v3048 = vmax.f32 %v3016, 0.0
      %v3049 = vmax.f32 %v3017, 0.0
      %v3050 = vmax.f32 %v3018, 0.0
      %v3051 = vmax.f32 %v3019, 0.0
      %v3052 = vmax.f32 %v3020, 0.0
      %v3053 = vmax.f32 %v3021, 0.0
      %v3054 = vmax.f32 %v3022, 0.0
      %v3055 = vmax.f32 %v3023, 0.0
      %v3056 = vmax.f32 %v3024, 0.0
      %v3057 = vmax.f32 %v3025, 0.0
      %v3058 = vmax.f32 %v3026, 0.0
      %v3059 = vmax.f32 %v3027, 0.0
      %v3060 = vmax.f32 %v3028, 0.0
      %v3061 = vmax.f32 %v3029, 0.0
      %v3062 = vmax.f32 %v3030, 0.0
      %v3063 = vmax.f32 %v3031, 0.0
      %v3064 = vmax.f32 %v3032, 0.0
      %v3065 = vmax.f32 %v3033, 0.0
      %v3066 = vmax.f32 %v3034, 0.0
      %v3067 = vmax.f32 %v3035, 0.0
      %v3068 = vmax.f32 %v3036, 0.0
      %3069 = vst.msk [vmem:[%s143] sm:$0xff] %vm295, %v3037
      %3070 = vst.msk [vmem:[%s143 + $0x8] sm:$0xff] %vm295, %v3038
      %3071 = vst.msk [vmem:[%s143 + $0x10] sm:$0xff] %vm295, %v3039
      %3072 = vst.msk [vmem:[%s143 + $0x18] sm:$0xff] %vm295, %v3040
      %3073 = vst.msk [vmem:[%s143 + $0x20] sm:$0xff] %vm295, %v3041
      %3074 = vst.msk [vmem:[%s143 + $0x28] sm:$0xff] %vm295, %v3042
      %3075 = vst.msk [vmem:[%s143 + $0x30] sm:$0xff] %vm295, %v3043
      %3076 = vst.msk [vmem:[%s143 + $0x38] sm:$0xff] %vm295, %v3044
      %3077 = vst.msk [vmem:[%s143 + $0x40] sm:$0xff] %vm295, %v3045
      %3078 = vst.msk [vmem:[%s143 + $0x48] sm:$0xff] %vm295, %v3046
      %3079 = vst.msk [vmem:[%s143 + $0x50] sm:$0xff] %vm295, %v3047
      %3080 = vst.msk [vmem:[%s143 + $0x58] sm:$0xff] %vm295, %v3048
      %3081 = vst.msk [vmem:[%s143 + $0x60] sm:$0xff] %vm295, %v3049
      %3082 = vst.msk [vmem:[%s143 + $0x68] sm:$0xff] %vm295, %v3050
      %3083 = vst.msk [vmem:[%s143 + $0x70] sm:$0xff] %vm295, %v3051
      %3084 = vst.msk [vmem:[%s143 + $0x78] sm:$0xff] %vm295, %v3052
      %3085 = vst.msk [vmem:[%s143 + $0x80] sm:$0xff] %vm295, %v3053
      %3086 = vst.msk [vmem:[%s143 + $0x88] sm:$0xff] %vm295, %v3054
      %3087 = vst.msk [vmem:[%s143 + $0x90] sm:$0xff] %vm295, %v3055
      %3088 = vst.msk [vmem:[%s143 + $0x98] sm:$0xff] %vm295, %v3056
      %3089 = vst.msk [vmem:[%s143 + $0xa0] sm:$0xff] %vm295, %v3057
      %3090 = vst.msk [vmem:[%s143 + $0xa8] sm:$0xff] %vm295, %v3058
      %3091 = vst.msk [vmem:[%s143 + $0xb0] sm:$0xff] %vm295, %v3059
      %3092 = vst.msk [vmem:[%s143 + $0xb8] sm:$0xff] %vm295, %v3060
      %3093 = vst.msk [vmem:[%s143 + $0xc0] sm:$0xff] %vm295, %v3061
      %3094 = vst.msk [vmem:[%s143 + $0xc8] sm:$0xff] %vm295, %v3062
      %3095 = vst.msk [vmem:[%s143 + $0xd0] sm:$0xff] %vm295, %v3063
      %3096 = vst.msk [vmem:[%s143 + $0xd8] sm:$0xff] %vm295, %v3064
      %3097 = vst.msk [vmem:[%s143 + $0xe0] sm:$0xff] %vm295, %v3065
      %3098 = vst.msk [vmem:[%s143 + $0xe8] sm:$0xff] %vm295, %v3066
      %3099 = vst.msk [vmem:[%s143 + $0xf0] sm:$0xff] %vm295, %v3067
      %3100 = vst.msk [vmem:[%s143 + $0xf8] sm:$0xff] %vm295, %v3068
      %v3101 = vmul.f32 %v2600, %v3004
      %v3102 = vmul.f32 %v2601, %v3004
      %v3103 = vmul.f32 %v2602, %v3004
      %v3104 = vmul.f32 %v2603, %v3004
      %v3105 = vmul.f32 %v2604, %v3004
      %v3106 = vmul.f32 %v2605, %v3004
      %v3107 = vmul.f32 %v2606, %v3004
      %v3108 = vmul.f32 %v2607, %v3004
      %v3109 = vmul.f32 %v2608, %v3004
      %v3110 = vmul.f32 %v2609, %v3004
      %v3111 = vmul.f32 %v2610, %v3004
      %v3112 = vmul.f32 %v2611, %v3004
      %v3113 = vmul.f32 %v2612, %v3004
      %v3114 = vmul.f32 %v2613, %v3004
      %v3115 = vmul.f32 %v2614, %v3004
      %v3116 = vmul.f32 %v2615, %v3004
      %v3117 = vmul.f32 %v2616, %v3004
      %v3118 = vmul.f32 %v2617, %v3004
      %v3119 = vmul.f32 %v2618, %v3004
      %v3120 = vmul.f32 %v2619, %v3004
      %v3121 = vmul.f32 %v2620, %v3004
      %v3122 = vmul.f32 %v2621, %v3004
      %v3123 = vmul.f32 %v2622, %v3004
      %v3124 = vmul.f32 %v2623, %v3004
      %v3125 = vmul.f32 %v2624, %v3004
      %v3126 = vmul.f32 %v2625, %v3004
      %v3127 = vmul.f32 %v2626, %v3004
      %v3128 = vmul.f32 %v2627, %v3004
      %v3129 = vmul.f32 %v2628, %v3004
      %v3130 = vmul.f32 %v2629, %v3004
      %v3131 = vmul.f32 %v2630, %v3004
      %v3132 = vmul.f32 %v2631, %v3004
      %v3133 = vmax.f32 %v3101, 0.0
      %v3134 = vmax.f32 %v3102, 0.0
      %v3135 = vmax.f32 %v3103, 0.0
      %v3136 = vmax.f32 %v3104, 0.0
      %v3137 = vmax.f32 %v3105, 0.0
      %v3138 = vmax.f32 %v3106, 0.0
      %v3139 = vmax.f32 %v3107, 0.0
      %v3140 = vmax.f32 %v3108, 0.0
      %v3141 = vmax.f32 %v3109, 0.0
      %v3142 = vmax.f32 %v3110, 0.0
      %v3143 = vmax.f32 %v3111, 0.0
      %v3144 = vmax.f32 %v3112, 0.0
      %v3145 = vmax.f32 %v3113, 0.0
      %v3146 = vmax.f32 %v3114, 0.0
      %v3147 = vmax.f32 %v3115, 0.0
      %v3148 = vmax.f32 %v3116, 0.0
      %v3149 = vmax.f32 %v3117, 0.0
      %v3150 = vmax.f32 %v3118, 0.0
      %v3151 = vmax.f32 %v3119, 0.0
      %v3152 = vmax.f32 %v3120, 0.0
      %v3153 = vmax.f32 %v3121, 0.0
      %v3154 = vmax.f32 %v3122, 0.0
      %v3155 = vmax.f32 %v3123, 0.0
      %v3156 = vmax.f32 %v3124, 0.0
      %v3157 = vmax.f32 %v3125, 0.0
      %v3158 = vmax.f32 %v3126, 0.0
      %v3159 = vmax.f32 %v3127, 0.0
      %v3160 = vmax.f32 %v3128, 0.0
      %v3161 = vmax.f32 %v3129, 0.0
      %v3162 = vmax.f32 %v3130, 0.0
      %v3163 = vmax.f32 %v3131, 0.0
      %v3164 = vmax.f32 %v3132, 0.0
      %s3165 = scalar_lea.vmem %s143, 256
      %3166 = vst.msk [vmem:[%s3165] sm:$0xff] %vm295, %v3133
      %3167 = vst.msk [vmem:[%s3165 + $0x8] sm:$0xff] %vm295, %v3134
      %3168 = vst.msk [vmem:[%s3165 + $0x10] sm:$0xff] %vm295, %v3135
      %3169 = vst.msk [vmem:[%s3165 + $0x18] sm:$0xff] %vm295, %v3136
      %3170 = vst.msk [vmem:[%s3165 + $0x20] sm:$0xff] %vm295, %v3137
      %3171 = vst.msk [vmem:[%s3165 + $0x28] sm:$0xff] %vm295, %v3138
      %3172 = vst.msk [vmem:[%s3165 + $0x30] sm:$0xff] %vm295, %v3139
      %3173 = vst.msk [vmem:[%s3165 + $0x38] sm:$0xff] %vm295, %v3140
      %3174 = vst.msk [vmem:[%s3165 + $0x40] sm:$0xff] %vm295, %v3141
      %3175 = vst.msk [vmem:[%s3165 + $0x48] sm:$0xff] %vm295, %v3142
      %3176 = vst.msk [vmem:[%s3165 + $0x50] sm:$0xff] %vm295, %v3143
      %3177 = vst.msk [vmem:[%s3165 + $0x58] sm:$0xff] %vm295, %v3144
      %3178 = vst.msk [vmem:[%s3165 + $0x60] sm:$0xff] %vm295, %v3145
      %3179 = vst.msk [vmem:[%s3165 + $0x68] sm:$0xff] %vm295, %v3146
      %3180 = vst.msk [vmem:[%s3165 + $0x70] sm:$0xff] %vm295, %v3147
      %3181 = vst.msk [vmem:[%s3165 + $0x78] sm:$0xff] %vm295, %v3148
      %3182 = vst.msk [vmem:[%s3165 + $0x80] sm:$0xff] %vm295, %v3149
      %3183 = vst.msk [vmem:[%s3165 + $0x88] sm:$0xff] %vm295, %v3150
      %3184 = vst.msk [vmem:[%s3165 + $0x90] sm:$0xff] %vm295, %v3151
      %3185 = vst.msk [vmem:[%s3165 + $0x98] sm:$0xff] %vm295, %v3152
      %3186 = vst.msk [vmem:[%s3165 + $0xa0] sm:$0xff] %vm295, %v3153
      %3187 = vst.msk [vmem:[%s3165 + $0xa8] sm:$0xff] %vm295, %v3154
      %3188 = vst.msk [vmem:[%s3165 + $0xb0] sm:$0xff] %vm295, %v3155
      %3189 = vst.msk [vmem:[%s3165 + $0xb8] sm:$0xff] %vm295, %v3156
      %3190 = vst.msk [vmem:[%s3165 + $0xc0] sm:$0xff] %vm295, %v3157
      %3191 = vst.msk [vmem:[%s3165 + $0xc8] sm:$0xff] %vm295, %v3158
      %3192 = vst.msk [vmem:[%s3165 + $0xd0] sm:$0xff] %vm295, %v3159
      %3193 = vst.msk [vmem:[%s3165 + $0xd8] sm:$0xff] %vm295, %v3160
      %3194 = vst.msk [vmem:[%s3165 + $0xe0] sm:$0xff] %vm295, %v3161
      %3195 = vst.msk [vmem:[%s3165 + $0xe8] sm:$0xff] %vm295, %v3162
      %3196 = vst.msk [vmem:[%s3165 + $0xf0] sm:$0xff] %vm295, %v3163
      %3197 = vst.msk [vmem:[%s3165 + $0xf8] sm:$0xff] %vm295, %v3164
      %v3198 = vmul.f32 %v2734, %v3004
      %v3199 = vmul.f32 %v2735, %v3004
      %v3200 = vmul.f32 %v2736, %v3004
      %v3201 = vmul.f32 %v2737, %v3004
      %v3202 = vmul.f32 %v2738, %v3004
      %v3203 = vmul.f32 %v2739, %v3004
      %v3204 = vmul.f32 %v2740, %v3004
      %v3205 = vmul.f32 %v2741, %v3004
      %v3206 = vmul.f32 %v2742, %v3004
      %v3207 = vmul.f32 %v2743, %v3004
      %v3208 = vmul.f32 %v2744, %v3004
      %v3209 = vmul.f32 %v2745, %v3004
      %v3210 = vmul.f32 %v2746, %v3004
      %v3211 = vmul.f32 %v2747, %v3004
      %v3212 = vmul.f32 %v2748, %v3004
      %v3213 = vmul.f32 %v2749, %v3004
      %v3214 = vmul.f32 %v2750, %v3004
      %v3215 = vmul.f32 %v2751, %v3004
      %v3216 = vmul.f32 %v2752, %v3004
      %v3217 = vmul.f32 %v2753, %v3004
      %v3218 = vmul.f32 %v2754, %v3004
      %v3219 = vmul.f32 %v2755, %v3004
      %v3220 = vmul.f32 %v2756, %v3004
      %v3221 = vmul.f32 %v2757, %v3004
      %v3222 = vmul.f32 %v2758, %v3004
      %v3223 = vmul.f32 %v2759, %v3004
      %v3224 = vmul.f32 %v2760, %v3004
      %v3225 = vmul.f32 %v2761, %v3004
      %v3226 = vmul.f32 %v2762, %v3004
      %v3227 = vmul.f32 %v2763, %v3004
      %v3228 = vmul.f32 %v2764, %v3004
      %v3229 = vmul.f32 %v2765, %v3004
      %v3230 = vmax.f32 %v3198, 0.0
      %v3231 = vmax.f32 %v3199, 0.0
      %v3232 = vmax.f32 %v3200, 0.0
      %v3233 = vmax.f32 %v3201, 0.0
      %v3234 = vmax.f32 %v3202, 0.0
      %v3235 = vmax.f32 %v3203, 0.0
      %v3236 = vmax.f32 %v3204, 0.0
      %v3237 = vmax.f32 %v3205, 0.0
      %v3238 = vmax.f32 %v3206, 0.0
      %v3239 = vmax.f32 %v3207, 0.0
      %v3240 = vmax.f32 %v3208, 0.0
      %v3241 = vmax.f32 %v3209, 0.0
      %v3242 = vmax.f32 %v3210, 0.0
      %v3243 = vmax.f32 %v3211, 0.0
      %v3244 = vmax.f32 %v3212, 0.0
      %v3245 = vmax.f32 %v3213, 0.0
      %v3246 = vmax.f32 %v3214, 0.0
      %v3247 = vmax.f32 %v3215, 0.0
      %v3248 = vmax.f32 %v3216, 0.0
      %v3249 = vmax.f32 %v3217, 0.0
      %v3250 = vmax.f32 %v3218, 0.0
      %v3251 = vmax.f32 %v3219, 0.0
      %v3252 = vmax.f32 %v3220, 0.0
      %v3253 = vmax.f32 %v3221, 0.0
      %v3254 = vmax.f32 %v3222, 0.0
      %v3255 = vmax.f32 %v3223, 0.0
      %v3256 = vmax.f32 %v3224, 0.0
      %v3257 = vmax.f32 %v3225, 0.0
      %v3258 = vmax.f32 %v3226, 0.0
      %v3259 = vmax.f32 %v3227, 0.0
      %v3260 = vmax.f32 %v3228, 0.0
      %v3261 = vmax.f32 %v3229, 0.0
      %s3262 = scalar_lea.vmem %s143, 512
      %3263 = vst.msk [vmem:[%s3262] sm:$0xff] %vm295, %v3230
      %3264 = vst.msk [vmem:[%s3262 + $0x8] sm:$0xff] %vm295, %v3231
      %3265 = vst.msk [vmem:[%s3262 + $0x10] sm:$0xff] %vm295, %v3232
      %3266 = vst.msk [vmem:[%s3262 + $0x18] sm:$0xff] %vm295, %v3233
      %3267 = vst.msk [vmem:[%s3262 + $0x20] sm:$0xff] %vm295, %v3234
      %3268 = vst.msk [vmem:[%s3262 + $0x28] sm:$0xff] %vm295, %v3235
      %3269 = vst.msk [vmem:[%s3262 + $0x30] sm:$0xff] %vm295, %v3236
      %3270 = vst.msk [vmem:[%s3262 + $0x38] sm:$0xff] %vm295, %v3237
      %3271 = vst.msk [vmem:[%s3262 + $0x40] sm:$0xff] %vm295, %v3238
      %3272 = vst.msk [vmem:[%s3262 + $0x48] sm:$0xff] %vm295, %v3239
      %3273 = vst.msk [vmem:[%s3262 + $0x50] sm:$0xff] %vm295, %v3240
      %3274 = vst.msk [vmem:[%s3262 + $0x58] sm:$0xff] %vm295, %v3241
      %3275 = vst.msk [vmem:[%s3262 + $0x60] sm:$0xff] %vm295, %v3242
      %3276 = vst.msk [vmem:[%s3262 + $0x68] sm:$0xff] %vm295, %v3243
      %3277 = vst.msk [vmem:[%s3262 + $0x70] sm:$0xff] %vm295, %v3244
      %3278 = vst.msk [vmem:[%s3262 + $0x78] sm:$0xff] %vm295, %v3245
      %3279 = vst.msk [vmem:[%s3262 + $0x80] sm:$0xff] %vm295, %v3246
      %3280 = vst.msk [vmem:[%s3262 + $0x88] sm:$0xff] %vm295, %v3247
      %3281 = vst.msk [vmem:[%s3262 + $0x90] sm:$0xff] %vm295, %v3248
      %3282 = vst.msk [vmem:[%s3262 + $0x98] sm:$0xff] %vm295, %v3249
      %3283 = vst.msk [vmem:[%s3262 + $0xa0] sm:$0xff] %vm295, %v3250
      %3284 = vst.msk [vmem:[%s3262 + $0xa8] sm:$0xff] %vm295, %v3251
      %3285 = vst.msk [vmem:[%s3262 + $0xb0] sm:$0xff] %vm295, %v3252
      %3286 = vst.msk [vmem:[%s3262 + $0xb8] sm:$0xff] %vm295, %v3253
      %3287 = vst.msk [vmem:[%s3262 + $0xc0] sm:$0xff] %vm295, %v3254
      %3288 = vst.msk [vmem:[%s3262 + $0xc8] sm:$0xff] %vm295, %v3255
      %3289 = vst.msk [vmem:[%s3262 + $0xd0] sm:$0xff] %vm295, %v3256
      %3290 = vst.msk [vmem:[%s3262 + $0xd8] sm:$0xff] %vm295, %v3257
      %3291 = vst.msk [vmem:[%s3262 + $0xe0] sm:$0xff] %vm295, %v3258
      %3292 = vst.msk [vmem:[%s3262 + $0xe8] sm:$0xff] %vm295, %v3259
      %3293 = vst.msk [vmem:[%s3262 + $0xf0] sm:$0xff] %vm295, %v3260
      %3294 = vst.msk [vmem:[%s3262 + $0xf8] sm:$0xff] %vm295, %v3261
      %v3295 = vmul.f32 %v2868, %v3004
      %v3296 = vmul.f32 %v2869, %v3004
      %v3297 = vmul.f32 %v2870, %v3004
      %v3298 = vmul.f32 %v2871, %v3004
      %v3299 = vmul.f32 %v2872, %v3004
      %v3300 = vmul.f32 %v2873, %v3004
      %v3301 = vmul.f32 %v2874, %v3004
      %v3302 = vmul.f32 %v2875, %v3004
      %v3303 = vmul.f32 %v2876, %v3004
      %v3304 = vmul.f32 %v2877, %v3004
      %v3305 = vmul.f32 %v2878, %v3004
      %v3306 = vmul.f32 %v2879, %v3004
      %v3307 = vmul.f32 %v2880, %v3004
      %v3308 = vmul.f32 %v2881, %v3004
      %v3309 = vmul.f32 %v2882, %v3004
      %v3310 = vmul.f32 %v2883, %v3004
      %v3311 = vmul.f32 %v2884, %v3004
      %v3312 = vmul.f32 %v2885, %v3004
      %v3313 = vmul.f32 %v2886, %v3004
      %v3314 = vmul.f32 %v2887, %v3004
      %v3315 = vmul.f32 %v2888, %v3004
      %v3316 = vmul.f32 %v2889, %v3004
      %v3317 = vmul.f32 %v2890, %v3004
      %v3318 = vmul.f32 %v2891, %v3004
      %v3319 = vmul.f32 %v2892, %v3004
      %v3320 = vmul.f32 %v2893, %v3004
      %v3321 = vmul.f32 %v2894, %v3004
      %v3322 = vmul.f32 %v2895, %v3004
      %v3323 = vmul.f32 %v2896, %v3004
      %v3324 = vmul.f32 %v2897, %v3004
      %v3325 = vmul.f32 %v2898, %v3004
      %v3326 = vmul.f32 %v2899, %v3004
      %v3327 = vmax.f32 %v3295, 0.0
      %v3328 = vmax.f32 %v3296, 0.0
      %v3329 = vmax.f32 %v3297, 0.0
      %v3330 = vmax.f32 %v3298, 0.0
      %v3331 = vmax.f32 %v3299, 0.0
      %v3332 = vmax.f32 %v3300, 0.0
      %v3333 = vmax.f32 %v3301, 0.0
      %v3334 = vmax.f32 %v3302, 0.0
      %v3335 = vmax.f32 %v3303, 0.0
      %v3336 = vmax.f32 %v3304, 0.0
      %v3337 = vmax.f32 %v3305, 0.0
      %v3338 = vmax.f32 %v3306, 0.0
      %v3339 = vmax.f32 %v3307, 0.0
      %v3340 = vmax.f32 %v3308, 0.0
      %v3341 = vmax.f32 %v3309, 0.0
      %v3342 = vmax.f32 %v3310, 0.0
      %v3343 = vmax.f32 %v3311, 0.0
      %v3344 = vmax.f32 %v3312, 0.0
      %v3345 = vmax.f32 %v3313, 0.0
      %v3346 = vmax.f32 %v3314, 0.0
      %v3347 = vmax.f32 %v3315, 0.0
      %v3348 = vmax.f32 %v3316, 0.0
      %v3349 = vmax.f32 %v3317, 0.0
      %v3350 = vmax.f32 %v3318, 0.0
      %v3351 = vmax.f32 %v3319, 0.0
      %v3352 = vmax.f32 %v3320, 0.0
      %v3353 = vmax.f32 %v3321, 0.0
      %v3354 = vmax.f32 %v3322, 0.0
      %v3355 = vmax.f32 %v3323, 0.0
      %v3356 = vmax.f32 %v3324, 0.0
      %v3357 = vmax.f32 %v3325, 0.0
      %v3358 = vmax.f32 %v3326, 0.0
      %s3359 = scalar_lea.vmem %s143, 768
      %3360 = vst.msk [vmem:[%s3359] sm:$0xff] %vm295, %v3327
      %3361 = vst.msk [vmem:[%s3359 + $0x8] sm:$0xff] %vm295, %v3328
      %3362 = vst.msk [vmem:[%s3359 + $0x10] sm:$0xff] %vm295, %v3329
      %3363 = vst.msk [vmem:[%s3359 + $0x18] sm:$0xff] %vm295, %v3330
      %3364 = vst.msk [vmem:[%s3359 + $0x20] sm:$0xff] %vm295, %v3331
      %3365 = vst.msk [vmem:[%s3359 + $0x28] sm:$0xff] %vm295, %v3332
      %3366 = vst.msk [vmem:[%s3359 + $0x30] sm:$0xff] %vm295, %v3333
      %3367 = vst.msk [vmem:[%s3359 + $0x38] sm:$0xff] %vm295, %v3334
      %3368 = vst.msk [vmem:[%s3359 + $0x40] sm:$0xff] %vm295, %v3335
      %3369 = vst.msk [vmem:[%s3359 + $0x48] sm:$0xff] %vm295, %v3336
      %3370 = vst.msk [vmem:[%s3359 + $0x50] sm:$0xff] %vm295, %v3337
      %3371 = vst.msk [vmem:[%s3359 + $0x58] sm:$0xff] %vm295, %v3338
      %3372 = vst.msk [vmem:[%s3359 + $0x60] sm:$0xff] %vm295, %v3339
      %3373 = vst.msk [vmem:[%s3359 + $0x68] sm:$0xff] %vm295, %v3340
      %3374 = vst.msk [vmem:[%s3359 + $0x70] sm:$0xff] %vm295, %v3341
      %3375 = vst.msk [vmem:[%s3359 + $0x78] sm:$0xff] %vm295, %v3342
      %3376 = vst.msk [vmem:[%s3359 + $0x80] sm:$0xff] %vm295, %v3343
      %3377 = vst.msk [vmem:[%s3359 + $0x88] sm:$0xff] %vm295, %v3344
      %3378 = vst.msk [vmem:[%s3359 + $0x90] sm:$0xff] %vm295, %v3345
      %3379 = vst.msk [vmem:[%s3359 + $0x98] sm:$0xff] %vm295, %v3346
      %3380 = vst.msk [vmem:[%s3359 + $0xa0] sm:$0xff] %vm295, %v3347
      %3381 = vst.msk [vmem:[%s3359 + $0xa8] sm:$0xff] %vm295, %v3348
      %3382 = vst.msk [vmem:[%s3359 + $0xb0] sm:$0xff] %vm295, %v3349
      %3383 = vst.msk [vmem:[%s3359 + $0xb8] sm:$0xff] %vm295, %v3350
      %3384 = vst.msk [vmem:[%s3359 + $0xc0] sm:$0xff] %vm295, %v3351
      %3385 = vst.msk [vmem:[%s3359 + $0xc8] sm:$0xff] %vm295, %v3352
      %3386 = vst.msk [vmem:[%s3359 + $0xd0] sm:$0xff] %vm295, %v3353
      %3387 = vst.msk [vmem:[%s3359 + $0xd8] sm:$0xff] %vm295, %v3354
      %3388 = vst.msk [vmem:[%s3359 + $0xe0] sm:$0xff] %vm295, %v3355
      %3389 = vst.msk [vmem:[%s3359 + $0xe8] sm:$0xff] %vm295, %v3356
      %3390 = vst.msk [vmem:[%s3359 + $0xf0] sm:$0xff] %vm295, %v3357
      %3391 = vst.msk [vmem:[%s3359 + $0xf8] sm:$0xff] %vm295, %v3358
      %p3392 = scmp.lt.s32.totalorder %s13, 1
      %s3393 = scalar_select %p3392, %s13, 1
      %s3394 = smul.addr %s3393, 128
      %s3395 = smul.addr %s3394, 8
      %s3396 = scalar_lea.vmem %s2, %s3395
      // Predicated region
      $region29: #{unet_up.1} parent=27 // pred_check
        %p3397 = pneg %p78
      $region30: #{unet_up.1} parent=27 // pred_check_branch
        %3399 = sbr.rel (%p3397) target = $region32
      $region31: #{unet_up.1} parent=27 // pred_region
        _
      $region32: #{unet_up.1} parent=27 // pred_fallthru
        _
    $region28: #{unet_up.1} parent=5 // pred_fallthru
      _
    %p3400 = scmp.le.s32.totalorder 2, %s8
    // Predicated region
    $region33: #{unet_up.1} parent=5 // pred_check
      %p3401 = pneg %p3400
    $region34: #{unet_up.1} parent=5 // pred_check_branch
      %3403 = sbr.rel (%p3401) target = $region36
    $region35: #{unet_up.1} parent=5 // pred_region
      %s3404 = ssub.s32 %s8, 2
      // Predicated region
      $region37: #{unet_up.1} parent=35 // pred_check
        %p3405 = pneg %p84
      $region38: #{unet_up.1} parent=35 // pred_check_branch
        %3407 = sbr.rel (%p3405) target = $region40
      $region39: #{unet_up.1} parent=35 // pred_region
        %p3408 = scmp.lt.s32.totalorder %s14, 1
        %s3409 = scalar_select %p3408, %s14, 1
        %s3410 = smul.addr %s3409, 128
        %s3411 = smul.addr %s3410, 8
        %s3412 = scalar_lea.vmem %s2, %s3411
      $region40: #{unet_up.1} parent=35 // pred_fallthru
        _
    $region36: #{unet_up.1} parent=5 // pred_fallthru
      _
  $region6: #{unet_up.1} parent=0 // loop_footer
    %s12 = sadd.s32 1, %s8
  $region7: #{unet_up.1} parent=0 // loop_footer_branch
    %7 = sbr.rel target = $region3
  $region8: #{unet_up.1} parent=0 // loop_exit
    _

</llo_original>
